<compile_context>
chip_gen: v5e
topology: v5e:2x2
jax: 0.10.0
libtpu: 0.0.40
codegen_flags: <defaults>
</compile_context>

<pallas_src>
import functools
import math

import jax
import jax.numpy as jnp
from jax import lax
from jax.experimental import pallas as pl
from jax.experimental.pallas import tpu as pltpu


# ---------------------------------------------------------------------------
# tiling helpers
# ---------------------------------------------------------------------------

def _pick_tile(n, target, align):
    """Largest tile <= target that divides n and is `align`-aligned, else n."""
    if n <= target:
        return n
    t = (target // align) * align
    while t >= align:
        if n % t == 0:
            return t
        t -= align
    return n


def _plan_rows(m, target=256):
    """Row (sublane) tiling.  Returns (tile, padded_rows)."""
    if m <= target:
        return m, m
    t = _pick_tile(m, target, 8)
    if t != m:                         # found an aligned divisor <= target
        return t, m
    mp = -(-m // target) * target      # guard: pad instead of whole-array tile
    return target, mp


def _plan_cols(n, target=512):
    """Column (lane) tiling.  Returns (tile, padded_cols).  Pads any lane
    width that is not a multiple of 128 so stores stay unmasked (vst)."""
    if n % 128 == 0:
        return _pick_tile(n, target, 128), n
    np_ = -(-n // 128) * 128
    if np_ <= target:
        return np_, np_
    return _pick_tile(np_, target, 128), np_


def _dropout_threshold(p):
    # TODO(synk): for p == 1.0 keep-probability is ~2^-32 instead of exactly 0
    # (negligible, but not exact nn.Dropout boundary semantics).
    return jnp.uint32(min(int(p * 4294967296.0), 4294967295))


# ---------------------------------------------------------------------------
# fused  [LayerNorm] -> matmul -> +bias -> [relu] -> [dropout] -> [+residual]
# ---------------------------------------------------------------------------

def _linear_kernel(*refs, has_ln, activation, has_residual, dropout_p,
                   training, eps, compute_dtype):
    i = 0
    drop = training and dropout_p > 0.0
    if drop:
        seed_ref = refs[i]; i += 1
    x_ref = refs[i]; i += 1
    w_ref = refs[i]; i += 1
    b_ref = refs[i]; i += 1
    if has_ln:
        g_ref = refs[i]; i += 1
        bb_ref = refs[i]; i += 1
    if has_residual:
        r_ref = refs[i]; i += 1
    o_ref = refs[i]

    x = x_ref[...].astype(jnp.float32)                       # (tm, K) full K
    if has_ln:
        # torch LayerNorm of the spec module: unbiased std, a*(x-m)/(std+eps)+b
        mean = jnp.mean(x, axis=-1, keepdims=True)
        xc = x - mean
        var = jnp.sum(xc * xc, axis=-1, keepdims=True) / (x.shape[-1] - 1)
        inv = pl.reciprocal(jnp.sqrt(var) + eps, approx=True)
        x = g_ref[...].astype(jnp.float32) * xc * inv + bb_ref[...].astype(jnp.float32)

    y = jnp.dot(x.astype(compute_dtype), w_ref[...].astype(compute_dtype),
                preferred_element_type=jnp.float32)
    y = y + b_ref[...].astype(jnp.float32)
    if activation == "relu":
        y = jnp.maximum(y, 0.0)
    if drop:
        # TODO(synk): TPU hardware PRNG stream differs from torch's RNG
        # (statistically equivalent).  Seed bases of different calls are
        # spaced by >=2^16 so per-tile offsets cannot collide across calls.
        pltpu.prng_seed(seed_ref[0]
                        + pl.program_id(0) * pl.num_programs(1)
                        + pl.program_id(1))
        bits = pltpu.bitcast(pltpu.prng_random_bits(y.shape), jnp.uint32)
        y = jnp.where(bits >= _dropout_threshold(dropout_p),
                      y * (1.0 / (1.0 - dropout_p)), 0.0)
    if has_residual:
        y = r_ref[...].astype(jnp.float32) + y
    o_ref[...] = y.astype(o_ref.dtype)


def linear(x2d, w, b, *, ln=None, activation=None, residual=None,
           dropout_p=0.0, training=False, seed=0,
           compute_dtype=jnp.float32, return_padded=False):
    """act(LN?(x2d) @ w + b) with optional fused dropout / residual add.

    x2d: (M, K); w: (K, N); b: (N,); ln: (gamma, beta) or None;
    residual: (M, N) or None (output = residual + dropout(act(...))).
    """
    M, K = x2d.shape
    N = w.shape[1]
    tm, Mp = _plan_rows(M)
    tn, Np = _plan_cols(N)
    # v7x has 2 TensorCores sharing the grid: keep >=2 parallel steps when the
    # natural tiling collapses to a single block.
    if Mp // tm == 1 and Np // tn == 1 and tn % 256 == 0:
        tn //= 2

    w = w.astype(compute_dtype)
    b2 = b.reshape(1, N).astype(jnp.float32)
    if Np > N:
        w = jnp.pad(w, ((0, 0), (0, Np - N)))
        b2 = jnp.pad(b2, ((0, 0), (0, Np - N)))
    x = x2d if Mp == M else jnp.pad(x2d, ((0, Mp - M), (0, 0)))
    r = residual
    if r is not None and (Mp > M or Np > N):
        r = jnp.pad(r, ((0, Mp - M), (0, Np - N)))

    drop = training and dropout_p > 0.0
    in_specs = []
    inputs = []
    if drop:
        in_specs.append(pl.BlockSpec(memory_space=pltpu.MemorySpace.SMEM))
        inputs.append(jnp.array([seed], jnp.int32))
    in_specs += [pl.BlockSpec((tm, K), lambda i, j: (i, 0)),
                 pl.BlockSpec((K, tn), lambda i, j: (0, j)),
                 pl.BlockSpec((1, tn), lambda i, j: (0, j))]
    inputs += [x, w, b2]
    if ln is not None:
        g, bb = ln
        in_specs += [pl.BlockSpec((1, K), lambda i, j: (0, 0)),
                     pl.BlockSpec((1, K), lambda i, j: (0, 0))]
        inputs += [g.reshape(1, K).astype(jnp.float32),
                   bb.reshape(1, K).astype(jnp.float32)]
    if r is not None:
        in_specs.append(pl.BlockSpec((tm, tn), lambda i, j: (i, j)))
        inputs.append(r)

    kernel = functools.partial(
        _linear_kernel, has_ln=ln is not None, activation=activation,
        has_residual=residual is not None, dropout_p=dropout_p,
        training=training, eps=1e-6, compute_dtype=compute_dtype)

    out = pl.pallas_call(
        kernel,
        out_shape=jax.ShapeDtypeStruct((Mp, Np), x2d.dtype),
        grid=(Mp // tm, Np // tn),
        in_specs=in_specs,
        out_specs=pl.BlockSpec((tm, tn), lambda i, j: (i, j)),
        compiler_params=pltpu.CompilerParams(
            dimension_semantics=("parallel", "parallel")),
    )(*inputs)

    if Mp > M:
        out = out[:M]
    if Np > N and not return_padded:
        out = out[:, :N]
    return out


# ---------------------------------------------------------------------------
# fused per-batch multi-head attention (all heads in one grid step)
# ---------------------------------------------------------------------------

def _attention_kernel(*refs, heads, dk, causal, fused_qkv, compute_dtype):
    D = heads * dk
    if fused_qkv:
        qkv_ref, rest = refs[0], refs[1:]
        src = qkv_ref[0].astype(compute_dtype)              # (T, >=3D) padded
        q_all = src[:, 0:D]
        k_all = src[:, D:2 * D]
        v_all = src[:, 2 * D:3 * D]
    else:
        q_ref, kv_ref, rest = refs[0], refs[1], refs[2:]
        q_all = q_ref[0].astype(compute_dtype)[:, 0:D]
        kv = kv_ref[0].astype(compute_dtype)
        k_all = kv[:, 0:D]
        v_all = kv[:, D:2 * D]
    if causal:
        pm_ref, o_ref = rest
    else:
        (o_ref,) = rest

    T = q_all.shape[0]
    S = k_all.shape[0]
    scale = 1.0 / math.sqrt(dk)
    if causal:
        pm = pm_ref[0]                                       # (1, S) int32
        row = lax.broadcasted_iota(jnp.int32, (T, S), 0)
        col = lax.broadcasted_iota(jnp.int32, (T, S), 1)
        keep = (col <= row) & (pm != 0)

    outs = []
    for head in range(heads):                                # static unroll
        qh = q_all[:, head * dk:(head + 1) * dk]
        kh = k_all[:, head * dk:(head + 1) * dk]
        vh = v_all[:, head * dk:(head + 1) * dk]
        s = lax.dot_general(qh, kh, (((1,), (1,)), ((), ())),
                            preferred_element_type=jnp.float32) * scale
        if causal:
            s = jnp.where(keep, s, -1000000000.0)
        s = s - jnp.max(s, axis=-1, keepdims=True)
        p = jnp.exp(s)
        p = p * pl.reciprocal(jnp.sum(p, axis=-1, keepdims=True), approx=True)
        outs.append(jnp.dot(p.astype(compute_dtype), vh,
                            preferred_element_type=jnp.float32))
    o_ref[0] = jnp.concatenate(outs, axis=-1).astype(o_ref.dtype)


def self_attention(qkv, pad_mask, *, heads, dk, compute_dtype):
    """qkv: (B, T, >=3*heads*dk) packed [Q|K|V]; pad_mask: (B,1,T) int32."""
    B, T, Wq = qkv.shape
    D = heads * dk
    kernel = functools.partial(_attention_kernel, heads=heads, dk=dk,
                               causal=True, fused_qkv=True,
                               compute_dtype=compute_dtype)
    return pl.pallas_call(
        kernel,
        out_shape=jax.ShapeDtypeStruct((B, T, D), qkv.dtype),
        grid=(B,),
        in_specs=[pl.BlockSpec((1, T, Wq), lambda b: (b, 0, 0)),
                  pl.BlockSpec((1, 1, T), lambda b: (b, 0, 0))],
        out_specs=pl.BlockSpec((1, T, D), lambda b: (b, 0, 0)),
        compiler_params=pltpu.CompilerParams(
            dimension_semantics=("parallel",)),
    )(qkv, pad_mask)


def cross_attention(q, kv, *, heads, dk, compute_dtype):
    """q: (B, T, >=heads*dk); kv: (B, S, >=2*heads*dk) packed [K|V]."""
    B, T, Wq = q.shape
    S, Wkv = kv.shape[1], kv.shape[2]
    D = heads * dk
    kernel = functools.partial(_attention_kernel, heads=heads, dk=dk,
                               causal=False, fused_qkv=False,
                               compute_dtype=compute_dtype)
    return pl.pallas_call(
        kernel,
        out_shape=jax.ShapeDtypeStruct((B, T, D), q.dtype),
        grid=(B,),
        in_specs=[pl.BlockSpec((1, T, Wq), lambda b: (b, 0, 0)),
                  pl.BlockSpec((1, S, Wkv), lambda b: (b, 0, 0))],
        out_specs=pl.BlockSpec((1, T, D), lambda b: (b, 0, 0)),
        compiler_params=pltpu.CompilerParams(
            dimension_semantics=("parallel",)),
    )(q, kv)


# ---------------------------------------------------------------------------
# positional-encoding broadcast add + dropout (image 2-D PE and token 1-D PE)
# ---------------------------------------------------------------------------

def _pe_add_kernel(*refs, p, training):
    if training and p > 0.0:
        seed_ref, x_ref, pe_ref, o_ref = refs
    else:
        x_ref, pe_ref, o_ref = refs
    s = x_ref[0] + pe_ref[...].astype(x_ref.dtype)
    if training and p > 0.0:
        pltpu.prng_seed(seed_ref[0] + pl.program_id(0))
        bits = pltpu.bitcast(pltpu.prng_random_bits(s.shape), jnp.uint32)
        s = jnp.where(bits >= _dropout_threshold(p), s * (1.0 / (1.0 - p)), 0.0)
    o_ref[0] = s.astype(o_ref.dtype)


def pe_add_dropout(x, pe, *, p, training, seed):
    """x: (B, R, C); pe: (R, C) broadcast over batch.  dropout(x + pe)."""
    B, R, C = x.shape
    in_specs = []
    inputs = []
    if training and p > 0.0:
        in_specs.append(pl.BlockSpec(memory_space=pltpu.MemorySpace.SMEM))
        inputs.append(jnp.array([seed], jnp.int32))
    in_specs += [pl.BlockSpec((1, R, C), lambda b: (b, 0, 0)),
                 pl.BlockSpec((R, C), lambda b: (0, 0))]
    inputs += [x, pe.astype(x.dtype)]
    return pl.pallas_call(
        functools.partial(_pe_add_kernel, p=p, training=training),
        out_shape=jax.ShapeDtypeStruct((B, R, C), x.dtype),
        grid=(B,),
        in_specs=in_specs,
        out_specs=pl.BlockSpec((1, R, C), lambda b: (b, 0, 0)),
        compiler_params=pltpu.CompilerParams(
            dimension_semantics=("parallel",)),
    )(*inputs)


# ---------------------------------------------------------------------------
# positional-encoding tables / mask (plain JAX, built once)
# ---------------------------------------------------------------------------

def _build_pe_1d(d_model, max_len=350):
    position = jnp.arange(max_len, dtype=jnp.float32)[:, None]
    div_term = jnp.exp(jnp.arange(0, d_model, 2, dtype=jnp.float32)
                       * -(math.log(10000.0) / d_model))
    pe = jnp.zeros((max_len, d_model), dtype=jnp.float32)
    pe = pe.at[:, 0::2].set(jnp.sin(position * div_term))
    pe = pe.at[:, 1::2].set(jnp.cos(position * div_term))
    return pe


def _build_pe_2d(d_model, h=8, w=8):
    half = d_model // 2
    div_term = jnp.exp(jnp.arange(0, half, 2, dtype=jnp.float32)
                       * -(math.log(10000.0) / half))
    pos_w = jnp.arange(w, dtype=jnp.float32)[:, None]
    pos_h = jnp.arange(h, dtype=jnp.float32)[:, None]
    pe = jnp.zeros((d_model, h, w), dtype=jnp.float32)
    sw = jnp.sin(pos_w * div_term).T[:, None, :]
    cw = jnp.cos(pos_w * div_term).T[:, None, :]
    sh = jnp.sin(pos_h * div_term).T[:, :, None]
    ch = jnp.cos(pos_h * div_term).T[:, :, None]
    pe = pe.at[0:half:2].set(jnp.broadcast_to(sw, (sw.shape[0], h, w)))
    pe = pe.at[1:half:2].set(jnp.broadcast_to(cw, (cw.shape[0], h, w)))
    pe = pe.at[half::2].set(jnp.broadcast_to(sh, (sh.shape[0], h, w)))
    pe = pe.at[half + 1::2].set(jnp.broadcast_to(ch, (ch.shape[0], h, w)))
    return jnp.transpose(pe, (1, 2, 0))                      # (h, w, d_model)


def make_std_mask(tgt, pad_idx):
    """(B,T,T) int mask; used by the pure-JAX reference only (the Pallas
    attention kernel rebuilds the same mask in-kernel from iota + pad vec)."""
    T = tgt.shape[-1]
    pad_mask = (tgt != pad_idx)[:, None, :]
    sub = jnp.tril(jnp.ones((T, T), dtype=bool))
    return (pad_mask & sub[None, :, :]).astype(jnp.int32)


# ---------------------------------------------------------------------------
# model forward (wrappers around the kernels)
# ---------------------------------------------------------------------------

def decoder_forward(x, mem, pad_mask, dec_prm, *, heads, p, training, seed,
                    compute_dtype):
    B, T, D = x.shape
    S = mem.shape[1]
    dk = D // heads
    cdt = compute_dtype
    for li, lp in enumerate(dec_prm["layers"]):
        base = seed + li * (8 << 16)        # well-separated per-call seed bases
        # ---- self-attention sublayer:  x + drop(Wo @ attn(LN(x))) ----------
        qkv = linear(x.reshape(B * T, D), lp["self"]["wqkv"], lp["self"]["bqkv"],
                     ln=(lp["self"]["ln_g"], lp["self"]["ln_b"]),
                     compute_dtype=cdt, return_padded=True)
        att = self_attention(qkv.reshape(B, T, -1), pad_mask,
                             heads=heads, dk=dk, compute_dtype=cdt)
        x = linear(att.reshape(B * T, D), lp["self"]["wo"], lp["self"]["bo"],
                   residual=x.reshape(B * T, D), dropout_p=p, training=training,
                   seed=base, compute_dtype=cdt).reshape(B, T, D)
        # ---- src-attention sublayer ----------------------------------------
        kv = linear(mem.reshape(B * S, D), lp["src"]["wkv"], lp["src"]["bkv"],
                    compute_dtype=cdt, return_padded=True).reshape(B, S, -1)
        q = linear(x.reshape(B * T, D), lp["src"]["wq"], lp["src"]["bq"],
                   ln=(lp["src"]["ln_g"], lp["src"]["ln_b"]),
                   compute_dtype=cdt, return_padded=True).reshape(B, T, -1)
        att = cross_attention(q, kv, heads=heads, dk=dk, compute_dtype=cdt)
        x = linear(att.reshape(B * T, D), lp["src"]["wo"], lp["src"]["bo"],
                   residual=x.reshape(B * T, D), dropout_p=p, training=training,
                   seed=base + (1 << 16), compute_dtype=cdt).reshape(B, T, D)
        # ---- feed-forward sublayer: x + drop(W2 @ drop(relu(W1 @ LN(x)))) ---
        hid = linear(x.reshape(B * T, D), lp["ff"]["w1"], lp["ff"]["b1"],
                     ln=(lp["ff"]["ln_g"], lp["ff"]["ln_b"]), activation="relu",
                     dropout_p=p, training=training, seed=base + (2 << 16),
                     compute_dtype=cdt)
        x = linear(hid, lp["ff"]["w2"], lp["ff"]["b2"],
                   residual=x.reshape(B * T, D), dropout_p=p, training=training,
                   seed=base + (3 << 16), compute_dtype=cdt).reshape(B, T, D)
    return x                                  # final LN fused into the generator


def transformer_forward(prm, imgs, encoded_inchis, inchi_lengths, *,
                        cfg, training=False, seed=0,
                        compute_dtype=jnp.float32):
    """Teacher-force forward (eval mode when training=False)."""
    B = imgs.shape[0]
    d_dec = cfg["d_dec"]
    p = cfg["dropout"]
    cdt = compute_dtype

    # sort by caption length (descending), as in the PyTorch forward
    lengths = inchi_lengths[:, 0]
    sort_ind = jnp.argsort(-lengths)
    lengths = lengths[sort_ind]
    imgs = imgs[sort_ind]
    encoded_inchis = encoded_inchis[sort_ind]
    decode_lengths = lengths - 1

    # --- image path: PositionalEncoding2d(+dropout) -> linears --------------
    hh, ww, d_enc = imgs.shape[1], imgs.shape[2], imgs.shape[3]
    n_pix = hh * ww
    x = pe_add_dropout(imgs.reshape(B, n_pix, d_enc),
                       prm["pe2d"].reshape(n_pix, d_enc),
                       p=p, training=training, seed=seed)
    x = linear(x.reshape(B * n_pix, d_enc),
               prm["img_enc_to_dec"]["w"], prm["img_enc_to_dec"]["b"],
               activation="relu", compute_dtype=cdt)
    x = x.reshape(B, n_pix, d_dec).transpose(0, 2, 1)         # (B, d_dec, n_pix)
    x = linear(x.reshape(B * d_dec, n_pix),
               prm["img_projection"]["w"], prm["img_projection"]["b"],
               activation="relu", compute_dtype=cdt)
    mem = x.reshape(B, d_dec, cfg["tgt_length"]).transpose(0, 2, 1)  # (B,S,D)

    # --- token path: embed + 1-D positional encoding(+dropout) --------------
    inchis = encoded_inchis[:, :-1]
    T = inchis.shape[1]
    pad_mask = (inchis != cfg["pad_idx"]).astype(jnp.int32)[:, None, :]  # (B,1,T)
    # TODO(synk): embedding-table gather stays in plain JAX (jnp.take).
    emb = jnp.take(prm["voc_embed"], inchis, axis=0) * math.sqrt(d_dec)
    emb = pe_add_dropout(emb, prm["pe1d"][:T],
                         p=p, training=training, seed=seed + (1 << 16))

    # --- decoder + generator (final LayerNorm fused into generator matmul) --
    x = decoder_forward(emb, mem, pad_mask, prm["decoder"],
                        heads=cfg["h"], p=p, training=training,
                        seed=seed + (2 << 16), compute_dtype=cdt)
    preds = linear(x.reshape(B * T, d_dec),
                   prm["generator"]["w"], prm["generator"]["b"],
                   ln=(prm["decoder"]["norm_g"], prm["decoder"]["norm_b"]),
                   compute_dtype=cdt)
    preds = preds.reshape(B, T, cfg["vocab_size"])
    return preds, encoded_inchis, decode_lengths


# ---------------------------------------------------------------------------
# parameter init (torch-like structure) and packing for the fused kernels
# ---------------------------------------------------------------------------

def init_params(key, cfg):
    d_dec, d_ff, d_enc = cfg["d_dec"], cfg["d_ff"], cfg["d_enc"]
    vocab, N = cfg["vocab_size"], cfg["N"]
    keys = iter(jax.random.split(key, 64))

    def dense(fan_in, fan_out):
        kw, kb = jax.random.split(next(keys))
        w = jax.random.normal(kw, (fan_in, fan_out), jnp.float32) / math.sqrt(fan_in)
        b = 0.01 * jax.random.normal(kb, (fan_out,), jnp.float32)
        return {"w": w, "b": b}

    def mha():
        prm = {}
        for nm in ("q", "k", "v", "o"):
            lin = dense(d_dec, d_dec)
            prm["w" + nm], prm["b" + nm] = lin["w"], lin["b"]
        return prm

    def norm():
        return {"a": jnp.ones((d_dec,), jnp.float32),
                "b": jnp.zeros((d_dec,), jnp.float32)}

    layers = []
    for _ in range(N):
        ff1, ff2 = dense(d_dec, d_ff), dense(d_ff, d_dec)
        layers.append({
            "self_attn": mha(), "src_attn": mha(),
            "ff": {"w1": ff1["w"], "b1": ff1["b"], "w2": ff2["w"], "b2": ff2["b"]},
            "norm0": norm(), "norm1": norm(), "norm2": norm(),
        })

    return {
        "pe2d": _build_pe_2d(d_dec, h=8, w=8),
        "pe1d": _build_pe_1d(d_dec, max_len=cfg["max_len"]),
        "voc_embed": 0.1 * jax.random.normal(next(keys), (vocab, d_dec), jnp.float32),
        "img_enc_to_dec": dense(d_enc, d_dec),
        "img_projection": dense(cfg["n_pix"], cfg["tgt_length"]),
        "decoder": {"layers": layers, "norm": norm()},
        "generator": dense(d_dec, vocab),
    }


def prepare_params(prm, compute_dtype):
    """Pack QKV / KV weights for the fused projections and cast the big weight
    matrices to the MXU compute dtype (bf16 on v6e/v7x; biases/LN stay f32)."""
    def cast(w):
        return w.astype(compute_dtype)

    layers = []
    for lp in prm["decoder"]["layers"]:
        sa, sr, ff = lp["self_attn"], lp["src_attn"], lp["ff"]
        layers.append({
            "self": {"wqkv": cast(jnp.concatenate([sa["wq"], sa["wk"], sa["wv"]], axis=1)),
                     "bqkv": jnp.concatenate([sa["bq"], sa["bk"], sa["bv"]]),
                     "wo": cast(sa["wo"]), "bo": sa["bo"],
                     "ln_g": lp["norm0"]["a"], "ln_b": lp["norm0"]["b"]},
            "src": {"wq": cast(sr["wq"]), "bq": sr["bq"],
                    "wkv": cast(jnp.concatenate([sr["wk"], sr["wv"]], axis=1)),
                    "bkv": jnp.concatenate([sr["bk"], sr["bv"]]),
                    "wo": cast(sr["wo"]), "bo": sr["bo"],
                    "ln_g": lp["norm1"]["a"], "ln_b": lp["norm1"]["b"]},
            "ff": {"w1": cast(ff["w1"]), "b1": ff["b1"],
                   "w2": cast(ff["w2"]), "b2": ff["b2"],
                   "ln_g": lp["norm2"]["a"], "ln_b": lp["norm2"]["b"]},
        })
    return {
        "pe2d": prm["pe2d"], "pe1d": prm["pe1d"], "voc_embed": prm["voc_embed"],
        "img_enc_to_dec": {"w": cast(prm["img_enc_to_dec"]["w"]),
                           "b": prm["img_enc_to_dec"]["b"]},
        "img_projection": {"w": cast(prm["img_projection"]["w"]),
                           "b": prm["img_projection"]["b"]},
        "decoder": {"layers": layers,
                    "norm_g": prm["decoder"]["norm"]["a"],
                    "norm_b": prm["decoder"]["norm"]["b"]},
        "generator": {"w": cast(prm["generator"]["w"]), "b": prm["generator"]["b"]},
    }


# ---------------------------------------------------------------------------
# pure-JAX reference (eval mode) for correctness check
# ---------------------------------------------------------------------------

def _ref_layer_norm(x, a, b, eps=1e-6):
    mean = jnp.mean(x, axis=-1, keepdims=True)
    var = jnp.sum((x - mean) ** 2, axis=-1, keepdims=True) / (x.shape[-1] - 1)
    return a * (x - mean) / (jnp.sqrt(var) + eps) + b


def _ref_attention(q, k, v, mask):
    dk = q.shape[-1]
    s = jnp.einsum("bhqd,bhkd->bhqk", q, k) / math.sqrt(dk)
    if mask is not None:
        s = jnp.where(mask[:, None, :, :] == 0, -1000000000.0, s)
    s = s - jnp.max(s, axis=-1, keepdims=True)
    p = jnp.exp(s)
    p = p / jnp.sum(p, axis=-1, keepdims=True)
    return jnp.einsum("bhqk,bhkd->bhqd", p, v)


def _ref_mha(xq, xkv, mask, prm, h):
    B, Tq, D = xq.shape
    dk = D // h

    def proj(x, w, b):
        return (x @ w + b).reshape(x.shape[0], x.shape[1], h, dk).transpose(0, 2, 1, 3)

    q = proj(xq, prm["wq"], prm["bq"])
    k = proj(xkv, prm["wk"], prm["bk"])
    v = proj(xkv, prm["wv"], prm["bv"])
    o = _ref_attention(q, k, v, mask).transpose(0, 2, 1, 3).reshape(B, Tq, D)
    return o @ prm["wo"] + prm["bo"]


def _reference_forward(prm, imgs, encoded_inchis, inchi_lengths, *, cfg):
    h, d_dec, pad_idx = cfg["h"], cfg["d_dec"], cfg["pad_idx"]
    lengths = inchi_lengths[:, 0]
    si = jnp.argsort(-lengths)
    imgs, enc = imgs[si], encoded_inchis[si]
    B, hh, ww, d_enc = imgs.shape
    x = imgs + prm["pe2d"][None]
    x = x.reshape(B, hh * ww, d_enc)
    x = jnp.maximum(x @ prm["img_enc_to_dec"]["w"] + prm["img_enc_to_dec"]["b"], 0.0)
    x = jnp.transpose(x, (0, 2, 1))
    x = jnp.maximum(x @ prm["img_projection"]["w"] + prm["img_projection"]["b"], 0.0)
    mem = jnp.transpose(x, (0, 2, 1))

    inchis = enc[:, :-1]
    T = inchis.shape[1]
    mask = make_std_mask(inchis, pad_idx)
    x = jnp.take(prm["voc_embed"], inchis, axis=0) * math.sqrt(d_dec) + prm["pe1d"][None, :T]
    for lp in prm["decoder"]["layers"]:
        nx = _ref_layer_norm(x, lp["norm0"]["a"], lp["norm0"]["b"])
        x = x + _ref_mha(nx, nx, mask, lp["self_attn"], h)
        nx = _ref_layer_norm(x, lp["norm1"]["a"], lp["norm1"]["b"])
        x = x + _ref_mha(nx, mem, None, lp["src_attn"], h)
        nx = _ref_layer_norm(x, lp["norm2"]["a"], lp["norm2"]["b"])
        hid = jnp.maximum(nx @ lp["ff"]["w1"] + lp["ff"]["b1"], 0.0)
        x = x + (hid @ lp["ff"]["w2"] + lp["ff"]["b2"])
    x = _ref_layer_norm(x, prm["decoder"]["norm"]["a"], prm["decoder"]["norm"]["b"])
    return x @ prm["generator"]["w"] + prm["generator"]["b"]


# ---------------------------------------------------------------------------
# main
# ---------------------------------------------------------------------------

if __name__ == "__main__":
    # TODO(synk): predict() beam search and two_pass_mixed_predict() scheduled
    # sampling are host-side Python control flow and are not ported here.
    cfg = dict(N=2, d_dec=64, d_ff=128, vocab_size=64, d_enc=64, h=8,
               dropout=0.1, n_pix=64, tgt_length=16, max_len=350,
               pad_idx=63, sos_idx=57, eos_idx=58)

    key = jax.random.PRNGKey(0)
    k_prm, k_img, k_tok = jax.random.split(key, 3)
    prm = init_params(k_prm, cfg)

    B, L = 2, 9
    imgs = jax.random.normal(k_img, (B, 8, 8, cfg["d_enc"]), dtype=jnp.float32)
    body = jax.random.randint(k_tok, (B, L - 2), 0, cfg["sos_idx"]).astype(jnp.int32)
    enc = jnp.concatenate(
        [jnp.full((B, 1), cfg["sos_idx"], dtype=jnp.int32), body,
         jnp.full((B, 1), cfg["eos_idx"], dtype=jnp.int32)], axis=1)   # (B, 9)
    enc = enc.at[1, 6].set(cfg["eos_idx"])
    enc = enc.at[1, 7:].set(cfg["pad_idx"])                            # row 1 shorter
    inchi_lengths = jnp.array([[L], [7]], dtype=jnp.int32)

    ref = _reference_forward(prm, imgs, enc, inchi_lengths, cfg=cfg)

    # f32 MXU path (v5e-friendly): tight check against the pure-JAX reference.
    fast32 = prepare_params(prm, jnp.float32)
    fwd32 = jax.jit(functools.partial(transformer_forward, cfg=cfg,
                                      training=False,
                                      compute_dtype=jnp.float32))
    preds32, enc_sorted, dec_lens = fwd32(fast32, imgs, enc, inchi_lengths)
    preds32 = jax.block_until_ready(preds32)
    assert preds32.shape == (B, L - 1, cfg["vocab_size"]), preds32.shape
    err32 = float(jnp.max(jnp.abs(preds32 - ref)))
    assert jnp.allclose(preds32, ref, atol=5e-2, rtol=5e-2), f"f32 max_err={err32}"

    # bf16 MXU inputs with f32 accumulation (v6e/v7x perf mode): loose check.
    fast16 = prepare_params(prm, jnp.bfloat16)
    fwd16 = jax.jit(functools.partial(transformer_forward, cfg=cfg,
                                      training=False,
                                      compute_dtype=jnp.bfloat16))
    preds16, _, _ = fwd16(fast16, imgs, enc, inchi_lengths)
    preds16 = jax.block_until_ready(preds16)
    err16 = float(jnp.max(jnp.abs(preds16 - ref)))
    assert err16 < 0.5, f"bf16 max_err={err16}"

    print("KERNEL_OK")
</pallas_src>

<mosaic_0001>
module attributes {stable_mosaic.version = 11 : i64} {
  func.func @_attention_kernel(%arg0: i32, %arg1: memref<1x8x256xf32, #tpu.memory_space<vmem>>, %arg2: memref<1x1x8xi32, #tpu.memory_space<vmem>>, %arg3: memref<1x8x64xf32, #tpu.memory_space<vmem>>) attributes {dimension_semantics = [#tpu.dimension_semantics<parallel>], iteration_bounds = array<i64: 2>, scalar_prefetch = 0 : i64, scratch_operands = 0 : i64, tpu.core_type = #tpu.core_type<tc>, window_params = [{transform_indices = @transform_0, window_bounds = array<i64: 1, 8, 256>}, {transform_indices = @transform_1, window_bounds = array<i64: 1, 1, 8>}, {transform_indices = @transform_2, window_bounds = array<i64: 1, 8, 64>}]} {
    %c0 = arith.constant 0 : index
    %c0_0 = arith.constant 0 : index
    %c0_1 = arith.constant 0 : index
    %0 = vector.load %arg1[%c0, %c0_0, %c0_1] : memref<1x8x256xf32, #tpu.memory_space<vmem>>, vector<1x8x256xf32>
    %1 = vector.shape_cast %0 : vector<1x8x256xf32> to vector<8x256xf32>
    %2 = vector.extract_strided_slice %1 {offsets = [0, 0], sizes = [8, 64], strides = [1, 1]} : vector<8x256xf32> to vector<8x64xf32>
    %3 = vector.extract_strided_slice %1 {offsets = [0, 64], sizes = [8, 64], strides = [1, 1]} : vector<8x256xf32> to vector<8x64xf32>
    %4 = vector.extract_strided_slice %1 {offsets = [0, 128], sizes = [8, 64], strides = [1, 1]} : vector<8x256xf32> to vector<8x64xf32>
    %c0_2 = arith.constant 0 : index
    %c0_3 = arith.constant 0 : index
    %c0_4 = arith.constant 0 : index
    %5 = vector.load %arg2[%c0_2, %c0_3, %c0_4] : memref<1x1x8xi32, #tpu.memory_space<vmem>>, vector<1x1x8xi32>
    %6 = vector.shape_cast %5 : vector<1x1x8xi32> to vector<1x8xi32>
    %7 = tpu.iota {dimensions = array<i32: 0>} : vector<8x8xi32>
    %8 = tpu.iota {dimensions = array<i32: 1>} : vector<8x8xi32>
    %9 = arith.cmpi sle, %8, %7 : vector<8x8xi32>
    %c0_i32 = arith.constant 0 : i32
    %10 = vector.broadcast %c0_i32 : i32 to vector<1x8xi32>
    %11 = arith.cmpi ne, %6, %10 : vector<1x8xi32>
    %12 = vector.broadcast %11 : vector<1x8xi1> to vector<8x8xi1>
    %13 = arith.andi %9, %12 : vector<8x8xi1>
    %14 = vector.extract_strided_slice %2 {offsets = [0, 0], sizes = [8, 8], strides = [1, 1]} : vector<8x64xf32> to vector<8x8xf32>
    %15 = vector.extract_strided_slice %3 {offsets = [0, 0], sizes = [8, 8], strides = [1, 1]} : vector<8x64xf32> to vector<8x8xf32>
    %16 = vector.extract_strided_slice %4 {offsets = [0, 0], sizes = [8, 8], strides = [1, 1]} : vector<8x64xf32> to vector<8x8xf32>
    %cst = arith.constant dense<0.000000e+00> : vector<8x8xf32>
    %17 = tpu.matmul %14, %15, %cst {dimension_numbers = #tpu.dot_dimension_numbers<[1], [1], [0], [0], [0, 0, 1, 0], [], []>} : vector<8x8xf32>, vector<8x8xf32>, vector<8x8xf32> -> vector<8x8xf32>
    %cst_5 = arith.constant 0.353553385 : f32
    %18 = vector.broadcast %cst_5 : f32 to vector<8x8xf32>
    %19 = arith.mulf %17, %18 : vector<8x8xf32>
    %cst_6 = arith.constant -1.000000e+09 : f32
    %20 = vector.broadcast %cst_6 : f32 to vector<8x8xf32>
    %21 = arith.select %13, %19, %20 : vector<8x8xi1>, vector<8x8xf32>
    %cst_7 = arith.constant dense<0xFF800000> : vector<8xf32>
    %22 = vector.multi_reduction <maximumf>, %21, %cst_7 [1] : vector<8x8xf32> to vector<8xf32>
    %23 = vector.shape_cast %22 : vector<8xf32> to vector<8x1xf32>
    %24 = vector.broadcast %23 : vector<8x1xf32> to vector<8x8xf32>
    %25 = arith.subf %21, %24 : vector<8x8xf32>
    %26 = math.exp %25 : vector<8x8xf32>
    %cst_8 = arith.constant dense<0.000000e+00> : vector<8xf32>
    %27 = vector.multi_reduction <add>, %26, %cst_8 [1] : vector<8x8xf32> to vector<8xf32>
    %28 = vector.shape_cast %27 : vector<8xf32> to vector<8x1xf32>
    %29 = tpu.reciprocal %28 {approx = true} : vector<8x1xf32> -> vector<8x1xf32>
    %30 = vector.broadcast %29 : vector<8x1xf32> to vector<8x8xf32>
    %31 = arith.mulf %26, %30 : vector<8x8xf32>
    %cst_9 = arith.constant dense<0.000000e+00> : vector<8x8xf32>
    %32 = tpu.matmul %31, %16, %cst_9 {dimension_numbers = #tpu.dot_dimension_numbers<[1], [0], [0], [1], [0, 0, 1, 1], [], []>} : vector<8x8xf32>, vector<8x8xf32>, vector<8x8xf32> -> vector<8x8xf32>
    %33 = vector.extract_strided_slice %2 {offsets = [0, 8], sizes = [8, 8], strides = [1, 1]} : vector<8x64xf32> to vector<8x8xf32>
    %34 = vector.extract_strided_slice %3 {offsets = [0, 8], sizes = [8, 8], strides = [1, 1]} : vector<8x64xf32> to vector<8x8xf32>
    %35 = vector.extract_strided_slice %4 {offsets = [0, 8], sizes = [8, 8], strides = [1, 1]} : vector<8x64xf32> to vector<8x8xf32>
    %cst_10 = arith.constant dense<0.000000e+00> : vector<8x8xf32>
    %36 = tpu.matmul %33, %34, %cst_10 {dimension_numbers = #tpu.dot_dimension_numbers<[1], [1], [0], [0], [0, 0, 1, 0], [], []>} : vector<8x8xf32>, vector<8x8xf32>, vector<8x8xf32> -> vector<8x8xf32>
    %cst_11 = arith.constant 0.353553385 : f32
    %37 = vector.broadcast %cst_11 : f32 to vector<8x8xf32>
    %38 = arith.mulf %36, %37 : vector<8x8xf32>
    %cst_12 = arith.constant -1.000000e+09 : f32
    %39 = vector.broadcast %cst_12 : f32 to vector<8x8xf32>
    %40 = arith.select %13, %38, %39 : vector<8x8xi1>, vector<8x8xf32>
    %cst_13 = arith.constant dense<0xFF800000> : vector<8xf32>
    %41 = vector.multi_reduction <maximumf>, %40, %cst_13 [1] : vector<8x8xf32> to vector<8xf32>
    %42 = vector.shape_cast %41 : vector<8xf32> to vector<8x1xf32>
    %43 = vector.broadcast %42 : vector<8x1xf32> to vector<8x8xf32>
    %44 = arith.subf %40, %43 : vector<8x8xf32>
    %45 = math.exp %44 : vector<8x8xf32>
    %cst_14 = arith.constant dense<0.000000e+00> : vector<8xf32>
    %46 = vector.multi_reduction <add>, %45, %cst_14 [1] : vector<8x8xf32> to vector<8xf32>
    %47 = vector.shape_cast %46 : vector<8xf32> to vector<8x1xf32>
    %48 = tpu.reciprocal %47 {approx = true} : vector<8x1xf32> -> vector<8x1xf32>
    %49 = vector.broadcast %48 : vector<8x1xf32> to vector<8x8xf32>
    %50 = arith.mulf %45, %49 : vector<8x8xf32>
    %cst_15 = arith.constant dense<0.000000e+00> : vector<8x8xf32>
    %51 = tpu.matmul %50, %35, %cst_15 {dimension_numbers = #tpu.dot_dimension_numbers<[1], [0], [0], [1], [0, 0, 1, 1], [], []>} : vector<8x8xf32>, vector<8x8xf32>, vector<8x8xf32> -> vector<8x8xf32>
    %52 = vector.extract_strided_slice %2 {offsets = [0, 16], sizes = [8, 8], strides = [1, 1]} : vector<8x64xf32> to vector<8x8xf32>
    %53 = vector.extract_strided_slice %3 {offsets = [0, 16], sizes = [8, 8], strides = [1, 1]} : vector<8x64xf32> to vector<8x8xf32>
    %54 = vector.extract_strided_slice %4 {offsets = [0, 16], sizes = [8, 8], strides = [1, 1]} : vector<8x64xf32> to vector<8x8xf32>
    %cst_16 = arith.constant dense<0.000000e+00> : vector<8x8xf32>
    %55 = tpu.matmul %52, %53, %cst_16 {dimension_numbers = #tpu.dot_dimension_numbers<[1], [1], [0], [0], [0, 0, 1, 0], [], []>} : vector<8x8xf32>, vector<8x8xf32>, vector<8x8xf32> -> vector<8x8xf32>
    %cst_17 = arith.constant 0.353553385 : f32
    %56 = vector.broadcast %cst_17 : f32 to vector<8x8xf32>
    %57 = arith.mulf %55, %56 : vector<8x8xf32>
    %cst_18 = arith.constant -1.000000e+09 : f32
    %58 = vector.broadcast %cst_18 : f32 to vector<8x8xf32>
    %59 = arith.select %13, %57, %58 : vector<8x8xi1>, vector<8x8xf32>
    %cst_19 = arith.constant dense<0xFF800000> : vector<8xf32>
    %60 = vector.multi_reduction <maximumf>, %59, %cst_19 [1] : vector<8x8xf32> to vector<8xf32>
    %61 = vector.shape_cast %60 : vector<8xf32> to vector<8x1xf32>
    %62 = vector.broadcast %61 : vector<8x1xf32> to vector<8x8xf32>
    %63 = arith.subf %59, %62 : vector<8x8xf32>
    %64 = math.exp %63 : vector<8x8xf32>
    %cst_20 = arith.constant dense<0.000000e+00> : vector<8xf32>
    %65 = vector.multi_reduction <add>, %64, %cst_20 [1] : vector<8x8xf32> to vector<8xf32>
    %66 = vector.shape_cast %65 : vector<8xf32> to vector<8x1xf32>
    %67 = tpu.reciprocal %66 {approx = true} : vector<8x1xf32> -> vector<8x1xf32>
    %68 = vector.broadcast %67 : vector<8x1xf32> to vector<8x8xf32>
    %69 = arith.mulf %64, %68 : vector<8x8xf32>
    %cst_21 = arith.constant dense<0.000000e+00> : vector<8x8xf32>
    %70 = tpu.matmul %69, %54, %cst_21 {dimension_numbers = #tpu.dot_dimension_numbers<[1], [0], [0], [1], [0, 0, 1, 1], [], []>} : vector<8x8xf32>, vector<8x8xf32>, vector<8x8xf32> -> vector<8x8xf32>
    %71 = vector.extract_strided_slice %2 {offsets = [0, 24], sizes = [8, 8], strides = [1, 1]} : vector<8x64xf32> to vector<8x8xf32>
    %72 = vector.extract_strided_slice %3 {offsets = [0, 24], sizes = [8, 8], strides = [1, 1]} : vector<8x64xf32> to vector<8x8xf32>
    %73 = vector.extract_strided_slice %4 {offsets = [0, 24], sizes = [8, 8], strides = [1, 1]} : vector<8x64xf32> to vector<8x8xf32>
    %cst_22 = arith.constant dense<0.000000e+00> : vector<8x8xf32>
    %74 = tpu.matmul %71, %72, %cst_22 {dimension_numbers = #tpu.dot_dimension_numbers<[1], [1], [0], [0], [0, 0, 1, 0], [], []>} : vector<8x8xf32>, vector<8x8xf32>, vector<8x8xf32> -> vector<8x8xf32>
    %cst_23 = arith.constant 0.353553385 : f32
    %75 = vector.broadcast %cst_23 : f32 to vector<8x8xf32>
    %76 = arith.mulf %74, %75 : vector<8x8xf32>
    %cst_24 = arith.constant -1.000000e+09 : f32
    %77 = vector.broadcast %cst_24 : f32 to vector<8x8xf32>
    %78 = arith.select %13, %76, %77 : vector<8x8xi1>, vector<8x8xf32>
    %cst_25 = arith.constant dense<0xFF800000> : vector<8xf32>
    %79 = vector.multi_reduction <maximumf>, %78, %cst_25 [1] : vector<8x8xf32> to vector<8xf32>
    %80 = vector.shape_cast %79 : vector<8xf32> to vector<8x1xf32>
    %81 = vector.broadcast %80 : vector<8x1xf32> to vector<8x8xf32>
    %82 = arith.subf %78, %81 : vector<8x8xf32>
    %83 = math.exp %82 : vector<8x8xf32>
    %cst_26 = arith.constant dense<0.000000e+00> : vector<8xf32>
    %84 = vector.multi_reduction <add>, %83, %cst_26 [1] : vector<8x8xf32> to vector<8xf32>
    %85 = vector.shape_cast %84 : vector<8xf32> to vector<8x1xf32>
    %86 = tpu.reciprocal %85 {approx = true} : vector<8x1xf32> -> vector<8x1xf32>
    %87 = vector.broadcast %86 : vector<8x1xf32> to vector<8x8xf32>
    %88 = arith.mulf %83, %87 : vector<8x8xf32>
    %cst_27 = arith.constant dense<0.000000e+00> : vector<8x8xf32>
    %89 = tpu.matmul %88, %73, %cst_27 {dimension_numbers = #tpu.dot_dimension_numbers<[1], [0], [0], [1], [0, 0, 1, 1], [], []>} : vector<8x8xf32>, vector<8x8xf32>, vector<8x8xf32> -> vector<8x8xf32>
    %90 = vector.extract_strided_slice %2 {offsets = [0, 32], sizes = [8, 8], strides = [1, 1]} : vector<8x64xf32> to vector<8x8xf32>
    %91 = vector.extract_strided_slice %3 {offsets = [0, 32], sizes = [8, 8], strides = [1, 1]} : vector<8x64xf32> to vector<8x8xf32>
    %92 = vector.extract_strided_slice %4 {offsets = [0, 32], sizes = [8, 8], strides = [1, 1]} : vector<8x64xf32> to vector<8x8xf32>
    %cst_28 = arith.constant dense<0.000000e+00> : vector<8x8xf32>
    %93 = tpu.matmul %90, %91, %cst_28 {dimension_numbers = #tpu.dot_dimension_numbers<[1], [1], [0], [0], [0, 0, 1, 0], [], []>} : vector<8x8xf32>, vector<8x8xf32>, vector<8x8xf32> -> vector<8x8xf32>
    %cst_29 = arith.constant 0.353553385 : f32
    %94 = vector.broadcast %cst_29 : f32 to vector<8x8xf32>
    %95 = arith.mulf %93, %94 : vector<8x8xf32>
    %cst_30 = arith.constant -1.000000e+09 : f32
    %96 = vector.broadcast %cst_30 : f32 to vector<8x8xf32>
    %97 = arith.select %13, %95, %96 : vector<8x8xi1>, vector<8x8xf32>
    %cst_31 = arith.constant dense<0xFF800000> : vector<8xf32>
    %98 = vector.multi_reduction <maximumf>, %97, %cst_31 [1] : vector<8x8xf32> to vector<8xf32>
    %99 = vector.shape_cast %98 : vector<8xf32> to vector<8x1xf32>
    %100 = vector.broadcast %99 : vector<8x1xf32> to vector<8x8xf32>
    %101 = arith.subf %97, %100 : vector<8x8xf32>
    %102 = math.exp %101 : vector<8x8xf32>
    %cst_32 = arith.constant dense<0.000000e+00> : vector<8xf32>
    %103 = vector.multi_reduction <add>, %102, %cst_32 [1] : vector<8x8xf32> to vector<8xf32>
    %104 = vector.shape_cast %103 : vector<8xf32> to vector<8x1xf32>
    %105 = tpu.reciprocal %104 {approx = true} : vector<8x1xf32> -> vector<8x1xf32>
    %106 = vector.broadcast %105 : vector<8x1xf32> to vector<8x8xf32>
    %107 = arith.mulf %102, %106 : vector<8x8xf32>
    %cst_33 = arith.constant dense<0.000000e+00> : vector<8x8xf32>
    %108 = tpu.matmul %107, %92, %cst_33 {dimension_numbers = #tpu.dot_dimension_numbers<[1], [0], [0], [1], [0, 0, 1, 1], [], []>} : vector<8x8xf32>, vector<8x8xf32>, vector<8x8xf32> -> vector<8x8xf32>
    %109 = vector.extract_strided_slice %2 {offsets = [0, 40], sizes = [8, 8], strides = [1, 1]} : vector<8x64xf32> to vector<8x8xf32>
    %110 = vector.extract_strided_slice %3 {offsets = [0, 40], sizes = [8, 8], strides = [1, 1]} : vector<8x64xf32> to vector<8x8xf32>
    %111 = vector.extract_strided_slice %4 {offsets = [0, 40], sizes = [8, 8], strides = [1, 1]} : vector<8x64xf32> to vector<8x8xf32>
    %cst_34 = arith.constant dense<0.000000e+00> : vector<8x8xf32>
    %112 = tpu.matmul %109, %110, %cst_34 {dimension_numbers = #tpu.dot_dimension_numbers<[1], [1], [0], [0], [0, 0, 1, 0], [], []>} : vector<8x8xf32>, vector<8x8xf32>, vector<8x8xf32> -> vector<8x8xf32>
    %cst_35 = arith.constant 0.353553385 : f32
    %113 = vector.broadcast %cst_35 : f32 to vector<8x8xf32>
    %114 = arith.mulf %112, %113 : vector<8x8xf32>
    %cst_36 = arith.constant -1.000000e+09 : f32
    %115 = vector.broadcast %cst_36 : f32 to vector<8x8xf32>
    %116 = arith.select %13, %114, %115 : vector<8x8xi1>, vector<8x8xf32>
    %cst_37 = arith.constant dense<0xFF800000> : vector<8xf32>
    %117 = vector.multi_reduction <maximumf>, %116, %cst_37 [1] : vector<8x8xf32> to vector<8xf32>
    %118 = vector.shape_cast %117 : vector<8xf32> to vector<8x1xf32>
    %119 = vector.broadcast %118 : vector<8x1xf32> to vector<8x8xf32>
    %120 = arith.subf %116, %119 : vector<8x8xf32>
    %121 = math.exp %120 : vector<8x8xf32>
    %cst_38 = arith.constant dense<0.000000e+00> : vector<8xf32>
    %122 = vector.multi_reduction <add>, %121, %cst_38 [1] : vector<8x8xf32> to vector<8xf32>
    %123 = vector.shape_cast %122 : vector<8xf32> to vector<8x1xf32>
    %124 = tpu.reciprocal %123 {approx = true} : vector<8x1xf32> -> vector<8x1xf32>
    %125 = vector.broadcast %124 : vector<8x1xf32> to vector<8x8xf32>
    %126 = arith.mulf %121, %125 : vector<8x8xf32>
    %cst_39 = arith.constant dense<0.000000e+00> : vector<8x8xf32>
    %127 = tpu.matmul %126, %111, %cst_39 {dimension_numbers = #tpu.dot_dimension_numbers<[1], [0], [0], [1], [0, 0, 1, 1], [], []>} : vector<8x8xf32>, vector<8x8xf32>, vector<8x8xf32> -> vector<8x8xf32>
    %128 = vector.extract_strided_slice %2 {offsets = [0, 48], sizes = [8, 8], strides = [1, 1]} : vector<8x64xf32> to vector<8x8xf32>
    %129 = vector.extract_strided_slice %3 {offsets = [0, 48], sizes = [8, 8], strides = [1, 1]} : vector<8x64xf32> to vector<8x8xf32>
    %130 = vector.extract_strided_slice %4 {offsets = [0, 48], sizes = [8, 8], strides = [1, 1]} : vector<8x64xf32> to vector<8x8xf32>
    %cst_40 = arith.constant dense<0.000000e+00> : vector<8x8xf32>
    %131 = tpu.matmul %128, %129, %cst_40 {dimension_numbers = #tpu.dot_dimension_numbers<[1], [1], [0], [0], [0, 0, 1, 0], [], []>} : vector<8x8xf32>, vector<8x8xf32>, vector<8x8xf32> -> vector<8x8xf32>
    %cst_41 = arith.constant 0.353553385 : f32
    %132 = vector.broadcast %cst_41 : f32 to vector<8x8xf32>
    %133 = arith.mulf %131, %132 : vector<8x8xf32>
    %cst_42 = arith.constant -1.000000e+09 : f32
    %134 = vector.broadcast %cst_42 : f32 to vector<8x8xf32>
    %135 = arith.select %13, %133, %134 : vector<8x8xi1>, vector<8x8xf32>
    %cst_43 = arith.constant dense<0xFF800000> : vector<8xf32>
    %136 = vector.multi_reduction <maximumf>, %135, %cst_43 [1] : vector<8x8xf32> to vector<8xf32>
    %137 = vector.shape_cast %136 : vector<8xf32> to vector<8x1xf32>
    %138 = vector.broadcast %137 : vector<8x1xf32> to vector<8x8xf32>
    %139 = arith.subf %135, %138 : vector<8x8xf32>
    %140 = math.exp %139 : vector<8x8xf32>
    %cst_44 = arith.constant dense<0.000000e+00> : vector<8xf32>
    %141 = vector.multi_reduction <add>, %140, %cst_44 [1] : vector<8x8xf32> to vector<8xf32>
    %142 = vector.shape_cast %141 : vector<8xf32> to vector<8x1xf32>
    %143 = tpu.reciprocal %142 {approx = true} : vector<8x1xf32> -> vector<8x1xf32>
    %144 = vector.broadcast %143 : vector<8x1xf32> to vector<8x8xf32>
    %145 = arith.mulf %140, %144 : vector<8x8xf32>
    %cst_45 = arith.constant dense<0.000000e+00> : vector<8x8xf32>
    %146 = tpu.matmul %145, %130, %cst_45 {dimension_numbers = #tpu.dot_dimension_numbers<[1], [0], [0], [1], [0, 0, 1, 1], [], []>} : vector<8x8xf32>, vector<8x8xf32>, vector<8x8xf32> -> vector<8x8xf32>
    %147 = vector.extract_strided_slice %2 {offsets = [0, 56], sizes = [8, 8], strides = [1, 1]} : vector<8x64xf32> to vector<8x8xf32>
    %148 = vector.extract_strided_slice %3 {offsets = [0, 56], sizes = [8, 8], strides = [1, 1]} : vector<8x64xf32> to vector<8x8xf32>
    %149 = vector.extract_strided_slice %4 {offsets = [0, 56], sizes = [8, 8], strides = [1, 1]} : vector<8x64xf32> to vector<8x8xf32>
    %cst_46 = arith.constant dense<0.000000e+00> : vector<8x8xf32>
    %150 = tpu.matmul %147, %148, %cst_46 {dimension_numbers = #tpu.dot_dimension_numbers<[1], [1], [0], [0], [0, 0, 1, 0], [], []>} : vector<8x8xf32>, vector<8x8xf32>, vector<8x8xf32> -> vector<8x8xf32>
    %cst_47 = arith.constant 0.353553385 : f32
    %151 = vector.broadcast %cst_47 : f32 to vector<8x8xf32>
    %152 = arith.mulf %150, %151 : vector<8x8xf32>
    %cst_48 = arith.constant -1.000000e+09 : f32
    %153 = vector.broadcast %cst_48 : f32 to vector<8x8xf32>
    %154 = arith.select %13, %152, %153 : vector<8x8xi1>, vector<8x8xf32>
    %cst_49 = arith.constant dense<0xFF800000> : vector<8xf32>
    %155 = vector.multi_reduction <maximumf>, %154, %cst_49 [1] : vector<8x8xf32> to vector<8xf32>
    %156 = vector.shape_cast %155 : vector<8xf32> to vector<8x1xf32>
    %157 = vector.broadcast %156 : vector<8x1xf32> to vector<8x8xf32>
    %158 = arith.subf %154, %157 : vector<8x8xf32>
    %159 = math.exp %158 : vector<8x8xf32>
    %cst_50 = arith.constant dense<0.000000e+00> : vector<8xf32>
    %160 = vector.multi_reduction <add>, %159, %cst_50 [1] : vector<8x8xf32> to vector<8xf32>
    %161 = vector.shape_cast %160 : vector<8xf32> to vector<8x1xf32>
    %162 = tpu.reciprocal %161 {approx = true} : vector<8x1xf32> -> vector<8x1xf32>
    %163 = vector.broadcast %162 : vector<8x1xf32> to vector<8x8xf32>
    %164 = arith.mulf %159, %163 : vector<8x8xf32>
    %cst_51 = arith.constant dense<0.000000e+00> : vector<8x8xf32>
    %165 = tpu.matmul %164, %149, %cst_51 {dimension_numbers = #tpu.dot_dimension_numbers<[1], [0], [0], [1], [0, 0, 1, 1], [], []>} : vector<8x8xf32>, vector<8x8xf32>, vector<8x8xf32> -> vector<8x8xf32>
    %166 = tpu.concatenate %32, %51, %70, %89, %108, %127, %146, %165 in 1 : vector<8x8xf32>, vector<8x8xf32>, vector<8x8xf32>, vector<8x8xf32>, vector<8x8xf32>, vector<8x8xf32>, vector<8x8xf32>, vector<8x8xf32> -> vector<8x64xf32>
    %c0_52 = arith.constant 0 : index
    %c0_53 = arith.constant 0 : index
    %c0_54 = arith.constant 0 : index
    %167 = vector.load %arg3[%c0_52, %c0_53, %c0_54] : memref<1x8x64xf32, #tpu.memory_space<vmem>>, vector<1x8x64xf32>
    %168 = vector.shape_cast %167 : vector<1x8x64xf32> to vector<8x64xf32>
    %169 = vector.shape_cast %166 : vector<8x64xf32> to vector<1x8x64xf32>
    tpu.vector_store %arg3[%c0_52, %c0_53, %c0_54], %169 {strides = array<i32>} : memref<1x8x64xf32, #tpu.memory_space<vmem>>, vector<1x8x64xf32>,
    return
  }
  func.func @transform_0(%arg0: i32) -> (i32, i32, i32) {
    %c0_i32 = arith.constant 0 : i32
    %c0_i32_0 = arith.constant 0 : i32
    %c0_i32_1 = arith.constant 0 : i32
    return %arg0, %c0_i32, %c0_i32_0 : i32, i32, i32
  }
  func.func @transform_1(%arg0: i32) -> (i32, i32, i32) {
    %c0_i32 = arith.constant 0 : i32
    %c0_i32_0 = arith.constant 0 : i32
    %c0_i32_1 = arith.constant 0 : i32
    return %arg0, %c0_i32, %c0_i32_0 : i32, i32, i32
  }
  func.func @transform_2(%arg0: i32) -> (i32, i32, i32) {
    %c0_i32 = arith.constant 0 : i32
    %c0_i32_0 = arith.constant 0 : i32
    %c0_i32_1 = arith.constant 0 : i32
    return %arg0, %c0_i32, %c0_i32_0 : i32, i32, i32
  }
}

module attributes {stable_mosaic.version = 11 : i64} {
  func.func @_linear_kernel(%arg0: i32, %arg1: i32, %arg2: memref<16x64xf32, #tpu.memory_space<vmem>>, %arg3: memref<64x128xf32, #tpu.memory_space<vmem>>, %arg4: memref<1x128xf32, #tpu.memory_space<vmem>>, %arg5: memref<16x128xf32, #tpu.memory_space<vmem>>, %arg6: memref<16x128xf32, #tpu.memory_space<vmem>>) attributes {dimension_semantics = [#tpu.dimension_semantics<parallel>, #tpu.dimension_semantics<parallel>], iteration_bounds = array<i64: 1, 1>, scalar_prefetch = 0 : i64, scratch_operands = 0 : i64, tpu.core_type = #tpu.core_type<tc>, window_params = [{transform_indices = @transform_0, window_bounds = array<i64: 16, 64>}, {transform_indices = @transform_1, window_bounds = array<i64: 64, 128>}, {transform_indices = @transform_2, window_bounds = array<i64: 1, 128>}, {transform_indices = @transform_3, window_bounds = array<i64: 16, 128>}, {transform_indices = @transform_4, window_bounds = array<i64: 16, 128>}]} {
    %c0 = arith.constant 0 : index
    %c0_0 = arith.constant 0 : index
    %0 = vector.load %arg2[%c0, %c0_0] : memref<16x64xf32, #tpu.memory_space<vmem>>, vector<16x64xf32>
    %c0_1 = arith.constant 0 : index
    %c0_2 = arith.constant 0 : index
    %1 = vector.load %arg3[%c0_1, %c0_2] : memref<64x128xf32, #tpu.memory_space<vmem>>, vector<64x128xf32>
    %cst = arith.constant dense<0.000000e+00> : vector<16x128xf32>
    %2 = tpu.matmul %0, %1, %cst {dimension_numbers = #tpu.dot_dimension_numbers<[1], [0], [0], [1], [0, 0, 1, 1], [], []>} : vector<16x64xf32>, vector<64x128xf32>, vector<16x128xf32> -> vector<16x128xf32>
    %c0_3 = arith.constant 0 : index
    %c0_4 = arith.constant 0 : index
    %3 = vector.load %arg4[%c0_3, %c0_4] : memref<1x128xf32, #tpu.memory_space<vmem>>, vector<1x128xf32>
    %4 = vector.broadcast %3 : vector<1x128xf32> to vector<16x128xf32>
    %5 = arith.addf %2, %4 : vector<16x128xf32>
    %c0_5 = arith.constant 0 : index
    %c0_6 = arith.constant 0 : index
    %6 = vector.load %arg5[%c0_5, %c0_6] : memref<16x128xf32, #tpu.memory_space<vmem>>, vector<16x128xf32>
    %7 = arith.addf %6, %5 : vector<16x128xf32>
    %c0_7 = arith.constant 0 : index
    %c0_8 = arith.constant 0 : index
    %8 = vector.load %arg6[%c0_7, %c0_8] : memref<16x128xf32, #tpu.memory_space<vmem>>, vector<16x128xf32>
    tpu.vector_store %arg6[%c0_7, %c0_8], %7 {strides = array<i32>} : memref<16x128xf32, #tpu.memory_space<vmem>>, vector<16x128xf32>,
    return
  }
  func.func @transform_0(%arg0: i32, %arg1: i32) -> (i32, i32) {
    %c0_i32 = arith.constant 0 : i32
    %c0_i32_0 = arith.constant 0 : i32
    return %arg0, %c0_i32 : i32, i32
  }
  func.func @transform_1(%arg0: i32, %arg1: i32) -> (i32, i32) {
    %c0_i32 = arith.constant 0 : i32
    %c0_i32_0 = arith.constant 0 : i32
    return %c0_i32, %arg1 : i32, i32
  }
  func.func @transform_2(%arg0: i32, %arg1: i32) -> (i32, i32) {
    %c0_i32 = arith.constant 0 : i32
    %c0_i32_0 = arith.constant 0 : i32
    return %c0_i32, %arg1 : i32, i32
  }
  func.func @transform_3(%arg0: i32, %arg1: i32) -> (i32, i32) {
    %c0_i32 = arith.constant 0 : i32
    return %arg0, %arg1 : i32, i32
  }
  func.func @transform_4(%arg0: i32, %arg1: i32) -> (i32, i32) {
    %c0_i32 = arith.constant 0 : i32
    return %arg0, %arg1 : i32, i32
  }
}

module attributes {stable_mosaic.version = 11 : i64} {
  func.func @_linear_kernel(%arg0: i32, %arg1: i32, %arg2: memref<16x64xf32, #tpu.memory_space<vmem>>, %arg3: memref<64x128xf32, #tpu.memory_space<vmem>>, %arg4: memref<1x128xf32, #tpu.memory_space<vmem>>, %arg5: memref<1x64xf32, #tpu.memory_space<vmem>>, %arg6: memref<1x64xf32, #tpu.memory_space<vmem>>, %arg7: memref<16x128xf32, #tpu.memory_space<vmem>>) attributes {dimension_semantics = [#tpu.dimension_semantics<parallel>, #tpu.dimension_semantics<parallel>], iteration_bounds = array<i64: 1, 2>, scalar_prefetch = 0 : i64, scratch_operands = 0 : i64, tpu.core_type = #tpu.core_type<tc>, window_params = [{transform_indices = @transform_0, window_bounds = array<i64: 16, 64>}, {transform_indices = @transform_1, window_bounds = array<i64: 64, 128>}, {transform_indices = @transform_2, window_bounds = array<i64: 1, 128>}, {pipeline_mode = #tpu.pipeline_mode<synchronous>, transform_indices = @transform_3, window_bounds = array<i64: 1, 64>}, {pipeline_mode = #tpu.pipeline_mode<synchronous>, transform_indices = @transform_4, window_bounds = array<i64: 1, 64>}, {transform_indices = @transform_5, window_bounds = array<i64: 16, 128>}]} {
    %c0 = arith.constant 0 : index
    %c0_0 = arith.constant 0 : index
    %0 = vector.load %arg2[%c0, %c0_0] : memref<16x64xf32, #tpu.memory_space<vmem>>, vector<16x64xf32>
    %cst = arith.constant dense<0.000000e+00> : vector<16xf32>
    %1 = vector.multi_reduction <add>, %0, %cst [1] : vector<16x64xf32> to vector<16xf32>
    %2 = vector.shape_cast %1 : vector<16xf32> to vector<16x1xf32>
    %cst_1 = arith.constant 6.400000e+01 : f32
    %3 = vector.broadcast %cst_1 : f32 to vector<16x1xf32>
    %4 = arith.divf %2, %3 : vector<16x1xf32>
    %5 = vector.broadcast %4 : vector<16x1xf32> to vector<16x64xf32>
    %6 = arith.subf %0, %5 : vector<16x64xf32>
    %7 = arith.mulf %6, %6 : vector<16x64xf32>
    %cst_2 = arith.constant dense<0.000000e+00> : vector<16xf32>
    %8 = vector.multi_reduction <add>, %7, %cst_2 [1] : vector<16x64xf32> to vector<16xf32>
    %9 = vector.shape_cast %8 : vector<16xf32> to vector<16x1xf32>
    %cst_3 = arith.constant 6.300000e+01 : f32
    %10 = vector.broadcast %cst_3 : f32 to vector<16x1xf32>
    %11 = arith.divf %9, %10 : vector<16x1xf32>
    %12 = math.sqrt %11 : vector<16x1xf32>
    %cst_4 = arith.constant 9.99999997E-7 : f32
    %13 = vector.broadcast %cst_4 : f32 to vector<16x1xf32>
    %14 = arith.addf %12, %13 : vector<16x1xf32>
    %15 = tpu.reciprocal %14 {approx = true} : vector<16x1xf32> -> vector<16x1xf32>
    %c0_5 = arith.constant 0 : index
    %c0_6 = arith.constant 0 : index
    %16 = vector.load %arg5[%c0_5, %c0_6] : memref<1x64xf32, #tpu.memory_space<vmem>>, vector<1x64xf32>
    %17 = vector.broadcast %16 : vector<1x64xf32> to vector<16x64xf32>
    %18 = arith.mulf %17, %6 : vector<16x64xf32>
    %19 = vector.broadcast %15 : vector<16x1xf32> to vector<16x64xf32>
    %20 = arith.mulf %18, %19 : vector<16x64xf32>
    %c0_7 = arith.constant 0 : index
    %c0_8 = arith.constant 0 : index
    %21 = vector.load %arg6[%c0_7, %c0_8] : memref<1x64xf32, #tpu.memory_space<vmem>>, vector<1x64xf32>
    %22 = vector.broadcast %21 : vector<1x64xf32> to vector<16x64xf32>
    %23 = arith.addf %20, %22 : vector<16x64xf32>
    %c0_9 = arith.constant 0 : index
    %c0_10 = arith.constant 0 : index
    %24 = vector.load %arg3[%c0_9, %c0_10] : memref<64x128xf32, #tpu.memory_space<vmem>>, vector<64x128xf32>
    %cst_11 = arith.constant dense<0.000000e+00> : vector<16x128xf32>
    %25 = tpu.matmul %23, %24, %cst_11 {dimension_numbers = #tpu.dot_dimension_numbers<[1], [0], [0], [1], [0, 0, 1, 1], [], []>} : vector<16x64xf32>, vector<64x128xf32>, vector<16x128xf32> -> vector<16x128xf32>
    %c0_12 = arith.constant 0 : index
    %c0_13 = arith.constant 0 : index
    %26 = vector.load %arg4[%c0_12, %c0_13] : memref<1x128xf32, #tpu.memory_space<vmem>>, vector<1x128xf32>
    %27 = vector.broadcast %26 : vector<1x128xf32> to vector<16x128xf32>
    %28 = arith.addf %25, %27 : vector<16x128xf32>
    %c0_14 = arith.constant 0 : index
    %c0_15 = arith.constant 0 : index
    %29 = vector.load %arg7[%c0_14, %c0_15] : memref<16x128xf32, #tpu.memory_space<vmem>>, vector<16x128xf32>
    tpu.vector_store %arg7[%c0_14, %c0_15], %28 {strides = array<i32>} : memref<16x128xf32, #tpu.memory_space<vmem>>, vector<16x128xf32>,
    return
  }
  func.func @transform_0(%arg0: i32, %arg1: i32) -> (i32, i32) {
    %c0_i32 = arith.constant 0 : i32
    %c0_i32_0 = arith.constant 0 : i32
    return %arg0, %c0_i32 : i32, i32
  }
  func.func @transform_1(%arg0: i32, %arg1: i32) -> (i32, i32) {
    %c0_i32 = arith.constant 0 : i32
    %c0_i32_0 = arith.constant 0 : i32
    return %c0_i32, %arg1 : i32, i32
  }
  func.func @transform_2(%arg0: i32, %arg1: i32) -> (i32, i32) {
    %c0_i32 = arith.constant 0 : i32
    %c0_i32_0 = arith.constant 0 : i32
    return %c0_i32, %arg1 : i32, i32
  }
  func.func @transform_3(%arg0: i32, %arg1: i32) -> (i32, i32) {
    %c0_i32 = arith.constant 0 : i32
    %c0_i32_0 = arith.constant 0 : i32
    %c0_i32_1 = arith.constant 0 : i32
    return %c0_i32, %c0_i32_0 : i32, i32
  }
  func.func @transform_4(%arg0: i32, %arg1: i32) -> (i32, i32) {
    %c0_i32 = arith.constant 0 : i32
    %c0_i32_0 = arith.constant 0 : i32
    %c0_i32_1 = arith.constant 0 : i32
    return %c0_i32, %c0_i32_0 : i32, i32
  }
  func.func @transform_5(%arg0: i32, %arg1: i32) -> (i32, i32) {
    %c0_i32 = arith.constant 0 : i32
    return %arg0, %arg1 : i32, i32
  }
}

module attributes {stable_mosaic.version = 11 : i64} {
  func.func @_pe_add_kernel(%arg0: i32, %arg1: memref<1x8x64xf32, #tpu.memory_space<vmem>>, %arg2: memref<8x64xf32, #tpu.memory_space<vmem>>, %arg3: memref<1x8x64xf32, #tpu.memory_space<vmem>>) attributes {dimension_semantics = [#tpu.dimension_semantics<parallel>], iteration_bounds = array<i64: 2>, scalar_prefetch = 0 : i64, scratch_operands = 0 : i64, tpu.core_type = #tpu.core_type<tc>, window_params = [{transform_indices = @transform_0, window_bounds = array<i64: 1, 8, 64>}, {pipeline_mode = #tpu.pipeline_mode<synchronous>, transform_indices = @transform_1, window_bounds = array<i64: 8, 64>}, {transform_indices = @transform_2, window_bounds = array<i64: 1, 8, 64>}]} {
    %c0 = arith.constant 0 : index
    %c0_0 = arith.constant 0 : index
    %c0_1 = arith.constant 0 : index
    %0 = vector.load %arg1[%c0, %c0_0, %c0_1] : memref<1x8x64xf32, #tpu.memory_space<vmem>>, vector<1x8x64xf32>
    %1 = vector.shape_cast %0 : vector<1x8x64xf32> to vector<8x64xf32>
    %c0_2 = arith.constant 0 : index
    %c0_3 = arith.constant 0 : index
    %2 = vector.load %arg2[%c0_2, %c0_3] : memref<8x64xf32, #tpu.memory_space<vmem>>, vector<8x64xf32>
    %3 = arith.addf %1, %2 : vector<8x64xf32>
    %c0_4 = arith.constant 0 : index
    %c0_5 = arith.constant 0 : index
    %c0_6 = arith.constant 0 : index
    %4 = vector.load %arg3[%c0_4, %c0_5, %c0_6] : memref<1x8x64xf32, #tpu.memory_space<vmem>>, vector<1x8x64xf32>
    %5 = vector.shape_cast %4 : vector<1x8x64xf32> to vector<8x64xf32>
    %6 = vector.shape_cast %3 : vector<8x64xf32> to vector<1x8x64xf32>
    tpu.vector_store %arg3[%c0_4, %c0_5, %c0_6], %6 {strides = array<i32>} : memref<1x8x64xf32, #tpu.memory_space<vmem>>, vector<1x8x64xf32>,
    return
  }
  func.func @transform_0(%arg0: i32) -> (i32, i32, i32) {
    %c0_i32 = arith.constant 0 : i32
    %c0_i32_0 = arith.constant 0 : i32
    %c0_i32_1 = arith.constant 0 : i32
    return %arg0, %c0_i32, %c0_i32_0 : i32, i32, i32
  }
  func.func @transform_1(%arg0: i32) -> (i32, i32) {
    %c0_i32 = arith.constant 0 : i32
    %c0_i32_0 = arith.constant 0 : i32
    %c0_i32_1 = arith.constant 0 : i32
    return %c0_i32, %c0_i32_0 : i32, i32
  }
  func.func @transform_2(%arg0: i32) -> (i32, i32, i32) {
    %c0_i32 = arith.constant 0 : i32
    %c0_i32_0 = arith.constant 0 : i32
    %c0_i32_1 = arith.constant 0 : i32
    return %arg0, %c0_i32, %c0_i32_0 : i32, i32, i32
  }
}

module attributes {stable_mosaic.version = 11 : i64} {
  func.func @_linear_kernel(%arg0: i32, %arg1: i32, %arg2: memref<16x64xf32, #tpu.memory_space<vmem>>, %arg3: memref<64x128xf32, #tpu.memory_space<vmem>>, %arg4: memref<1x128xf32, #tpu.memory_space<vmem>>, %arg5: memref<1x64xf32, #tpu.memory_space<vmem>>, %arg6: memref<1x64xf32, #tpu.memory_space<vmem>>, %arg7: memref<16x128xf32, #tpu.memory_space<vmem>>) attributes {dimension_semantics = [#tpu.dimension_semantics<parallel>, #tpu.dimension_semantics<parallel>], iteration_bounds = array<i64: 1, 1>, scalar_prefetch = 0 : i64, scratch_operands = 0 : i64, tpu.core_type = #tpu.core_type<tc>, window_params = [{transform_indices = @transform_0, window_bounds = array<i64: 16, 64>}, {transform_indices = @transform_1, window_bounds = array<i64: 64, 128>}, {transform_indices = @transform_2, window_bounds = array<i64: 1, 128>}, {pipeline_mode = #tpu.pipeline_mode<synchronous>, transform_indices = @transform_3, window_bounds = array<i64: 1, 64>}, {pipeline_mode = #tpu.pipeline_mode<synchronous>, transform_indices = @transform_4, window_bounds = array<i64: 1, 64>}, {transform_indices = @transform_5, window_bounds = array<i64: 16, 128>}]} {
    %c0 = arith.constant 0 : index
    %c0_0 = arith.constant 0 : index
    %0 = vector.load %arg2[%c0, %c0_0] : memref<16x64xf32, #tpu.memory_space<vmem>>, vector<16x64xf32>
    %cst = arith.constant dense<0.000000e+00> : vector<16xf32>
    %1 = vector.multi_reduction <add>, %0, %cst [1] : vector<16x64xf32> to vector<16xf32>
    %2 = vector.shape_cast %1 : vector<16xf32> to vector<16x1xf32>
    %cst_1 = arith.constant 6.400000e+01 : f32
    %3 = vector.broadcast %cst_1 : f32 to vector<16x1xf32>
    %4 = arith.divf %2, %3 : vector<16x1xf32>
    %5 = vector.broadcast %4 : vector<16x1xf32> to vector<16x64xf32>
    %6 = arith.subf %0, %5 : vector<16x64xf32>
    %7 = arith.mulf %6, %6 : vector<16x64xf32>
    %cst_2 = arith.constant dense<0.000000e+00> : vector<16xf32>
    %8 = vector.multi_reduction <add>, %7, %cst_2 [1] : vector<16x64xf32> to vector<16xf32>
    %9 = vector.shape_cast %8 : vector<16xf32> to vector<16x1xf32>
    %cst_3 = arith.constant 6.300000e+01 : f32
    %10 = vector.broadcast %cst_3 : f32 to vector<16x1xf32>
    %11 = arith.divf %9, %10 : vector<16x1xf32>
    %12 = math.sqrt %11 : vector<16x1xf32>
    %cst_4 = arith.constant 9.99999997E-7 : f32
    %13 = vector.broadcast %cst_4 : f32 to vector<16x1xf32>
    %14 = arith.addf %12, %13 : vector<16x1xf32>
    %15 = tpu.reciprocal %14 {approx = true} : vector<16x1xf32> -> vector<16x1xf32>
    %c0_5 = arith.constant 0 : index
    %c0_6 = arith.constant 0 : index
    %16 = vector.load %arg5[%c0_5, %c0_6] : memref<1x64xf32, #tpu.memory_space<vmem>>, vector<1x64xf32>
    %17 = vector.broadcast %16 : vector<1x64xf32> to vector<16x64xf32>
    %18 = arith.mulf %17, %6 : vector<16x64xf32>
    %19 = vector.broadcast %15 : vector<16x1xf32> to vector<16x64xf32>
    %20 = arith.mulf %18, %19 : vector<16x64xf32>
    %c0_7 = arith.constant 0 : index
    %c0_8 = arith.constant 0 : index
    %21 = vector.load %arg6[%c0_7, %c0_8] : memref<1x64xf32, #tpu.memory_space<vmem>>, vector<1x64xf32>
    %22 = vector.broadcast %21 : vector<1x64xf32> to vector<16x64xf32>
    %23 = arith.addf %20, %22 : vector<16x64xf32>
    %c0_9 = arith.constant 0 : index
    %c0_10 = arith.constant 0 : index
    %24 = vector.load %arg3[%c0_9, %c0_10] : memref<64x128xf32, #tpu.memory_space<vmem>>, vector<64x128xf32>
    %cst_11 = arith.constant dense<0.000000e+00> : vector<16x128xf32>
    %25 = tpu.matmul %23, %24, %cst_11 {dimension_numbers = #tpu.dot_dimension_numbers<[1], [0], [0], [1], [0, 0, 1, 1], [], []>} : vector<16x64xf32>, vector<64x128xf32>, vector<16x128xf32> -> vector<16x128xf32>
    %c0_12 = arith.constant 0 : index
    %c0_13 = arith.constant 0 : index
    %26 = vector.load %arg4[%c0_12, %c0_13] : memref<1x128xf32, #tpu.memory_space<vmem>>, vector<1x128xf32>
    %27 = vector.broadcast %26 : vector<1x128xf32> to vector<16x128xf32>
    %28 = arith.addf %25, %27 : vector<16x128xf32>
    %c0_14 = arith.constant 0 : index
    %c0_15 = arith.constant 0 : index
    %29 = vector.load %arg7[%c0_14, %c0_15] : memref<16x128xf32, #tpu.memory_space<vmem>>, vector<16x128xf32>
    tpu.vector_store %arg7[%c0_14, %c0_15], %28 {strides = array<i32>} : memref<16x128xf32, #tpu.memory_space<vmem>>, vector<16x128xf32>,
    return
  }
  func.func @transform_0(%arg0: i32, %arg1: i32) -> (i32, i32) {
    %c0_i32 = arith.constant 0 : i32
    %c0_i32_0 = arith.constant 0 : i32
    return %arg0, %c0_i32 : i32, i32
  }
  func.func @transform_1(%arg0: i32, %arg1: i32) -> (i32, i32) {
    %c0_i32 = arith.constant 0 : i32
    %c0_i32_0 = arith.constant 0 : i32
    return %c0_i32, %arg1 : i32, i32
  }
  func.func @transform_2(%arg0: i32, %arg1: i32) -> (i32, i32) {
    %c0_i32 = arith.constant 0 : i32
    %c0_i32_0 = arith.constant 0 : i32
    return %c0_i32, %arg1 : i32, i32
  }
  func.func @transform_3(%arg0: i32, %arg1: i32) -> (i32, i32) {
    %c0_i32 = arith.constant 0 : i32
    %c0_i32_0 = arith.constant 0 : i32
    %c0_i32_1 = arith.constant 0 : i32
    return %c0_i32, %c0_i32_0 : i32, i32
  }
  func.func @transform_4(%arg0: i32, %arg1: i32) -> (i32, i32) {
    %c0_i32 = arith.constant 0 : i32
    %c0_i32_0 = arith.constant 0 : i32
    %c0_i32_1 = arith.constant 0 : i32
    return %c0_i32, %c0_i32_0 : i32, i32
  }
  func.func @transform_5(%arg0: i32, %arg1: i32) -> (i32, i32) {
    %c0_i32 = arith.constant 0 : i32
    return %arg0, %arg1 : i32, i32
  }
}

module attributes {stable_mosaic.version = 11 : i64} {
  func.func @_pe_add_kernel(%arg0: i32, %arg1: memref<1x64x64xf32, #tpu.memory_space<vmem>>, %arg2: memref<64x64xf32, #tpu.memory_space<vmem>>, %arg3: memref<1x64x64xf32, #tpu.memory_space<vmem>>) attributes {dimension_semantics = [#tpu.dimension_semantics<parallel>], iteration_bounds = array<i64: 2>, scalar_prefetch = 0 : i64, scratch_operands = 0 : i64, tpu.core_type = #tpu.core_type<tc>, window_params = [{transform_indices = @transform_0, window_bounds = array<i64: 1, 64, 64>}, {pipeline_mode = #tpu.pipeline_mode<synchronous>, transform_indices = @transform_1, window_bounds = array<i64: 64, 64>}, {transform_indices = @transform_2, window_bounds = array<i64: 1, 64, 64>}]} {
    %c0 = arith.constant 0 : index
    %c0_0 = arith.constant 0 : index
    %c0_1 = arith.constant 0 : index
    %0 = vector.load %arg1[%c0, %c0_0, %c0_1] : memref<1x64x64xf32, #tpu.memory_space<vmem>>, vector<1x64x64xf32>
    %1 = vector.shape_cast %0 : vector<1x64x64xf32> to vector<64x64xf32>
    %c0_2 = arith.constant 0 : index
    %c0_3 = arith.constant 0 : index
    %2 = vector.load %arg2[%c0_2, %c0_3] : memref<64x64xf32, #tpu.memory_space<vmem>>, vector<64x64xf32>
    %3 = arith.addf %1, %2 : vector<64x64xf32>
    %c0_4 = arith.constant 0 : index
    %c0_5 = arith.constant 0 : index
    %c0_6 = arith.constant 0 : index
    %4 = vector.load %arg3[%c0_4, %c0_5, %c0_6] : memref<1x64x64xf32, #tpu.memory_space<vmem>>, vector<1x64x64xf32>
    %5 = vector.shape_cast %4 : vector<1x64x64xf32> to vector<64x64xf32>
    %6 = vector.shape_cast %3 : vector<64x64xf32> to vector<1x64x64xf32>
    tpu.vector_store %arg3[%c0_4, %c0_5, %c0_6], %6 {strides = array<i32>} : memref<1x64x64xf32, #tpu.memory_space<vmem>>, vector<1x64x64xf32>,
    return
  }
  func.func @transform_0(%arg0: i32) -> (i32, i32, i32) {
    %c0_i32 = arith.constant 0 : i32
    %c0_i32_0 = arith.constant 0 : i32
    %c0_i32_1 = arith.constant 0 : i32
    return %arg0, %c0_i32, %c0_i32_0 : i32, i32, i32
  }
  func.func @transform_1(%arg0: i32) -> (i32, i32) {
    %c0_i32 = arith.constant 0 : i32
    %c0_i32_0 = arith.constant 0 : i32
    %c0_i32_1 = arith.constant 0 : i32
    return %c0_i32, %c0_i32_0 : i32, i32
  }
  func.func @transform_2(%arg0: i32) -> (i32, i32, i32) {
    %c0_i32 = arith.constant 0 : i32
    %c0_i32_0 = arith.constant 0 : i32
    %c0_i32_1 = arith.constant 0 : i32
    return %arg0, %c0_i32, %c0_i32_0 : i32, i32, i32
  }
}

module attributes {stable_mosaic.version = 11 : i64} {
  func.func @_linear_kernel(%arg0: i32, %arg1: i32, %arg2: memref<128x64xf32, #tpu.memory_space<vmem>>, %arg3: memref<64x128xf32, #tpu.memory_space<vmem>>, %arg4: memref<1x128xf32, #tpu.memory_space<vmem>>, %arg5: memref<128x128xf32, #tpu.memory_space<vmem>>) attributes {dimension_semantics = [#tpu.dimension_semantics<parallel>, #tpu.dimension_semantics<parallel>], iteration_bounds = array<i64: 1, 1>, scalar_prefetch = 0 : i64, scratch_operands = 0 : i64, tpu.core_type = #tpu.core_type<tc>, window_params = [{transform_indices = @transform_0, window_bounds = array<i64: 128, 64>}, {transform_indices = @transform_1, window_bounds = array<i64: 64, 128>}, {transform_indices = @transform_2, window_bounds = array<i64: 1, 128>}, {transform_indices = @transform_3, window_bounds = array<i64: 128, 128>}]} {
    %c0 = arith.constant 0 : index
    %c0_0 = arith.constant 0 : index
    %0 = vector.load %arg2[%c0, %c0_0] : memref<128x64xf32, #tpu.memory_space<vmem>>, vector<128x64xf32>
    %c0_1 = arith.constant 0 : index
    %c0_2 = arith.constant 0 : index
    %1 = vector.load %arg3[%c0_1, %c0_2] : memref<64x128xf32, #tpu.memory_space<vmem>>, vector<64x128xf32>
    %cst = arith.constant dense<0.000000e+00> : vector<128x128xf32>
    %2 = tpu.matmul %0, %1, %cst {dimension_numbers = #tpu.dot_dimension_numbers<[1], [0], [0], [1], [0, 0, 1, 1], [], []>} : vector<128x64xf32>, vector<64x128xf32>, vector<128x128xf32> -> vector<128x128xf32>
    %c0_3 = arith.constant 0 : index
    %c0_4 = arith.constant 0 : index
    %3 = vector.load %arg4[%c0_3, %c0_4] : memref<1x128xf32, #tpu.memory_space<vmem>>, vector<1x128xf32>
    %4 = vector.broadcast %3 : vector<1x128xf32> to vector<128x128xf32>
    %5 = arith.addf %2, %4 : vector<128x128xf32>
    %cst_5 = arith.constant 0.000000e+00 : f32
    %6 = vector.broadcast %cst_5 : f32 to vector<128x128xf32>
    %7 = arith.maximumf %5, %6 : vector<128x128xf32>
    %c0_6 = arith.constant 0 : index
    %c0_7 = arith.constant 0 : index
    %8 = vector.load %arg5[%c0_6, %c0_7] : memref<128x128xf32, #tpu.memory_space<vmem>>, vector<128x128xf32>
    tpu.vector_store %arg5[%c0_6, %c0_7], %7 {strides = array<i32>} : memref<128x128xf32, #tpu.memory_space<vmem>>, vector<128x128xf32>,
    return
  }
  func.func @transform_0(%arg0: i32, %arg1: i32) -> (i32, i32) {
    %c0_i32 = arith.constant 0 : i32
    %c0_i32_0 = arith.constant 0 : i32
    return %arg0, %c0_i32 : i32, i32
  }
  func.func @transform_1(%arg0: i32, %arg1: i32) -> (i32, i32) {
    %c0_i32 = arith.constant 0 : i32
    %c0_i32_0 = arith.constant 0 : i32
    return %c0_i32, %arg1 : i32, i32
  }
  func.func @transform_2(%arg0: i32, %arg1: i32) -> (i32, i32) {
    %c0_i32 = arith.constant 0 : i32
    %c0_i32_0 = arith.constant 0 : i32
    return %c0_i32, %arg1 : i32, i32
  }
  func.func @transform_3(%arg0: i32, %arg1: i32) -> (i32, i32) {
    %c0_i32 = arith.constant 0 : i32
    return %arg0, %arg1 : i32, i32
  }
}

module attributes {stable_mosaic.version = 11 : i64} {
  func.func @_attention_kernel(%arg0: i32, %arg1: memref<1x8x128xf32, #tpu.memory_space<vmem>>, %arg2: memref<1x16x128xf32, #tpu.memory_space<vmem>>, %arg3: memref<1x8x64xf32, #tpu.memory_space<vmem>>) attributes {dimension_semantics = [#tpu.dimension_semantics<parallel>], iteration_bounds = array<i64: 2>, scalar_prefetch = 0 : i64, scratch_operands = 0 : i64, tpu.core_type = #tpu.core_type<tc>, window_params = [{transform_indices = @transform_0, window_bounds = array<i64: 1, 8, 128>}, {transform_indices = @transform_1, window_bounds = array<i64: 1, 16, 128>}, {transform_indices = @transform_2, window_bounds = array<i64: 1, 8, 64>}]} {
    %c0 = arith.constant 0 : index
    %c0_0 = arith.constant 0 : index
    %c0_1 = arith.constant 0 : index
    %0 = vector.load %arg1[%c0, %c0_0, %c0_1] : memref<1x8x128xf32, #tpu.memory_space<vmem>>, vector<1x8x128xf32>
    %1 = vector.shape_cast %0 : vector<1x8x128xf32> to vector<8x128xf32>
    %2 = vector.extract_strided_slice %1 {offsets = [0, 0], sizes = [8, 64], strides = [1, 1]} : vector<8x128xf32> to vector<8x64xf32>
    %c0_2 = arith.constant 0 : index
    %c0_3 = arith.constant 0 : index
    %c0_4 = arith.constant 0 : index
    %3 = vector.load %arg2[%c0_2, %c0_3, %c0_4] : memref<1x16x128xf32, #tpu.memory_space<vmem>>, vector<1x16x128xf32>
    %4 = vector.shape_cast %3 : vector<1x16x128xf32> to vector<16x128xf32>
    %5 = vector.extract_strided_slice %4 {offsets = [0, 0], sizes = [16, 64], strides = [1, 1]} : vector<16x128xf32> to vector<16x64xf32>
    %6 = vector.extract_strided_slice %4 {offsets = [0, 64], sizes = [16, 64], strides = [1, 1]} : vector<16x128xf32> to vector<16x64xf32>
    %7 = vector.extract_strided_slice %2 {offsets = [0, 0], sizes = [8, 8], strides = [1, 1]} : vector<8x64xf32> to vector<8x8xf32>
    %8 = vector.extract_strided_slice %5 {offsets = [0, 0], sizes = [16, 8], strides = [1, 1]} : vector<16x64xf32> to vector<16x8xf32>
    %9 = vector.extract_strided_slice %6 {offsets = [0, 0], sizes = [16, 8], strides = [1, 1]} : vector<16x64xf32> to vector<16x8xf32>
    %cst = arith.constant dense<0.000000e+00> : vector<8x16xf32>
    %10 = tpu.matmul %7, %8, %cst {dimension_numbers = #tpu.dot_dimension_numbers<[1], [1], [0], [0], [0, 0, 1, 0], [], []>} : vector<8x8xf32>, vector<16x8xf32>, vector<8x16xf32> -> vector<8x16xf32>
    %cst_5 = arith.constant 0.353553385 : f32
    %11 = vector.broadcast %cst_5 : f32 to vector<8x16xf32>
    %12 = arith.mulf %10, %11 : vector<8x16xf32>
    %cst_6 = arith.constant dense<0xFF800000> : vector<8xf32>
    %13 = vector.multi_reduction <maximumf>, %12, %cst_6 [1] : vector<8x16xf32> to vector<8xf32>
    %14 = vector.shape_cast %13 : vector<8xf32> to vector<8x1xf32>
    %15 = vector.broadcast %14 : vector<8x1xf32> to vector<8x16xf32>
    %16 = arith.subf %12, %15 : vector<8x16xf32>
    %17 = math.exp %16 : vector<8x16xf32>
    %cst_7 = arith.constant dense<0.000000e+00> : vector<8xf32>
    %18 = vector.multi_reduction <add>, %17, %cst_7 [1] : vector<8x16xf32> to vector<8xf32>
    %19 = vector.shape_cast %18 : vector<8xf32> to vector<8x1xf32>
    %20 = tpu.reciprocal %19 {approx = true} : vector<8x1xf32> -> vector<8x1xf32>
    %21 = vector.broadcast %20 : vector<8x1xf32> to vector<8x16xf32>
    %22 = arith.mulf %17, %21 : vector<8x16xf32>
    %cst_8 = arith.constant dense<0.000000e+00> : vector<8x8xf32>
    %23 = tpu.matmul %22, %9, %cst_8 {dimension_numbers = #tpu.dot_dimension_numbers<[1], [0], [0], [1], [0, 0, 1, 1], [], []>} : vector<8x16xf32>, vector<16x8xf32>, vector<8x8xf32> -> vector<8x8xf32>
    %24 = vector.extract_strided_slice %2 {offsets = [0, 8], sizes = [8, 8], strides = [1, 1]} : vector<8x64xf32> to vector<8x8xf32>
    %25 = vector.extract_strided_slice %5 {offsets = [0, 8], sizes = [16, 8], strides = [1, 1]} : vector<16x64xf32> to vector<16x8xf32>
    %26 = vector.extract_strided_slice %6 {offsets = [0, 8], sizes = [16, 8], strides = [1, 1]} : vector<16x64xf32> to vector<16x8xf32>
    %cst_9 = arith.constant dense<0.000000e+00> : vector<8x16xf32>
    %27 = tpu.matmul %24, %25, %cst_9 {dimension_numbers = #tpu.dot_dimension_numbers<[1], [1], [0], [0], [0, 0, 1, 0], [], []>} : vector<8x8xf32>, vector<16x8xf32>, vector<8x16xf32> -> vector<8x16xf32>
    %cst_10 = arith.constant 0.353553385 : f32
    %28 = vector.broadcast %cst_10 : f32 to vector<8x16xf32>
    %29 = arith.mulf %27, %28 : vector<8x16xf32>
    %cst_11 = arith.constant dense<0xFF800000> : vector<8xf32>
    %30 = vector.multi_reduction <maximumf>, %29, %cst_11 [1] : vector<8x16xf32> to vector<8xf32>
    %31 = vector.shape_cast %30 : vector<8xf32> to vector<8x1xf32>
    %32 = vector.broadcast %31 : vector<8x1xf32> to vector<8x16xf32>
    %33 = arith.subf %29, %32 : vector<8x16xf32>
    %34 = math.exp %33 : vector<8x16xf32>
    %cst_12 = arith.constant dense<0.000000e+00> : vector<8xf32>
    %35 = vector.multi_reduction <add>, %34, %cst_12 [1] : vector<8x16xf32> to vector<8xf32>
    %36 = vector.shape_cast %35 : vector<8xf32> to vector<8x1xf32>
    %37 = tpu.reciprocal %36 {approx = true} : vector<8x1xf32> -> vector<8x1xf32>
    %38 = vector.broadcast %37 : vector<8x1xf32> to vector<8x16xf32>
    %39 = arith.mulf %34, %38 : vector<8x16xf32>
    %cst_13 = arith.constant dense<0.000000e+00> : vector<8x8xf32>
    %40 = tpu.matmul %39, %26, %cst_13 {dimension_numbers = #tpu.dot_dimension_numbers<[1], [0], [0], [1], [0, 0, 1, 1], [], []>} : vector<8x16xf32>, vector<16x8xf32>, vector<8x8xf32> -> vector<8x8xf32>
    %41 = vector.extract_strided_slice %2 {offsets = [0, 16], sizes = [8, 8], strides = [1, 1]} : vector<8x64xf32> to vector<8x8xf32>
    %42 = vector.extract_strided_slice %5 {offsets = [0, 16], sizes = [16, 8], strides = [1, 1]} : vector<16x64xf32> to vector<16x8xf32>
    %43 = vector.extract_strided_slice %6 {offsets = [0, 16], sizes = [16, 8], strides = [1, 1]} : vector<16x64xf32> to vector<16x8xf32>
    %cst_14 = arith.constant dense<0.000000e+00> : vector<8x16xf32>
    %44 = tpu.matmul %41, %42, %cst_14 {dimension_numbers = #tpu.dot_dimension_numbers<[1], [1], [0], [0], [0, 0, 1, 0], [], []>} : vector<8x8xf32>, vector<16x8xf32>, vector<8x16xf32> -> vector<8x16xf32>
    %cst_15 = arith.constant 0.353553385 : f32
    %45 = vector.broadcast %cst_15 : f32 to vector<8x16xf32>
    %46 = arith.mulf %44, %45 : vector<8x16xf32>
    %cst_16 = arith.constant dense<0xFF800000> : vector<8xf32>
    %47 = vector.multi_reduction <maximumf>, %46, %cst_16 [1] : vector<8x16xf32> to vector<8xf32>
    %48 = vector.shape_cast %47 : vector<8xf32> to vector<8x1xf32>
    %49 = vector.broadcast %48 : vector<8x1xf32> to vector<8x16xf32>
    %50 = arith.subf %46, %49 : vector<8x16xf32>
    %51 = math.exp %50 : vector<8x16xf32>
    %cst_17 = arith.constant dense<0.000000e+00> : vector<8xf32>
    %52 = vector.multi_reduction <add>, %51, %cst_17 [1] : vector<8x16xf32> to vector<8xf32>
    %53 = vector.shape_cast %52 : vector<8xf32> to vector<8x1xf32>
    %54 = tpu.reciprocal %53 {approx = true} : vector<8x1xf32> -> vector<8x1xf32>
    %55 = vector.broadcast %54 : vector<8x1xf32> to vector<8x16xf32>
    %56 = arith.mulf %51, %55 : vector<8x16xf32>
    %cst_18 = arith.constant dense<0.000000e+00> : vector<8x8xf32>
    %57 = tpu.matmul %56, %43, %cst_18 {dimension_numbers = #tpu.dot_dimension_numbers<[1], [0], [0], [1], [0, 0, 1, 1], [], []>} : vector<8x16xf32>, vector<16x8xf32>, vector<8x8xf32> -> vector<8x8xf32>
    %58 = vector.extract_strided_slice %2 {offsets = [0, 24], sizes = [8, 8], strides = [1, 1]} : vector<8x64xf32> to vector<8x8xf32>
    %59 = vector.extract_strided_slice %5 {offsets = [0, 24], sizes = [16, 8], strides = [1, 1]} : vector<16x64xf32> to vector<16x8xf32>
    %60 = vector.extract_strided_slice %6 {offsets = [0, 24], sizes = [16, 8], strides = [1, 1]} : vector<16x64xf32> to vector<16x8xf32>
    %cst_19 = arith.constant dense<0.000000e+00> : vector<8x16xf32>
    %61 = tpu.matmul %58, %59, %cst_19 {dimension_numbers = #tpu.dot_dimension_numbers<[1], [1], [0], [0], [0, 0, 1, 0], [], []>} : vector<8x8xf32>, vector<16x8xf32>, vector<8x16xf32> -> vector<8x16xf32>
    %cst_20 = arith.constant 0.353553385 : f32
    %62 = vector.broadcast %cst_20 : f32 to vector<8x16xf32>
    %63 = arith.mulf %61, %62 : vector<8x16xf32>
    %cst_21 = arith.constant dense<0xFF800000> : vector<8xf32>
    %64 = vector.multi_reduction <maximumf>, %63, %cst_21 [1] : vector<8x16xf32> to vector<8xf32>
    %65 = vector.shape_cast %64 : vector<8xf32> to vector<8x1xf32>
    %66 = vector.broadcast %65 : vector<8x1xf32> to vector<8x16xf32>
    %67 = arith.subf %63, %66 : vector<8x16xf32>
    %68 = math.exp %67 : vector<8x16xf32>
    %cst_22 = arith.constant dense<0.000000e+00> : vector<8xf32>
    %69 = vector.multi_reduction <add>, %68, %cst_22 [1] : vector<8x16xf32> to vector<8xf32>
    %70 = vector.shape_cast %69 : vector<8xf32> to vector<8x1xf32>
    %71 = tpu.reciprocal %70 {approx = true} : vector<8x1xf32> -> vector<8x1xf32>
    %72 = vector.broadcast %71 : vector<8x1xf32> to vector<8x16xf32>
    %73 = arith.mulf %68, %72 : vector<8x16xf32>
    %cst_23 = arith.constant dense<0.000000e+00> : vector<8x8xf32>
    %74 = tpu.matmul %73, %60, %cst_23 {dimension_numbers = #tpu.dot_dimension_numbers<[1], [0], [0], [1], [0, 0, 1, 1], [], []>} : vector<8x16xf32>, vector<16x8xf32>, vector<8x8xf32> -> vector<8x8xf32>
    %75 = vector.extract_strided_slice %2 {offsets = [0, 32], sizes = [8, 8], strides = [1, 1]} : vector<8x64xf32> to vector<8x8xf32>
    %76 = vector.extract_strided_slice %5 {offsets = [0, 32], sizes = [16, 8], strides = [1, 1]} : vector<16x64xf32> to vector<16x8xf32>
    %77 = vector.extract_strided_slice %6 {offsets = [0, 32], sizes = [16, 8], strides = [1, 1]} : vector<16x64xf32> to vector<16x8xf32>
    %cst_24 = arith.constant dense<0.000000e+00> : vector<8x16xf32>
    %78 = tpu.matmul %75, %76, %cst_24 {dimension_numbers = #tpu.dot_dimension_numbers<[1], [1], [0], [0], [0, 0, 1, 0], [], []>} : vector<8x8xf32>, vector<16x8xf32>, vector<8x16xf32> -> vector<8x16xf32>
    %cst_25 = arith.constant 0.353553385 : f32
    %79 = vector.broadcast %cst_25 : f32 to vector<8x16xf32>
    %80 = arith.mulf %78, %79 : vector<8x16xf32>
    %cst_26 = arith.constant dense<0xFF800000> : vector<8xf32>
    %81 = vector.multi_reduction <maximumf>, %80, %cst_26 [1] : vector<8x16xf32> to vector<8xf32>
    %82 = vector.shape_cast %81 : vector<8xf32> to vector<8x1xf32>
    %83 = vector.broadcast %82 : vector<8x1xf32> to vector<8x16xf32>
    %84 = arith.subf %80, %83 : vector<8x16xf32>
    %85 = math.exp %84 : vector<8x16xf32>
    %cst_27 = arith.constant dense<0.000000e+00> : vector<8xf32>
    %86 = vector.multi_reduction <add>, %85, %cst_27 [1] : vector<8x16xf32> to vector<8xf32>
    %87 = vector.shape_cast %86 : vector<8xf32> to vector<8x1xf32>
    %88 = tpu.reciprocal %87 {approx = true} : vector<8x1xf32> -> vector<8x1xf32>
    %89 = vector.broadcast %88 : vector<8x1xf32> to vector<8x16xf32>
    %90 = arith.mulf %85, %89 : vector<8x16xf32>
    %cst_28 = arith.constant dense<0.000000e+00> : vector<8x8xf32>
    %91 = tpu.matmul %90, %77, %cst_28 {dimension_numbers = #tpu.dot_dimension_numbers<[1], [0], [0], [1], [0, 0, 1, 1], [], []>} : vector<8x16xf32>, vector<16x8xf32>, vector<8x8xf32> -> vector<8x8xf32>
    %92 = vector.extract_strided_slice %2 {offsets = [0, 40], sizes = [8, 8], strides = [1, 1]} : vector<8x64xf32> to vector<8x8xf32>
    %93 = vector.extract_strided_slice %5 {offsets = [0, 40], sizes = [16, 8], strides = [1, 1]} : vector<16x64xf32> to vector<16x8xf32>
    %94 = vector.extract_strided_slice %6 {offsets = [0, 40], sizes = [16, 8], strides = [1, 1]} : vector<16x64xf32> to vector<16x8xf32>
    %cst_29 = arith.constant dense<0.000000e+00> : vector<8x16xf32>
    %95 = tpu.matmul %92, %93, %cst_29 {dimension_numbers = #tpu.dot_dimension_numbers<[1], [1], [0], [0], [0, 0, 1, 0], [], []>} : vector<8x8xf32>, vector<16x8xf32>, vector<8x16xf32> -> vector<8x16xf32>
    %cst_30 = arith.constant 0.353553385 : f32
    %96 = vector.broadcast %cst_30 : f32 to vector<8x16xf32>
    %97 = arith.mulf %95, %96 : vector<8x16xf32>
    %cst_31 = arith.constant dense<0xFF800000> : vector<8xf32>
    %98 = vector.multi_reduction <maximumf>, %97, %cst_31 [1] : vector<8x16xf32> to vector<8xf32>
    %99 = vector.shape_cast %98 : vector<8xf32> to vector<8x1xf32>
    %100 = vector.broadcast %99 : vector<8x1xf32> to vector<8x16xf32>
    %101 = arith.subf %97, %100 : vector<8x16xf32>
    %102 = math.exp %101 : vector<8x16xf32>
    %cst_32 = arith.constant dense<0.000000e+00> : vector<8xf32>
    %103 = vector.multi_reduction <add>, %102, %cst_32 [1] : vector<8x16xf32> to vector<8xf32>
    %104 = vector.shape_cast %103 : vector<8xf32> to vector<8x1xf32>
    %105 = tpu.reciprocal %104 {approx = true} : vector<8x1xf32> -> vector<8x1xf32>
    %106 = vector.broadcast %105 : vector<8x1xf32> to vector<8x16xf32>
    %107 = arith.mulf %102, %106 : vector<8x16xf32>
    %cst_33 = arith.constant dense<0.000000e+00> : vector<8x8xf32>
    %108 = tpu.matmul %107, %94, %cst_33 {dimension_numbers = #tpu.dot_dimension_numbers<[1], [0], [0], [1], [0, 0, 1, 1], [], []>} : vector<8x16xf32>, vector<16x8xf32>, vector<8x8xf32> -> vector<8x8xf32>
    %109 = vector.extract_strided_slice %2 {offsets = [0, 48], sizes = [8, 8], strides = [1, 1]} : vector<8x64xf32> to vector<8x8xf32>
    %110 = vector.extract_strided_slice %5 {offsets = [0, 48], sizes = [16, 8], strides = [1, 1]} : vector<16x64xf32> to vector<16x8xf32>
    %111 = vector.extract_strided_slice %6 {offsets = [0, 48], sizes = [16, 8], strides = [1, 1]} : vector<16x64xf32> to vector<16x8xf32>
    %cst_34 = arith.constant dense<0.000000e+00> : vector<8x16xf32>
    %112 = tpu.matmul %109, %110, %cst_34 {dimension_numbers = #tpu.dot_dimension_numbers<[1], [1], [0], [0], [0, 0, 1, 0], [], []>} : vector<8x8xf32>, vector<16x8xf32>, vector<8x16xf32> -> vector<8x16xf32>
    %cst_35 = arith.constant 0.353553385 : f32
    %113 = vector.broadcast %cst_35 : f32 to vector<8x16xf32>
    %114 = arith.mulf %112, %113 : vector<8x16xf32>
    %cst_36 = arith.constant dense<0xFF800000> : vector<8xf32>
    %115 = vector.multi_reduction <maximumf>, %114, %cst_36 [1] : vector<8x16xf32> to vector<8xf32>
    %116 = vector.shape_cast %115 : vector<8xf32> to vector<8x1xf32>
    %117 = vector.broadcast %116 : vector<8x1xf32> to vector<8x16xf32>
    %118 = arith.subf %114, %117 : vector<8x16xf32>
    %119 = math.exp %118 : vector<8x16xf32>
    %cst_37 = arith.constant dense<0.000000e+00> : vector<8xf32>
    %120 = vector.multi_reduction <add>, %119, %cst_37 [1] : vector<8x16xf32> to vector<8xf32>
    %121 = vector.shape_cast %120 : vector<8xf32> to vector<8x1xf32>
    %122 = tpu.reciprocal %121 {approx = true} : vector<8x1xf32> -> vector<8x1xf32>
    %123 = vector.broadcast %122 : vector<8x1xf32> to vector<8x16xf32>
    %124 = arith.mulf %119, %123 : vector<8x16xf32>
    %cst_38 = arith.constant dense<0.000000e+00> : vector<8x8xf32>
    %125 = tpu.matmul %124, %111, %cst_38 {dimension_numbers = #tpu.dot_dimension_numbers<[1], [0], [0], [1], [0, 0, 1, 1], [], []>} : vector<8x16xf32>, vector<16x8xf32>, vector<8x8xf32> -> vector<8x8xf32>
    %126 = vector.extract_strided_slice %2 {offsets = [0, 56], sizes = [8, 8], strides = [1, 1]} : vector<8x64xf32> to vector<8x8xf32>
    %127 = vector.extract_strided_slice %5 {offsets = [0, 56], sizes = [16, 8], strides = [1, 1]} : vector<16x64xf32> to vector<16x8xf32>
    %128 = vector.extract_strided_slice %6 {offsets = [0, 56], sizes = [16, 8], strides = [1, 1]} : vector<16x64xf32> to vector<16x8xf32>
    %cst_39 = arith.constant dense<0.000000e+00> : vector<8x16xf32>
    %129 = tpu.matmul %126, %127, %cst_39 {dimension_numbers = #tpu.dot_dimension_numbers<[1], [1], [0], [0], [0, 0, 1, 0], [], []>} : vector<8x8xf32>, vector<16x8xf32>, vector<8x16xf32> -> vector<8x16xf32>
    %cst_40 = arith.constant 0.353553385 : f32
    %130 = vector.broadcast %cst_40 : f32 to vector<8x16xf32>
    %131 = arith.mulf %129, %130 : vector<8x16xf32>
    %cst_41 = arith.constant dense<0xFF800000> : vector<8xf32>
    %132 = vector.multi_reduction <maximumf>, %131, %cst_41 [1] : vector<8x16xf32> to vector<8xf32>
    %133 = vector.shape_cast %132 : vector<8xf32> to vector<8x1xf32>
    %134 = vector.broadcast %133 : vector<8x1xf32> to vector<8x16xf32>
    %135 = arith.subf %131, %134 : vector<8x16xf32>
    %136 = math.exp %135 : vector<8x16xf32>
    %cst_42 = arith.constant dense<0.000000e+00> : vector<8xf32>
    %137 = vector.multi_reduction <add>, %136, %cst_42 [1] : vector<8x16xf32> to vector<8xf32>
    %138 = vector.shape_cast %137 : vector<8xf32> to vector<8x1xf32>
    %139 = tpu.reciprocal %138 {approx = true} : vector<8x1xf32> -> vector<8x1xf32>
    %140 = vector.broadcast %139 : vector<8x1xf32> to vector<8x16xf32>
    %141 = arith.mulf %136, %140 : vector<8x16xf32>
    %cst_43 = arith.constant dense<0.000000e+00> : vector<8x8xf32>
    %142 = tpu.matmul %141, %128, %cst_43 {dimension_numbers = #tpu.dot_dimension_numbers<[1], [0], [0], [1], [0, 0, 1, 1], [], []>} : vector<8x16xf32>, vector<16x8xf32>, vector<8x8xf32> -> vector<8x8xf32>
    %143 = tpu.concatenate %23, %40, %57, %74, %91, %108, %125, %142 in 1 : vector<8x8xf32>, vector<8x8xf32>, vector<8x8xf32>, vector<8x8xf32>, vector<8x8xf32>, vector<8x8xf32>, vector<8x8xf32>, vector<8x8xf32> -> vector<8x64xf32>
    %c0_44 = arith.constant 0 : index
    %c0_45 = arith.constant 0 : index
    %c0_46 = arith.constant 0 : index
    %144 = vector.load %arg3[%c0_44, %c0_45, %c0_46] : memref<1x8x64xf32, #tpu.memory_space<vmem>>, vector<1x8x64xf32>
    %145 = vector.shape_cast %144 : vector<1x8x64xf32> to vector<8x64xf32>
    %146 = vector.shape_cast %143 : vector<8x64xf32> to vector<1x8x64xf32>
    tpu.vector_store %arg3[%c0_44, %c0_45, %c0_46], %146 {strides = array<i32>} : memref<1x8x64xf32, #tpu.memory_space<vmem>>, vector<1x8x64xf32>,
    return
  }
  func.func @transform_0(%arg0: i32) -> (i32, i32, i32) {
    %c0_i32 = arith.constant 0 : i32
    %c0_i32_0 = arith.constant 0 : i32
    %c0_i32_1 = arith.constant 0 : i32
    return %arg0, %c0_i32, %c0_i32_0 : i32, i32, i32
  }
  func.func @transform_1(%arg0: i32) -> (i32, i32, i32) {
    %c0_i32 = arith.constant 0 : i32
    %c0_i32_0 = arith.constant 0 : i32
    %c0_i32_1 = arith.constant 0 : i32
    return %arg0, %c0_i32, %c0_i32_0 : i32, i32, i32
  }
  func.func @transform_2(%arg0: i32) -> (i32, i32, i32) {
    %c0_i32 = arith.constant 0 : i32
    %c0_i32_0 = arith.constant 0 : i32
    %c0_i32_1 = arith.constant 0 : i32
    return %arg0, %c0_i32, %c0_i32_0 : i32, i32, i32
  }
}

module attributes {stable_mosaic.version = 11 : i64} {
  func.func @_linear_kernel(%arg0: i32, %arg1: i32, %arg2: memref<32x64xf32, #tpu.memory_space<vmem>>, %arg3: memref<64x128xf32, #tpu.memory_space<vmem>>, %arg4: memref<1x128xf32, #tpu.memory_space<vmem>>, %arg5: memref<32x128xf32, #tpu.memory_space<vmem>>) attributes {dimension_semantics = [#tpu.dimension_semantics<parallel>, #tpu.dimension_semantics<parallel>], iteration_bounds = array<i64: 1, 1>, scalar_prefetch = 0 : i64, scratch_operands = 0 : i64, tpu.core_type = #tpu.core_type<tc>, window_params = [{transform_indices = @transform_0, window_bounds = array<i64: 32, 64>}, {transform_indices = @transform_1, window_bounds = array<i64: 64, 128>}, {transform_indices = @transform_2, window_bounds = array<i64: 1, 128>}, {transform_indices = @transform_3, window_bounds = array<i64: 32, 128>}]} {
    %c0 = arith.constant 0 : index
    %c0_0 = arith.constant 0 : index
    %0 = vector.load %arg2[%c0, %c0_0] : memref<32x64xf32, #tpu.memory_space<vmem>>, vector<32x64xf32>
    %c0_1 = arith.constant 0 : index
    %c0_2 = arith.constant 0 : index
    %1 = vector.load %arg3[%c0_1, %c0_2] : memref<64x128xf32, #tpu.memory_space<vmem>>, vector<64x128xf32>
    %cst = arith.constant dense<0.000000e+00> : vector<32x128xf32>
    %2 = tpu.matmul %0, %1, %cst {dimension_numbers = #tpu.dot_dimension_numbers<[1], [0], [0], [1], [0, 0, 1, 1], [], []>} : vector<32x64xf32>, vector<64x128xf32>, vector<32x128xf32> -> vector<32x128xf32>
    %c0_3 = arith.constant 0 : index
    %c0_4 = arith.constant 0 : index
    %3 = vector.load %arg4[%c0_3, %c0_4] : memref<1x128xf32, #tpu.memory_space<vmem>>, vector<1x128xf32>
    %4 = vector.broadcast %3 : vector<1x128xf32> to vector<32x128xf32>
    %5 = arith.addf %2, %4 : vector<32x128xf32>
    %c0_5 = arith.constant 0 : index
    %c0_6 = arith.constant 0 : index
    %6 = vector.load %arg5[%c0_5, %c0_6] : memref<32x128xf32, #tpu.memory_space<vmem>>, vector<32x128xf32>
    tpu.vector_store %arg5[%c0_5, %c0_6], %5 {strides = array<i32>} : memref<32x128xf32, #tpu.memory_space<vmem>>, vector<32x128xf32>,
    return
  }
  func.func @transform_0(%arg0: i32, %arg1: i32) -> (i32, i32) {
    %c0_i32 = arith.constant 0 : i32
    %c0_i32_0 = arith.constant 0 : i32
    return %arg0, %c0_i32 : i32, i32
  }
  func.func @transform_1(%arg0: i32, %arg1: i32) -> (i32, i32) {
    %c0_i32 = arith.constant 0 : i32
    %c0_i32_0 = arith.constant 0 : i32
    return %c0_i32, %arg1 : i32, i32
  }
  func.func @transform_2(%arg0: i32, %arg1: i32) -> (i32, i32) {
    %c0_i32 = arith.constant 0 : i32
    %c0_i32_0 = arith.constant 0 : i32
    return %c0_i32, %arg1 : i32, i32
  }
  func.func @transform_3(%arg0: i32, %arg1: i32) -> (i32, i32) {
    %c0_i32 = arith.constant 0 : i32
    return %arg0, %arg1 : i32, i32
  }
}

module attributes {stable_mosaic.version = 11 : i64} {
  func.func @_linear_kernel(%arg0: i32, %arg1: i32, %arg2: memref<16x64xf32, #tpu.memory_space<vmem>>, %arg3: memref<64x128xf32, #tpu.memory_space<vmem>>, %arg4: memref<1x128xf32, #tpu.memory_space<vmem>>, %arg5: memref<1x64xf32, #tpu.memory_space<vmem>>, %arg6: memref<1x64xf32, #tpu.memory_space<vmem>>, %arg7: memref<16x128xf32, #tpu.memory_space<vmem>>) attributes {dimension_semantics = [#tpu.dimension_semantics<parallel>, #tpu.dimension_semantics<parallel>], iteration_bounds = array<i64: 1, 1>, scalar_prefetch = 0 : i64, scratch_operands = 0 : i64, tpu.core_type = #tpu.core_type<tc>, window_params = [{transform_indices = @transform_0, window_bounds = array<i64: 16, 64>}, {transform_indices = @transform_1, window_bounds = array<i64: 64, 128>}, {transform_indices = @transform_2, window_bounds = array<i64: 1, 128>}, {pipeline_mode = #tpu.pipeline_mode<synchronous>, transform_indices = @transform_3, window_bounds = array<i64: 1, 64>}, {pipeline_mode = #tpu.pipeline_mode<synchronous>, transform_indices = @transform_4, window_bounds = array<i64: 1, 64>}, {transform_indices = @transform_5, window_bounds = array<i64: 16, 128>}]} {
    %c0 = arith.constant 0 : index
    %c0_0 = arith.constant 0 : index
    %0 = vector.load %arg2[%c0, %c0_0] : memref<16x64xf32, #tpu.memory_space<vmem>>, vector<16x64xf32>
    %cst = arith.constant dense<0.000000e+00> : vector<16xf32>
    %1 = vector.multi_reduction <add>, %0, %cst [1] : vector<16x64xf32> to vector<16xf32>
    %2 = vector.shape_cast %1 : vector<16xf32> to vector<16x1xf32>
    %cst_1 = arith.constant 6.400000e+01 : f32
    %3 = vector.broadcast %cst_1 : f32 to vector<16x1xf32>
    %4 = arith.divf %2, %3 : vector<16x1xf32>
    %5 = vector.broadcast %4 : vector<16x1xf32> to vector<16x64xf32>
    %6 = arith.subf %0, %5 : vector<16x64xf32>
    %7 = arith.mulf %6, %6 : vector<16x64xf32>
    %cst_2 = arith.constant dense<0.000000e+00> : vector<16xf32>
    %8 = vector.multi_reduction <add>, %7, %cst_2 [1] : vector<16x64xf32> to vector<16xf32>
    %9 = vector.shape_cast %8 : vector<16xf32> to vector<16x1xf32>
    %cst_3 = arith.constant 6.300000e+01 : f32
    %10 = vector.broadcast %cst_3 : f32 to vector<16x1xf32>
    %11 = arith.divf %9, %10 : vector<16x1xf32>
    %12 = math.sqrt %11 : vector<16x1xf32>
    %cst_4 = arith.constant 9.99999997E-7 : f32
    %13 = vector.broadcast %cst_4 : f32 to vector<16x1xf32>
    %14 = arith.addf %12, %13 : vector<16x1xf32>
    %15 = tpu.reciprocal %14 {approx = true} : vector<16x1xf32> -> vector<16x1xf32>
    %c0_5 = arith.constant 0 : index
    %c0_6 = arith.constant 0 : index
    %16 = vector.load %arg5[%c0_5, %c0_6] : memref<1x64xf32, #tpu.memory_space<vmem>>, vector<1x64xf32>
    %17 = vector.broadcast %16 : vector<1x64xf32> to vector<16x64xf32>
    %18 = arith.mulf %17, %6 : vector<16x64xf32>
    %19 = vector.broadcast %15 : vector<16x1xf32> to vector<16x64xf32>
    %20 = arith.mulf %18, %19 : vector<16x64xf32>
    %c0_7 = arith.constant 0 : index
    %c0_8 = arith.constant 0 : index
    %21 = vector.load %arg6[%c0_7, %c0_8] : memref<1x64xf32, #tpu.memory_space<vmem>>, vector<1x64xf32>
    %22 = vector.broadcast %21 : vector<1x64xf32> to vector<16x64xf32>
    %23 = arith.addf %20, %22 : vector<16x64xf32>
    %c0_9 = arith.constant 0 : index
    %c0_10 = arith.constant 0 : index
    %24 = vector.load %arg3[%c0_9, %c0_10] : memref<64x128xf32, #tpu.memory_space<vmem>>, vector<64x128xf32>
    %cst_11 = arith.constant dense<0.000000e+00> : vector<16x128xf32>
    %25 = tpu.matmul %23, %24, %cst_11 {dimension_numbers = #tpu.dot_dimension_numbers<[1], [0], [0], [1], [0, 0, 1, 1], [], []>} : vector<16x64xf32>, vector<64x128xf32>, vector<16x128xf32> -> vector<16x128xf32>
    %c0_12 = arith.constant 0 : index
    %c0_13 = arith.constant 0 : index
    %26 = vector.load %arg4[%c0_12, %c0_13] : memref<1x128xf32, #tpu.memory_space<vmem>>, vector<1x128xf32>
    %27 = vector.broadcast %26 : vector<1x128xf32> to vector<16x128xf32>
    %28 = arith.addf %25, %27 : vector<16x128xf32>
    %cst_14 = arith.constant 0.000000e+00 : f32
    %29 = vector.broadcast %cst_14 : f32 to vector<16x128xf32>
    %30 = arith.maximumf %28, %29 : vector<16x128xf32>
    %c0_15 = arith.constant 0 : index
    %c0_16 = arith.constant 0 : index
    %31 = vector.load %arg7[%c0_15, %c0_16] : memref<16x128xf32, #tpu.memory_space<vmem>>, vector<16x128xf32>
    tpu.vector_store %arg7[%c0_15, %c0_16], %30 {strides = array<i32>} : memref<16x128xf32, #tpu.memory_space<vmem>>, vector<16x128xf32>,
    return
  }
  func.func @transform_0(%arg0: i32, %arg1: i32) -> (i32, i32) {
    %c0_i32 = arith.constant 0 : i32
    %c0_i32_0 = arith.constant 0 : i32
    return %arg0, %c0_i32 : i32, i32
  }
  func.func @transform_1(%arg0: i32, %arg1: i32) -> (i32, i32) {
    %c0_i32 = arith.constant 0 : i32
    %c0_i32_0 = arith.constant 0 : i32
    return %c0_i32, %arg1 : i32, i32
  }
  func.func @transform_2(%arg0: i32, %arg1: i32) -> (i32, i32) {
    %c0_i32 = arith.constant 0 : i32
    %c0_i32_0 = arith.constant 0 : i32
    return %c0_i32, %arg1 : i32, i32
  }
  func.func @transform_3(%arg0: i32, %arg1: i32) -> (i32, i32) {
    %c0_i32 = arith.constant 0 : i32
    %c0_i32_0 = arith.constant 0 : i32
    %c0_i32_1 = arith.constant 0 : i32
    return %c0_i32, %c0_i32_0 : i32, i32
  }
  func.func @transform_4(%arg0: i32, %arg1: i32) -> (i32, i32) {
    %c0_i32 = arith.constant 0 : i32
    %c0_i32_0 = arith.constant 0 : i32
    %c0_i32_1 = arith.constant 0 : i32
    return %c0_i32, %c0_i32_0 : i32, i32
  }
  func.func @transform_5(%arg0: i32, %arg1: i32) -> (i32, i32) {
    %c0_i32 = arith.constant 0 : i32
    return %arg0, %arg1 : i32, i32
  }
}

module attributes {stable_mosaic.version = 11 : i64} {
  func.func @_linear_kernel(%arg0: i32, %arg1: i32, %arg2: memref<16x128xf32, #tpu.memory_space<vmem>>, %arg3: memref<128x128xf32, #tpu.memory_space<vmem>>, %arg4: memref<1x128xf32, #tpu.memory_space<vmem>>, %arg5: memref<16x128xf32, #tpu.memory_space<vmem>>, %arg6: memref<16x128xf32, #tpu.memory_space<vmem>>) attributes {dimension_semantics = [#tpu.dimension_semantics<parallel>, #tpu.dimension_semantics<parallel>], iteration_bounds = array<i64: 1, 1>, scalar_prefetch = 0 : i64, scratch_operands = 0 : i64, tpu.core_type = #tpu.core_type<tc>, window_params = [{transform_indices = @transform_0, window_bounds = array<i64: 16, 128>}, {transform_indices = @transform_1, window_bounds = array<i64: 128, 128>}, {transform_indices = @transform_2, window_bounds = array<i64: 1, 128>}, {transform_indices = @transform_3, window_bounds = array<i64: 16, 128>}, {transform_indices = @transform_4, window_bounds = array<i64: 16, 128>}]} {
    %c0 = arith.constant 0 : index
    %c0_0 = arith.constant 0 : index
    %0 = vector.load %arg2[%c0, %c0_0] : memref<16x128xf32, #tpu.memory_space<vmem>>, vector<16x128xf32>
    %c0_1 = arith.constant 0 : index
    %c0_2 = arith.constant 0 : index
    %1 = vector.load %arg3[%c0_1, %c0_2] : memref<128x128xf32, #tpu.memory_space<vmem>>, vector<128x128xf32>
    %cst = arith.constant dense<0.000000e+00> : vector<16x128xf32>
    %2 = tpu.matmul %0, %1, %cst {dimension_numbers = #tpu.dot_dimension_numbers<[1], [0], [0], [1], [0, 0, 1, 1], [], []>} : vector<16x128xf32>, vector<128x128xf32>, vector<16x128xf32> -> vector<16x128xf32>
    %c0_3 = arith.constant 0 : index
    %c0_4 = arith.constant 0 : index
    %3 = vector.load %arg4[%c0_3, %c0_4] : memref<1x128xf32, #tpu.memory_space<vmem>>, vector<1x128xf32>
    %4 = vector.broadcast %3 : vector<1x128xf32> to vector<16x128xf32>
    %5 = arith.addf %2, %4 : vector<16x128xf32>
    %c0_5 = arith.constant 0 : index
    %c0_6 = arith.constant 0 : index
    %6 = vector.load %arg5[%c0_5, %c0_6] : memref<16x128xf32, #tpu.memory_space<vmem>>, vector<16x128xf32>
    %7 = arith.addf %6, %5 : vector<16x128xf32>
    %c0_7 = arith.constant 0 : index
    %c0_8 = arith.constant 0 : index
    %8 = vector.load %arg6[%c0_7, %c0_8] : memref<16x128xf32, #tpu.memory_space<vmem>>, vector<16x128xf32>
    tpu.vector_store %arg6[%c0_7, %c0_8], %7 {strides = array<i32>} : memref<16x128xf32, #tpu.memory_space<vmem>>, vector<16x128xf32>,
    return
  }
  func.func @transform_0(%arg0: i32, %arg1: i32) -> (i32, i32) {
    %c0_i32 = arith.constant 0 : i32
    %c0_i32_0 = arith.constant 0 : i32
    return %arg0, %c0_i32 : i32, i32
  }
  func.func @transform_1(%arg0: i32, %arg1: i32) -> (i32, i32) {
    %c0_i32 = arith.constant 0 : i32
    %c0_i32_0 = arith.constant 0 : i32
    return %c0_i32, %arg1 : i32, i32
  }
  func.func @transform_2(%arg0: i32, %arg1: i32) -> (i32, i32) {
    %c0_i32 = arith.constant 0 : i32
    %c0_i32_0 = arith.constant 0 : i32
    return %c0_i32, %arg1 : i32, i32
  }
  func.func @transform_3(%arg0: i32, %arg1: i32) -> (i32, i32) {
    %c0_i32 = arith.constant 0 : i32
    return %arg0, %arg1 : i32, i32
  }
  func.func @transform_4(%arg0: i32, %arg1: i32) -> (i32, i32) {
    %c0_i32 = arith.constant 0 : i32
    return %arg0, %arg1 : i32, i32
  }
}

</mosaic_0001>

<llo_original>
// kernel: transformer_forward.29
$region0: #{transformer_forward.29}
  #allocation0 [shape = 'u32[]', space=smem, size = 0x4, offset = 0x4, fixed_abs, tag = 'smem constant byte address 0x4 - core index']
  #allocation1 [shape = 'u32[72,128]{1,0:T(1,128)}', space=vmem, size = 0x9000, scoped, tag = 'internal scratch']
  %s0 = inlined_call_operand.vmem [shape: f32[16,64], index: 0, kind: input, shape index: {}]
  %s1 = inlined_call_operand.vmem [shape: f32[64,128], index: 1, kind: input, shape index: {}]
  %s2 = inlined_call_operand.vmem [shape: f32[1,128], index: 2, kind: input, shape index: {}]
  %s3 = inlined_call_operand.vmem [shape: f32[16,128], index: 3, kind: input, shape index: {}]
  %s4 = inlined_call_operand.vmem [shape: f32[16,128], index: 4, kind: output, shape index: {}]
  %s5 = sld [smem:[#allocation0]]
  $region26: #{transformer_forward.29} parent=0
    _
  %s7 = ssub.s32 1, %s5
  %s8 = scalar_select 0, %s7, %s5
  // Predicated region
  $region2: #{transformer_forward.29} parent=0 // pred_check
    _
  $region3: #{transformer_forward.29} parent=0 // pred_check_branch
    %10 = sbr.rel (0) target = $region5
  $region4: #{transformer_forward.29} parent=0 // pred_region
    _
  $region5: #{transformer_forward.29} parent=0 // pred_fallthru
    _
  // Predicated region
  $region6: #{transformer_forward.29} parent=0 // pred_check
    _
  $region7: #{transformer_forward.29} parent=0 // pred_check_branch
    %12 = sbr.rel (0) target = $region9
  $region8: #{transformer_forward.29} parent=0 // pred_region
    _
  $region9: #{transformer_forward.29} parent=0 // pred_fallthru
    _
  // Predicated region
  $region10: #{transformer_forward.29} parent=0 // pred_check
    _
  $region11: #{transformer_forward.29} parent=0 // pred_check_branch
    %14 = sbr.rel (0) target = $region13
  $region12: #{transformer_forward.29} parent=0 // pred_region
    _
  $region13: #{transformer_forward.29} parent=0 // pred_fallthru
    _
  // Predicated region
  $region14: #{transformer_forward.29} parent=0 // pred_check
    _
  $region15: #{transformer_forward.29} parent=0 // pred_check_branch
    %16 = sbr.rel (0) target = $region17
  $region16: #{transformer_forward.29} parent=0 // pred_region
    _
  $region17: #{transformer_forward.29} parent=0 // pred_fallthru
    _
  %v17 = vld [vmem:[%s0] sm:$0xff]
  %v18 = vld [vmem:[%s0 + $0x8] sm:$0xff]
  %v19 = vld [vmem:[%s1] sm:$0xff]
  %v20 = vld [vmem:[%s1 + $0x8] sm:$0xff]
  %v21 = vld [vmem:[%s1 + $0x10] sm:$0xff]
  %v22 = vld [vmem:[%s1 + $0x18] sm:$0xff]
  %v23 = vld [vmem:[%s1 + $0x20] sm:$0xff]
  %v24 = vld [vmem:[%s1 + $0x28] sm:$0xff]
  %v25 = vld [vmem:[%s1 + $0x30] sm:$0xff]
  %v26 = vld [vmem:[%s1 + $0x38] sm:$0xff]
  %v27 = vld [vmem:[%s2] sm:$0x1]
  %v29 = vperm.slane %v27, 0
  %vm31 = vcmask 523264
  %v33 = vsel %vm31, %v17, 0
  %v36 = vsel %vm31, %v18, 0
  %38 = vmatpush.msra.mxu0 0.0
  %39 = vmatpush.msra.mxu0 0.0
  %40 = vmatpush.msra.mxu0 0.0
  %41 = vmatpush.msra.mxu0 0.0
  %42 = vmatpush.msra.mxu0 0.0
  %43 = vmatpush.msra.mxu0 0.0
  %44 = vmatpush.msra.mxu0 0.0
  %45 = vmatpush.msra.mxu0 0.0
  %46 = vmatpush.msra.mxu0 %v26
  %47 = vmatpush.msra.mxu0 %v25
  %48 = vmatpush.msra.mxu0 %v24
  %49 = vmatpush.msra.mxu0 %v23
  %50 = vmatpush.msra.mxu0 %v22
  %51 = vmatpush.msra.mxu0 %v21
  %52 = vmatpush.msra.mxu0 %v20
  %53 = vmatpush.msra.mxu0 %v19
  %54 = vmatmul.f32.gmra.mxu0 %v33
  %v55 = vpop.f32.mrf.mxu0
  %v56 = vadd.f32 %v29, %v55
  %57 = vmatmul.f32.gmra.mxu0 %v36
  %v58 = vpop.f32.mrf.mxu0
  %v59 = vadd.f32 %v29, %v58
  %60 = vdwg.mxu0
  %v61 = vld [vmem:[%s3] sm:$0xff]
  %v62 = vld [vmem:[%s3 + $0x8] sm:$0xff]
  %v63 = vadd.f32 %v61, %v56
  %v64 = vadd.f32 %v62, %v59
  %65 = vst [vmem:[%s4] sm:$0xff] %v63
  %66 = vst [vmem:[%s4 + $0x8] sm:$0xff] %v64
  // Predicated region
  $region18: #{transformer_forward.29} parent=0 // pred_check
    _
  $region19: #{transformer_forward.29} parent=0 // pred_check_branch
    %68 = sbr.rel (0) target = $region21
  $region20: #{transformer_forward.29} parent=0 // pred_region
    _
  $region21: #{transformer_forward.29} parent=0 // pred_fallthru
    _
  // Predicated region
  $region22: #{transformer_forward.29} parent=0 // pred_check
    _
  $region23: #{transformer_forward.29} parent=0 // pred_check_branch
    %70 = sbr.rel (0) target = $region25
  $region24: #{transformer_forward.29} parent=0 // pred_region
    _
  $region25: #{transformer_forward.29} parent=0 // pred_fallthru
    _

// kernel: transformer_forward.28
$region0: #{transformer_forward.28}
  #allocation0 [shape = 'u32[]', space=smem, size = 0x4, offset = 0x4, fixed_abs, tag = 'smem constant byte address 0x4 - core index']
  #allocation1 [shape = 'u32[72,128]{1,0:T(1,128)}', space=vmem, size = 0x9000, scoped, tag = 'internal scratch']
  %s0 = inlined_call_operand.vmem [shape: f32[2,8,256], index: 0, kind: input, shape index: {}]
  %s1 = inlined_call_operand.vmem [shape: s32[2,1,8], index: 1, kind: input, shape index: {}]
  %s2 = inlined_call_operand.vmem [shape: f32[2,8,64], index: 2, kind: output, shape index: {}]
  %s3 = sld [smem:[#allocation0]]
  $region41: #{transformer_forward.28} parent=0
    _
  %s5 = ssub.s32 1, %s3
  %s6 = scalar_select 0, %s5, %s3
  loop: start=0, step=1, limit=4
  $region2: #{transformer_forward.28} parent=0 // loop_pre_header
    _
  $region3: #{transformer_forward.28} parent=0 // loop_header
    %s8 = sphi 0, %s12
    %p9 = scmp.ge.s32.totalorder %s8, 4
    %s18 = sphi 0, %s20
    %s21 = sphi 0, %s18
    %s22 = sphi 0, %s21
    %s38 = sphi 0, %s22
    %s44 = sphi 0, %s46
    %s47 = sphi 0, %s44
    %s48 = sphi 0, %s47
    %s64 = sphi 0, %s48
    %s70 = sphi 0, %s72
    %s73 = sphi 0, %s70
    %s74 = sphi 0, %s73
    %s90 = sphi 0, %s74
  $region4: #{transformer_forward.28} parent=0 // loop_header_branch
    %11 = sbr.rel (%p9) target = $region8
  $region5: #{transformer_forward.28} parent=0 // loop_body
    %s13 = ssub.s32 %s8, 1
    %s14 = ssub.s32 %s8, 2
    %s15 = sadd.s32 %s8, 1
    %s16 = ssub.s32 %s8, %s15
    %p17 = scmp.eq.s32.totalorder %s16, 0
    %s19 = sadd.s32 %s18, 1
    %s20 = scalar_select %p17, %s18, %s19
    %p23 = pneg %p17
    %p24 = scmp.eq.s32.totalorder %s8, 1
    %p25 = por %p23, %p24
    %p26 = scmp.ne.s32.totalorder %s18, %s21
    %p27 = scmp.eq.s32.totalorder %s8, 0
    %p28 = por %p26, %p27
    %p29 = scmp.ne.s32.totalorder %s18, %s21
    %p30 = scmp.eq.s32.totalorder %s13, 1
    %p31 = por %p29, %p30
    %p32 = scmp.ne.s32.totalorder %s21, %s22
    %p33 = scmp.eq.s32.totalorder %s13, 0
    %p34 = por %p32, %p33
    %p35 = scmp.ne.s32.totalorder %s21, %s22
    %p36 = scmp.eq.s32.totalorder %s14, 1
    %p37 = por %p35, %p36
    %p39 = scmp.ne.s32.totalorder %s22, %s38
    %p40 = scmp.eq.s32.totalorder %s14, 0
    %p41 = por %p39, %p40
    %s42 = ssub.s32 %s8, %s15
    %p43 = scmp.eq.s32.totalorder %s42, 0
    %s45 = sadd.s32 %s44, 1
    %s46 = scalar_select %p43, %s44, %s45
    %p49 = pneg %p43
    %p50 = scmp.eq.s32.totalorder %s8, 1
    %p51 = por %p49, %p50
    %p52 = scmp.ne.s32.totalorder %s44, %s47
    %p53 = scmp.eq.s32.totalorder %s8, 0
    %p54 = por %p52, %p53
    %p55 = scmp.ne.s32.totalorder %s44, %s47
    %p56 = scmp.eq.s32.totalorder %s13, 1
    %p57 = por %p55, %p56
    %p58 = scmp.ne.s32.totalorder %s47, %s48
    %p59 = scmp.eq.s32.totalorder %s13, 0
    %p60 = por %p58, %p59
    %p61 = scmp.ne.s32.totalorder %s47, %s48
    %p62 = scmp.eq.s32.totalorder %s14, 1
    %p63 = por %p61, %p62
    %p65 = scmp.ne.s32.totalorder %s48, %s64
    %p66 = scmp.eq.s32.totalorder %s14, 0
    %p67 = por %p65, %p66
    %s68 = ssub.s32 %s8, %s15
    %p69 = scmp.eq.s32.totalorder %s68, 0
    %s71 = sadd.s32 %s70, 1
    %s72 = scalar_select %p69, %s70, %s71
    %p75 = pneg %p69
    %p76 = scmp.eq.s32.totalorder %s8, 1
    %p77 = por %p75, %p76
    %p78 = scmp.ne.s32.totalorder %s70, %s73
    %p79 = scmp.eq.s32.totalorder %s8, 0
    %p80 = por %p78, %p79
    %p81 = scmp.ne.s32.totalorder %s70, %s73
    %p82 = scmp.eq.s32.totalorder %s13, 1
    %p83 = por %p81, %p82
    %p84 = scmp.ne.s32.totalorder %s73, %s74
    %p85 = scmp.eq.s32.totalorder %s13, 0
    %p86 = por %p84, %p85
    %p87 = scmp.ne.s32.totalorder %s73, %s74
    %p88 = scmp.eq.s32.totalorder %s14, 1
    %p89 = por %p87, %p88
    %p91 = scmp.ne.s32.totalorder %s74, %s90
    %p92 = scmp.eq.s32.totalorder %s14, 0
    %p93 = por %p91, %p92
    %p94 = scmp.le.s32.totalorder 1, %s8
    %p95 = scmp.lt.s32.totalorder %s8, 3
    %p96 = pnand %p94, %p95
    %p97 = pneg %p96
    // Predicated region
    $region9: #{transformer_forward.28} parent=5 // pred_check
      _
    $region10: #{transformer_forward.28} parent=5 // pred_check_branch
      %99 = sbr.rel (%p96) target = $region12
    $region11: #{transformer_forward.28} parent=5 // pred_region
      %s100 = ssub.s32 %s8, 1
    $region12: #{transformer_forward.28} parent=5 // pred_fallthru
      _
    %p101 = scmp.lt.s32.totalorder %s8, 2
    // Predicated region
    $region13: #{transformer_forward.28} parent=5 // pred_check
      %p102 = pneg %p101
    $region14: #{transformer_forward.28} parent=5 // pred_check_branch
      %104 = sbr.rel (%p102) target = $region16
    $region15: #{transformer_forward.28} parent=5 // pred_region
      // Predicated region
      $region17: #{transformer_forward.28} parent=15 // pred_check
        %p105 = pneg %p28
      $region18: #{transformer_forward.28} parent=15 // pred_check_branch
        %107 = sbr.rel (%p105) target = $region20
      $region19: #{transformer_forward.28} parent=15 // pred_region
        %p108 = scmp.lt.s32.totalorder %s8, 1
        %s109 = scalar_select %p108, %s8, 1
        %s110 = smul.addr %s109, 2
        %s111 = smul.addr %s110, 8
        %s112 = scalar_lea.vmem %s0, %s111
      $region20: #{transformer_forward.28} parent=15 // pred_fallthru
        _
      // Predicated region
      $region21: #{transformer_forward.28} parent=15 // pred_check
        %p113 = pneg %p54
      $region22: #{transformer_forward.28} parent=15 // pred_check_branch
        %115 = sbr.rel (%p113) target = $region24
      $region23: #{transformer_forward.28} parent=15 // pred_region
        %p116 = scmp.lt.s32.totalorder %s8, 1
        %s117 = scalar_select %p116, %s8, 1
        %s118 = scalar_lea.vmem %s1, %s117
      $region24: #{transformer_forward.28} parent=15 // pred_fallthru
        _
    $region16: #{transformer_forward.28} parent=5 // pred_fallthru
      _
    %p119 = scmp.le.s32.totalorder 1, %s8
    %p120 = scmp.lt.s32.totalorder %s8, 3
    %p121 = pnand %p119, %p120
    %p122 = pneg %p121
    // Predicated region
    $region25: #{transformer_forward.28} parent=5 // pred_check
      _
    $region26: #{transformer_forward.28} parent=5 // pred_check_branch
      %124 = sbr.rel (%p121) target = $region28
    $region27: #{transformer_forward.28} parent=5 // pred_region
      %s125 = ssub.s32 %s8, 1
      %p126 = scmp.lt.s32.totalorder %s13, 1
      %s127 = scalar_select %p126, %s13, 1
      %s128 = smul.addr %s127, 2
      %s129 = smul.addr %s128, 8
      %s130 = scalar_lea.vmem %s0, %s129
      %p131 = pneg %p34
      %p132 = pneg %p31
      %p133 = scmp.lt.s32.totalorder %s13, 1
      %s134 = scalar_select %p133, %s13, 1
      %s135 = scalar_lea.vmem %s1, %s134
      %p136 = pneg %p60
      %p137 = pneg %p57
      %p138 = pneg %p86
      %p139 = pneg %p83
      %p140 = scmp.lt.s32.totalorder %s13, 1
      %s141 = scalar_select %p140, %s13, 1
      %s142 = smul.addr %s141, 8
      %s143 = scalar_lea.vmem %s2, %s142
      %p144 = scmp.lt.s32.totalorder %s13, 1
      %s145 = scalar_select %p144, %s13, 1
      %s146 = smul.addr %s145, 2
      %s147 = smul.addr %s146, 8
      %s148 = scalar_lea.vmem %s0, %s147
      %p149 = scmp.lt.s32.totalorder %s13, 1
      %s150 = scalar_select %p149, %s13, 1
      %s151 = scalar_lea.vmem %s1, %s150
      %p152 = scmp.lt.s32.totalorder %s13, 1
      %s153 = scalar_select %p152, %s13, 1
      %s154 = smul.addr %s153, 8
      %s155 = scalar_lea.vmem %s2, %s154
      %v156 = vld [vmem:[%s148] sm:$0xff]
      %v157 = vld [vmem:[%s148 + $0x8] sm:$0xff]
      %v158 = vld [vmem:[%s151] sm:$0x1]
      %v159 = vlaneseq
      %v160 = vshrl.u32 %v159, 7
      %v161 = vlaneseq
      %v162 = vand.u32 %v161, 127
      %vm163 = vcmp.le.s32.totalorder %v162, %v160
      %vm164 = vcmp.ne.s32.totalorder %v158, 0
      %v165 = vsel %vm164, 1, 0
      %v166 = vperm.slane %v165, 0
      %vm167 = vcmp.eq.s32.totalorder %v166, 1
      %vm168 = vmand %vm163, %vm167
      %170 = vrot.lane.b32.xlu0 %v156, 64
      %v171 = vpop.permute.xlu0 %170
      %vm172 = vcmask 64512
      %v173 = vsel %vm172, %v156, 0
      %v175 = vsel %vm172, %v171, 0
      %177 = vmatpush.xpose.msra.mxu0 0.0
      %178 = vmatpush.xpose.msra.mxu0 0.0
      %179 = vmatpush.xpose.msra.mxu0 0.0
      %180 = vmatpush.xpose.msra.mxu0 0.0
      %181 = vmatpush.xpose.msra.mxu0 0.0
      %182 = vmatpush.xpose.msra.mxu0 0.0
      %183 = vmatpush.xpose.msra.mxu0 0.0
      %184 = vmatpush.xpose.msra.mxu0 0.0
      %185 = vmatpush.xpose.msra.mxu0 0.0
      %186 = vmatpush.xpose.msra.mxu0 0.0
      %187 = vmatpush.xpose.msra.mxu0 0.0
      %188 = vmatpush.xpose.msra.mxu0 0.0
      %189 = vmatpush.xpose.msra.mxu0 0.0
      %190 = vmatpush.xpose.msra.mxu0 0.0
      %191 = vmatpush.xpose.msra.mxu0 0.0
      %192 = vmatpush.xpose.msra.mxu0 %v175
      %193 = vmatmul.f32.gmra.mxu0 %v173
      %v194 = vpop.f32.mrf.mxu0
      %v195 = vadd.f32 0.0, %v194
      %196 = vdwg.mxu0
      %v197 = vmul.f32 %v195, 0.35355338
      %v198 = vsel %vm168, %v197, -1e+09
      %v199 = vsel %vm172, %v198, -inf
      %200 = vmax.xlane.f32.xlu0 %v199
      %v201 = vpop.xlane.xlu0 %200
      %v202 = vsub.f32 %v198, %v201
      %v203 = vmul.f32 %v202, 1.442695
      %v204 = vpow.pop %v203
      %v205 = vsel %vm172, %v204, 0.0
      %206 = vadd.xlane.f32.xlu0 %v205
      %v207 = vpop.xlane.xlu0 %206
      %v208 = vrcp.pop %v207
      %v209 = vmul.f32 %v204, %v208
      %v211 = vsel %vm172, %v209, 0
      %213 = vmatpush.msra.mxu0 0.0
      %214 = vmatpush.msra.mxu0 0.0
      %215 = vmatpush.msra.mxu0 0.0
      %216 = vmatpush.msra.mxu0 0.0
      %217 = vmatpush.msra.mxu0 0.0
      %218 = vmatpush.msra.mxu0 0.0
      %219 = vmatpush.msra.mxu0 0.0
      %220 = vmatpush.msra.mxu0 0.0
      %221 = vmatpush.msra.mxu0 0.0
      %222 = vmatpush.msra.mxu0 0.0
      %223 = vmatpush.msra.mxu0 0.0
      %224 = vmatpush.msra.mxu0 0.0
      %225 = vmatpush.msra.mxu0 0.0
      %226 = vmatpush.msra.mxu0 0.0
      %227 = vmatpush.msra.mxu0 0.0
      %228 = vmatpush.msra.mxu0 %v157
      %229 = vmatmul.f32.gmra.mxu0 %v211
      %v230 = vpop.f32.mrf.mxu0
      %v231 = vadd.f32 0.0, %v230
      %232 = vdwg.mxu0
      %233 = vrot.lane.b32.xlu0 %v156, 120
      %v234 = vpop.permute.xlu0 %233
      %235 = vrot.lane.b32.xlu0 %v156, 56
      %v236 = vpop.permute.xlu0 %235
      %v237 = vsel %vm172, %v234, 0
      %v239 = vsel %vm172, %v236, 0
      %241 = vmatpush.xpose.msra.mxu0 0.0
      %242 = vmatpush.xpose.msra.mxu0 0.0
      %243 = vmatpush.xpose.msra.mxu0 0.0
      %244 = vmatpush.xpose.msra.mxu0 0.0
      %245 = vmatpush.xpose.msra.mxu0 0.0
      %246 = vmatpush.xpose.msra.mxu0 0.0
      %247 = vmatpush.xpose.msra.mxu0 0.0
      %248 = vmatpush.xpose.msra.mxu0 0.0
      %249 = vmatpush.xpose.msra.mxu0 0.0
      %250 = vmatpush.xpose.msra.mxu0 0.0
      %251 = vmatpush.xpose.msra.mxu0 0.0
      %252 = vmatpush.xpose.msra.mxu0 0.0
      %253 = vmatpush.xpose.msra.mxu0 0.0
      %254 = vmatpush.xpose.msra.mxu0 0.0
      %255 = vmatpush.xpose.msra.mxu0 0.0
      %256 = vmatpush.xpose.msra.mxu0 %v239
      %257 = vmatmul.f32.gmra.mxu0 %v237
      %v258 = vpop.f32.mrf.mxu0
      %v259 = vadd.f32 0.0, %v258
      %260 = vdwg.mxu0
      %v261 = vmul.f32 %v259, 0.35355338
      %v262 = vsel %vm168, %v261, -1e+09
      %v263 = vsel %vm172, %v262, -inf
      %264 = vmax.xlane.f32.xlu0 %v263
      %v265 = vpop.xlane.xlu0 %264
      %v266 = vsub.f32 %v262, %v265
      %v267 = vmul.f32 %v266, 1.442695
      %v268 = vpow.pop %v267
      %v269 = vsel %vm172, %v268, 0.0
      %270 = vadd.xlane.f32.xlu0 %v269
      %v271 = vpop.xlane.xlu0 %270
      %v272 = vrcp.pop %v271
      %v273 = vmul.f32 %v268, %v272
      %275 = vrot.lane.b32.xlu0 %v157, 120
      %v276 = vpop.permute.xlu0 %275
      %v279 = vsel %vm172, %v273, 0
      %281 = vmatpush.msra.mxu0 0.0
      %282 = vmatpush.msra.mxu0 0.0
      %283 = vmatpush.msra.mxu0 0.0
      %284 = vmatpush.msra.mxu0 0.0
      %285 = vmatpush.msra.mxu0 0.0
      %286 = vmatpush.msra.mxu0 0.0
      %287 = vmatpush.msra.mxu0 0.0
      %288 = vmatpush.msra.mxu0 0.0
      %289 = vmatpush.msra.mxu0 0.0
      %290 = vmatpush.msra.mxu0 0.0
      %291 = vmatpush.msra.mxu0 0.0
      %292 = vmatpush.msra.mxu0 0.0
      %293 = vmatpush.msra.mxu0 0.0
      %294 = vmatpush.msra.mxu0 0.0
      %295 = vmatpush.msra.mxu0 0.0
      %296 = vmatpush.msra.mxu0 %v276
      %297 = vmatmul.f32.gmra.mxu0 %v279
      %v298 = vpop.f32.mrf.mxu0
      %v299 = vadd.f32 0.0, %v298
      %300 = vdwg.mxu0
      %301 = vrot.lane.b32.xlu0 %v156, 112
      %v302 = vpop.permute.xlu0 %301
      %303 = vrot.lane.b32.xlu0 %v156, 48
      %v304 = vpop.permute.xlu0 %303
      %v305 = vsel %vm172, %v302, 0
      %v307 = vsel %vm172, %v304, 0
      %309 = vmatpush.xpose.msra.mxu0 0.0
      %310 = vmatpush.xpose.msra.mxu0 0.0
      %311 = vmatpush.xpose.msra.mxu0 0.0
      %312 = vmatpush.xpose.msra.mxu0 0.0
      %313 = vmatpush.xpose.msra.mxu0 0.0
      %314 = vmatpush.xpose.msra.mxu0 0.0
      %315 = vmatpush.xpose.msra.mxu0 0.0
      %316 = vmatpush.xpose.msra.mxu0 0.0
      %317 = vmatpush.xpose.msra.mxu0 0.0
      %318 = vmatpush.xpose.msra.mxu0 0.0
      %319 = vmatpush.xpose.msra.mxu0 0.0
      %320 = vmatpush.xpose.msra.mxu0 0.0
      %321 = vmatpush.xpose.msra.mxu0 0.0
      %322 = vmatpush.xpose.msra.mxu0 0.0
      %323 = vmatpush.xpose.msra.mxu0 0.0
      %324 = vmatpush.xpose.msra.mxu0 %v307
      %325 = vmatmul.f32.gmra.mxu0 %v305
      %v326 = vpop.f32.mrf.mxu0
      %v327 = vadd.f32 0.0, %v326
      %328 = vdwg.mxu0
      %v329 = vmul.f32 %v327, 0.35355338
      %v330 = vsel %vm168, %v329, -1e+09
      %v331 = vsel %vm172, %v330, -inf
      %332 = vmax.xlane.f32.xlu0 %v331
      %v333 = vpop.xlane.xlu0 %332
      %v334 = vsub.f32 %v330, %v333
      %v335 = vmul.f32 %v334, 1.442695
      %v336 = vpow.pop %v335
      %v337 = vsel %vm172, %v336, 0.0
      %338 = vadd.xlane.f32.xlu0 %v337
      %v339 = vpop.xlane.xlu0 %338
      %v340 = vrcp.pop %v339
      %v341 = vmul.f32 %v336, %v340
      %342 = vrot.lane.b32.xlu0 %v157, 112
      %v343 = vpop.permute.xlu0 %342
      %v346 = vsel %vm172, %v341, 0
      %348 = vmatpush.msra.mxu0 0.0
      %349 = vmatpush.msra.mxu0 0.0
      %350 = vmatpush.msra.mxu0 0.0
      %351 = vmatpush.msra.mxu0 0.0
      %352 = vmatpush.msra.mxu0 0.0
      %353 = vmatpush.msra.mxu0 0.0
      %354 = vmatpush.msra.mxu0 0.0
      %355 = vmatpush.msra.mxu0 0.0
      %356 = vmatpush.msra.mxu0 0.0
      %357 = vmatpush.msra.mxu0 0.0
      %358 = vmatpush.msra.mxu0 0.0
      %359 = vmatpush.msra.mxu0 0.0
      %360 = vmatpush.msra.mxu0 0.0
      %361 = vmatpush.msra.mxu0 0.0
      %362 = vmatpush.msra.mxu0 0.0
      %363 = vmatpush.msra.mxu0 %v343
      %364 = vmatmul.f32.gmra.mxu0 %v346
      %v365 = vpop.f32.mrf.mxu0
      %v366 = vadd.f32 0.0, %v365
      %367 = vdwg.mxu0
      %368 = vrot.lane.b32.xlu0 %v156, 104
      %v369 = vpop.permute.xlu0 %368
      %370 = vrot.lane.b32.xlu0 %v156, 40
      %v371 = vpop.permute.xlu0 %370
      %v372 = vsel %vm172, %v369, 0
      %v374 = vsel %vm172, %v371, 0
      %376 = vmatpush.xpose.msra.mxu0 0.0
      %377 = vmatpush.xpose.msra.mxu0 0.0
      %378 = vmatpush.xpose.msra.mxu0 0.0
      %379 = vmatpush.xpose.msra.mxu0 0.0
      %380 = vmatpush.xpose.msra.mxu0 0.0
      %381 = vmatpush.xpose.msra.mxu0 0.0
      %382 = vmatpush.xpose.msra.mxu0 0.0
      %383 = vmatpush.xpose.msra.mxu0 0.0
      %384 = vmatpush.xpose.msra.mxu0 0.0
      %385 = vmatpush.xpose.msra.mxu0 0.0
      %386 = vmatpush.xpose.msra.mxu0 0.0
      %387 = vmatpush.xpose.msra.mxu0 0.0
      %388 = vmatpush.xpose.msra.mxu0 0.0
      %389 = vmatpush.xpose.msra.mxu0 0.0
      %390 = vmatpush.xpose.msra.mxu0 0.0
      %391 = vmatpush.xpose.msra.mxu0 %v374
      %392 = vmatmul.f32.gmra.mxu0 %v372
      %v393 = vpop.f32.mrf.mxu0
      %v394 = vadd.f32 0.0, %v393
      %395 = vdwg.mxu0
      %v396 = vmul.f32 %v394, 0.35355338
      %v397 = vsel %vm168, %v396, -1e+09
      %v398 = vsel %vm172, %v397, -inf
      %399 = vmax.xlane.f32.xlu0 %v398
      %v400 = vpop.xlane.xlu0 %399
      %v401 = vsub.f32 %v397, %v400
      %v402 = vmul.f32 %v401, 1.442695
      %v403 = vpow.pop %v402
      %v404 = vsel %vm172, %v403, 0.0
      %405 = vadd.xlane.f32.xlu0 %v404
      %v406 = vpop.xlane.xlu0 %405
      %v407 = vrcp.pop %v406
      %v408 = vmul.f32 %v403, %v407
      %409 = vrot.lane.b32.xlu0 %v157, 104
      %v410 = vpop.permute.xlu0 %409
      %v413 = vsel %vm172, %v408, 0
      %415 = vmatpush.msra.mxu0 0.0
      %416 = vmatpush.msra.mxu0 0.0
      %417 = vmatpush.msra.mxu0 0.0
      %418 = vmatpush.msra.mxu0 0.0
      %419 = vmatpush.msra.mxu0 0.0
      %420 = vmatpush.msra.mxu0 0.0
      %421 = vmatpush.msra.mxu0 0.0
      %422 = vmatpush.msra.mxu0 0.0
      %423 = vmatpush.msra.mxu0 0.0
      %424 = vmatpush.msra.mxu0 0.0
      %425 = vmatpush.msra.mxu0 0.0
      %426 = vmatpush.msra.mxu0 0.0
      %427 = vmatpush.msra.mxu0 0.0
      %428 = vmatpush.msra.mxu0 0.0
      %429 = vmatpush.msra.mxu0 0.0
      %430 = vmatpush.msra.mxu0 %v410
      %431 = vmatmul.f32.gmra.mxu0 %v413
      %v432 = vpop.f32.mrf.mxu0
      %v433 = vadd.f32 0.0, %v432
      %434 = vdwg.mxu0
      %435 = vrot.lane.b32.xlu0 %v156, 96
      %v436 = vpop.permute.xlu0 %435
      %437 = vrot.lane.b32.xlu0 %v156, 32
      %v438 = vpop.permute.xlu0 %437
      %v439 = vsel %vm172, %v436, 0
      %v441 = vsel %vm172, %v438, 0
      %443 = vmatpush.xpose.msra.mxu0 0.0
      %444 = vmatpush.xpose.msra.mxu0 0.0
      %445 = vmatpush.xpose.msra.mxu0 0.0
      %446 = vmatpush.xpose.msra.mxu0 0.0
      %447 = vmatpush.xpose.msra.mxu0 0.0
      %448 = vmatpush.xpose.msra.mxu0 0.0
      %449 = vmatpush.xpose.msra.mxu0 0.0
      %450 = vmatpush.xpose.msra.mxu0 0.0
      %451 = vmatpush.xpose.msra.mxu0 0.0
      %452 = vmatpush.xpose.msra.mxu0 0.0
      %453 = vmatpush.xpose.msra.mxu0 0.0
      %454 = vmatpush.xpose.msra.mxu0 0.0
      %455 = vmatpush.xpose.msra.mxu0 0.0
      %456 = vmatpush.xpose.msra.mxu0 0.0
      %457 = vmatpush.xpose.msra.mxu0 0.0
      %458 = vmatpush.xpose.msra.mxu0 %v441
      %459 = vmatmul.f32.gmra.mxu0 %v439
      %v460 = vpop.f32.mrf.mxu0
      %v461 = vadd.f32 0.0, %v460
      %462 = vdwg.mxu0
      %v463 = vmul.f32 %v461, 0.35355338
      %v464 = vsel %vm168, %v463, -1e+09
      %v465 = vsel %vm172, %v464, -inf
      %466 = vmax.xlane.f32.xlu0 %v465
      %v467 = vpop.xlane.xlu0 %466
      %v468 = vsub.f32 %v464, %v467
      %v469 = vmul.f32 %v468, 1.442695
      %v470 = vpow.pop %v469
      %v471 = vsel %vm172, %v470, 0.0
      %472 = vadd.xlane.f32.xlu0 %v471
      %v473 = vpop.xlane.xlu0 %472
      %v474 = vrcp.pop %v473
      %v475 = vmul.f32 %v470, %v474
      %476 = vrot.lane.b32.xlu0 %v157, 96
      %v477 = vpop.permute.xlu0 %476
      %v480 = vsel %vm172, %v475, 0
      %482 = vmatpush.msra.mxu0 0.0
      %483 = vmatpush.msra.mxu0 0.0
      %484 = vmatpush.msra.mxu0 0.0
      %485 = vmatpush.msra.mxu0 0.0
      %486 = vmatpush.msra.mxu0 0.0
      %487 = vmatpush.msra.mxu0 0.0
      %488 = vmatpush.msra.mxu0 0.0
      %489 = vmatpush.msra.mxu0 0.0
      %490 = vmatpush.msra.mxu0 0.0
      %491 = vmatpush.msra.mxu0 0.0
      %492 = vmatpush.msra.mxu0 0.0
      %493 = vmatpush.msra.mxu0 0.0
      %494 = vmatpush.msra.mxu0 0.0
      %495 = vmatpush.msra.mxu0 0.0
      %496 = vmatpush.msra.mxu0 0.0
      %497 = vmatpush.msra.mxu0 %v477
      %498 = vmatmul.f32.gmra.mxu0 %v480
      %v499 = vpop.f32.mrf.mxu0
      %v500 = vadd.f32 0.0, %v499
      %501 = vdwg.mxu0
      %502 = vrot.lane.b32.xlu0 %v156, 88
      %v503 = vpop.permute.xlu0 %502
      %504 = vrot.lane.b32.xlu0 %v156, 24
      %v505 = vpop.permute.xlu0 %504
      %v506 = vsel %vm172, %v503, 0
      %v508 = vsel %vm172, %v505, 0
      %510 = vmatpush.xpose.msra.mxu0 0.0
      %511 = vmatpush.xpose.msra.mxu0 0.0
      %512 = vmatpush.xpose.msra.mxu0 0.0
      %513 = vmatpush.xpose.msra.mxu0 0.0
      %514 = vmatpush.xpose.msra.mxu0 0.0
      %515 = vmatpush.xpose.msra.mxu0 0.0
      %516 = vmatpush.xpose.msra.mxu0 0.0
      %517 = vmatpush.xpose.msra.mxu0 0.0
      %518 = vmatpush.xpose.msra.mxu0 0.0
      %519 = vmatpush.xpose.msra.mxu0 0.0
      %520 = vmatpush.xpose.msra.mxu0 0.0
      %521 = vmatpush.xpose.msra.mxu0 0.0
      %522 = vmatpush.xpose.msra.mxu0 0.0
      %523 = vmatpush.xpose.msra.mxu0 0.0
      %524 = vmatpush.xpose.msra.mxu0 0.0
      %525 = vmatpush.xpose.msra.mxu0 %v508
      %526 = vmatmul.f32.gmra.mxu0 %v506
      %v527 = vpop.f32.mrf.mxu0
      %v528 = vadd.f32 0.0, %v527
      %529 = vdwg.mxu0
      %v530 = vmul.f32 %v528, 0.35355338
      %v531 = vsel %vm168, %v530, -1e+09
      %v532 = vsel %vm172, %v531, -inf
      %533 = vmax.xlane.f32.xlu0 %v532
      %v534 = vpop.xlane.xlu0 %533
      %v535 = vsub.f32 %v531, %v534
      %v536 = vmul.f32 %v535, 1.442695
      %v537 = vpow.pop %v536
      %v538 = vsel %vm172, %v537, 0.0
      %539 = vadd.xlane.f32.xlu0 %v538
      %v540 = vpop.xlane.xlu0 %539
      %v541 = vrcp.pop %v540
      %v542 = vmul.f32 %v537, %v541
      %543 = vrot.lane.b32.xlu0 %v157, 88
      %v544 = vpop.permute.xlu0 %543
      %v547 = vsel %vm172, %v542, 0
      %549 = vmatpush.msra.mxu0 0.0
      %550 = vmatpush.msra.mxu0 0.0
      %551 = vmatpush.msra.mxu0 0.0
      %552 = vmatpush.msra.mxu0 0.0
      %553 = vmatpush.msra.mxu0 0.0
      %554 = vmatpush.msra.mxu0 0.0
      %555 = vmatpush.msra.mxu0 0.0
      %556 = vmatpush.msra.mxu0 0.0
      %557 = vmatpush.msra.mxu0 0.0
      %558 = vmatpush.msra.mxu0 0.0
      %559 = vmatpush.msra.mxu0 0.0
      %560 = vmatpush.msra.mxu0 0.0
      %561 = vmatpush.msra.mxu0 0.0
      %562 = vmatpush.msra.mxu0 0.0
      %563 = vmatpush.msra.mxu0 0.0
      %564 = vmatpush.msra.mxu0 %v544
      %565 = vmatmul.f32.gmra.mxu0 %v547
      %v566 = vpop.f32.mrf.mxu0
      %v567 = vadd.f32 0.0, %v566
      %568 = vdwg.mxu0
      %569 = vrot.lane.b32.xlu0 %v156, 80
      %v570 = vpop.permute.xlu0 %569
      %571 = vrot.lane.b32.xlu0 %v156, 16
      %v572 = vpop.permute.xlu0 %571
      %v573 = vsel %vm172, %v570, 0
      %v575 = vsel %vm172, %v572, 0
      %577 = vmatpush.xpose.msra.mxu0 0.0
      %578 = vmatpush.xpose.msra.mxu0 0.0
      %579 = vmatpush.xpose.msra.mxu0 0.0
      %580 = vmatpush.xpose.msra.mxu0 0.0
      %581 = vmatpush.xpose.msra.mxu0 0.0
      %582 = vmatpush.xpose.msra.mxu0 0.0
      %583 = vmatpush.xpose.msra.mxu0 0.0
      %584 = vmatpush.xpose.msra.mxu0 0.0
      %585 = vmatpush.xpose.msra.mxu0 0.0
      %586 = vmatpush.xpose.msra.mxu0 0.0
      %587 = vmatpush.xpose.msra.mxu0 0.0
      %588 = vmatpush.xpose.msra.mxu0 0.0
      %589 = vmatpush.xpose.msra.mxu0 0.0
      %590 = vmatpush.xpose.msra.mxu0 0.0
      %591 = vmatpush.xpose.msra.mxu0 0.0
      %592 = vmatpush.xpose.msra.mxu0 %v575
      %593 = vmatmul.f32.gmra.mxu0 %v573
      %v594 = vpop.f32.mrf.mxu0
      %v595 = vadd.f32 0.0, %v594
      %596 = vdwg.mxu0
      %v597 = vmul.f32 %v595, 0.35355338
      %v598 = vsel %vm168, %v597, -1e+09
      %v599 = vsel %vm172, %v598, -inf
      %600 = vmax.xlane.f32.xlu0 %v599
      %v601 = vpop.xlane.xlu0 %600
      %v602 = vsub.f32 %v598, %v601
      %v603 = vmul.f32 %v602, 1.442695
      %v604 = vpow.pop %v603
      %v605 = vsel %vm172, %v604, 0.0
      %606 = vadd.xlane.f32.xlu0 %v605
      %v607 = vpop.xlane.xlu0 %606
      %v608 = vrcp.pop %v607
      %v609 = vmul.f32 %v604, %v608
      %610 = vrot.lane.b32.xlu0 %v157, 80
      %v611 = vpop.permute.xlu0 %610
      %v614 = vsel %vm172, %v609, 0
      %616 = vmatpush.msra.mxu0 0.0
      %617 = vmatpush.msra.mxu0 0.0
      %618 = vmatpush.msra.mxu0 0.0
      %619 = vmatpush.msra.mxu0 0.0
      %620 = vmatpush.msra.mxu0 0.0
      %621 = vmatpush.msra.mxu0 0.0
      %622 = vmatpush.msra.mxu0 0.0
      %623 = vmatpush.msra.mxu0 0.0
      %624 = vmatpush.msra.mxu0 0.0
      %625 = vmatpush.msra.mxu0 0.0
      %626 = vmatpush.msra.mxu0 0.0
      %627 = vmatpush.msra.mxu0 0.0
      %628 = vmatpush.msra.mxu0 0.0
      %629 = vmatpush.msra.mxu0 0.0
      %630 = vmatpush.msra.mxu0 0.0
      %631 = vmatpush.msra.mxu0 %v611
      %632 = vmatmul.f32.gmra.mxu0 %v614
      %v633 = vpop.f32.mrf.mxu0
      %v634 = vadd.f32 0.0, %v633
      %635 = vdwg.mxu0
      %636 = vrot.lane.b32.xlu0 %v156, 72
      %v637 = vpop.permute.xlu0 %636
      %638 = vrot.lane.b32.xlu0 %v156, 8
      %v639 = vpop.permute.xlu0 %638
      %v640 = vsel %vm172, %v637, 0
      %v642 = vsel %vm172, %v639, 0
      %644 = vmatpush.xpose.msra.mxu0 0.0
      %645 = vmatpush.xpose.msra.mxu0 0.0
      %646 = vmatpush.xpose.msra.mxu0 0.0
      %647 = vmatpush.xpose.msra.mxu0 0.0
      %648 = vmatpush.xpose.msra.mxu0 0.0
      %649 = vmatpush.xpose.msra.mxu0 0.0
      %650 = vmatpush.xpose.msra.mxu0 0.0
      %651 = vmatpush.xpose.msra.mxu0 0.0
      %652 = vmatpush.xpose.msra.mxu0 0.0
      %653 = vmatpush.xpose.msra.mxu0 0.0
      %654 = vmatpush.xpose.msra.mxu0 0.0
      %655 = vmatpush.xpose.msra.mxu0 0.0
      %656 = vmatpush.xpose.msra.mxu0 0.0
      %657 = vmatpush.xpose.msra.mxu0 0.0
      %658 = vmatpush.xpose.msra.mxu0 0.0
      %659 = vmatpush.xpose.msra.mxu0 %v642
      %660 = vmatmul.f32.gmra.mxu0 %v640
      %v661 = vpop.f32.mrf.mxu0
      %v662 = vadd.f32 0.0, %v661
      %663 = vdwg.mxu0
      %v664 = vmul.f32 %v662, 0.35355338
      %v665 = vsel %vm168, %v664, -1e+09
      %v666 = vsel %vm172, %v665, -inf
      %667 = vmax.xlane.f32.xlu0 %v666
      %v668 = vpop.xlane.xlu0 %667
      %v669 = vsub.f32 %v665, %v668
      %v670 = vmul.f32 %v669, 1.442695
      %v671 = vpow.pop %v670
      %v672 = vsel %vm172, %v671, 0.0
      %673 = vadd.xlane.f32.xlu0 %v672
      %v674 = vpop.xlane.xlu0 %673
      %v675 = vrcp.pop %v674
      %v676 = vmul.f32 %v671, %v675
      %677 = vrot.lane.b32.xlu0 %v157, 72
      %v678 = vpop.permute.xlu0 %677
      %v681 = vsel %vm172, %v676, 0
      %683 = vmatpush.msra.mxu0 0.0
      %684 = vmatpush.msra.mxu0 0.0
      %685 = vmatpush.msra.mxu0 0.0
      %686 = vmatpush.msra.mxu0 0.0
      %687 = vmatpush.msra.mxu0 0.0
      %688 = vmatpush.msra.mxu0 0.0
      %689 = vmatpush.msra.mxu0 0.0
      %690 = vmatpush.msra.mxu0 0.0
      %691 = vmatpush.msra.mxu0 0.0
      %692 = vmatpush.msra.mxu0 0.0
      %693 = vmatpush.msra.mxu0 0.0
      %694 = vmatpush.msra.mxu0 0.0
      %695 = vmatpush.msra.mxu0 0.0
      %696 = vmatpush.msra.mxu0 0.0
      %697 = vmatpush.msra.mxu0 0.0
      %698 = vmatpush.msra.mxu0 %v678
      %699 = vmatmul.f32.gmra.mxu0 %v681
      %v700 = vpop.f32.mrf.mxu0
      %v701 = vadd.f32 0.0, %v700
      %702 = vdwg.mxu0
      %704 = vrot.lane.b32.xlu0 %v299, 8
      %v705 = vpop.permute.xlu0 %704
      %708 = vrot.lane.b32.xlu0 %v366, 16
      %v709 = vpop.permute.xlu0 %708
      %712 = vrot.lane.b32.xlu0 %v433, 24
      %v713 = vpop.permute.xlu0 %712
      %716 = vrot.lane.b32.xlu0 %v500, 32
      %v717 = vpop.permute.xlu0 %716
      %720 = vrot.lane.b32.xlu0 %v567, 40
      %v721 = vpop.permute.xlu0 %720
      %724 = vrot.lane.b32.xlu0 %v634, 48
      %v725 = vpop.permute.xlu0 %724
      %728 = vrot.lane.b32.xlu0 %v701, 56
      %v729 = vpop.permute.xlu0 %728
      %v731 = vsel %vm172, %v231, %v705
      %vm732 = vcmask 130048
      %v733 = vsel %vm732, %v731, %v709
      %vm734 = vcmask 195584
      %v735 = vsel %vm734, %v733, %v713
      %vm736 = vcmask 261120
      %v737 = vsel %vm736, %v735, %v717
      %vm738 = vcmask 326656
      %v739 = vsel %vm738, %v737, %v721
      %vm740 = vcmask 392192
      %v741 = vsel %vm740, %v739, %v725
      %vm742 = vcmask 457728
      %v743 = vsel %vm742, %v741, %v729
      %vm744 = vcmask 523264
      %745 = vst.msk [vmem:[%s155] sm:$0xff] %vm744, %v743
      %p746 = scmp.lt.s32.totalorder %s13, 1
      %s747 = scalar_select %p746, %s13, 1
      %s748 = smul.addr %s747, 8
      %s749 = scalar_lea.vmem %s2, %s748
      // Predicated region
      $region29: #{transformer_forward.28} parent=27 // pred_check
        %p750 = pneg %p83
      $region30: #{transformer_forward.28} parent=27 // pred_check_branch
        %752 = sbr.rel (%p750) target = $region32
      $region31: #{transformer_forward.28} parent=27 // pred_region
        _
      $region32: #{transformer_forward.28} parent=27 // pred_fallthru
        _
    $region28: #{transformer_forward.28} parent=5 // pred_fallthru
      _
    %p753 = scmp.le.s32.totalorder 2, %s8
    // Predicated region
    $region33: #{transformer_forward.28} parent=5 // pred_check
      %p754 = pneg %p753
    $region34: #{transformer_forward.28} parent=5 // pred_check_branch
      %756 = sbr.rel (%p754) target = $region36
    $region35: #{transformer_forward.28} parent=5 // pred_region
      %s757 = ssub.s32 %s8, 2
      // Predicated region
      $region37: #{transformer_forward.28} parent=35 // pred_check
        %p758 = pneg %p89
      $region38: #{transformer_forward.28} parent=35 // pred_check_branch
        %760 = sbr.rel (%p758) target = $region40
      $region39: #{transformer_forward.28} parent=35 // pred_region
        %p761 = scmp.lt.s32.totalorder %s14, 1
        %s762 = scalar_select %p761, %s14, 1
        %s763 = smul.addr %s762, 8
        %s764 = scalar_lea.vmem %s2, %s763
      $region40: #{transformer_forward.28} parent=35 // pred_fallthru
        _
    $region36: #{transformer_forward.28} parent=5 // pred_fallthru
      _
  $region6: #{transformer_forward.28} parent=0 // loop_footer
    %s12 = sadd.s32 1, %s8
  $region7: #{transformer_forward.28} parent=0 // loop_footer_branch
    %7 = sbr.rel target = $region3
  $region8: #{transformer_forward.28} parent=0 // loop_exit
    _

// kernel: transformer_forward.27
$region0: #{transformer_forward.27}
  #allocation0 [shape = 'u32[]', space=smem, size = 0x4, offset = 0x4, fixed_abs, tag = 'smem constant byte address 0x4 - core index']
  #allocation1 [shape = 'u32[72,128]{1,0:T(1,128)}', space=vmem, size = 0x9000, scoped, tag = 'internal scratch']
  %s0 = inlined_call_operand.vmem [shape: f32[16,64], index: 0, kind: input, shape index: {}]
  %s1 = inlined_call_operand.vmem [shape: f32[64,256], index: 1, kind: input, shape index: {}]
  %s2 = inlined_call_operand.vmem [shape: f32[1,256], index: 2, kind: input, shape index: {}]
  %s3 = inlined_call_operand.vmem [shape: f32[1,64], index: 3, kind: input, shape index: {}]
  %s4 = inlined_call_operand.vmem [shape: f32[1,64], index: 4, kind: input, shape index: {}]
  %s5 = inlined_call_operand.vmem [shape: f32[16,256], index: 5, kind: output, shape index: {}]
  %s6 = sld [smem:[#allocation0]]
  $region125: #{transformer_forward.27} parent=0
    _
  %s8 = ssub.s32 1, %s6
  %s9 = scalar_select 0, %s8, %s6
  $region1: #{transformer_forward.27} parent=0
    #allocation2 [shape = 'u8[65536]{0}', space=vmem, size = 0x10000, scoped, tag = 'input window, operand 1']
    #allocation3 [shape = 'u8[16384]{0}', space=vmem, size = 0x4000, scoped, tag = 'output window, operand 0']
    loop: start=0, step=1, limit=4
    $region2: #{transformer_forward.27} parent=1 // loop_pre_header
      _
    $region3: #{transformer_forward.27} parent=1 // loop_header
      %s11 = sphi 0, %s15
      %p12 = scmp.ge.s32.totalorder %s11, 4
      %s18 = sphi 0, %s30
      %s19 = sphi 0, %s26
      %s20 = sphi 0, %s18
      %s21 = sphi 0, %s19
      %s22 = sphi 0, %s20
      %s23 = sphi 0, %s21
      %s33 = sphi 0, %s35
      %s36 = sphi 0, %s33
      %s37 = sphi 0, %s36
      %s53 = sphi 0, %s37
      %s59 = sphi 0, %s61
      %s62 = sphi 0, %s59
      %s63 = sphi 0, %s62
      %s79 = sphi 0, %s63
      %s85 = sphi 0, %s87
      %s88 = sphi 0, %s85
      %s89 = sphi 0, %s88
      %s105 = sphi 0, %s89
      %s109 = sphi 0, %s109
      %s111 = sphi 0, %s109
      %s112 = sphi 0, %s111
      %s126 = sphi 0, %s112
      %s130 = sphi 0, %s130
      %s132 = sphi 0, %s130
      %s133 = sphi 0, %s132
      %s147 = sphi 0, %s133
      %s155 = sphi 0, %s157
      %s158 = sphi 0, %s155
      %s159 = sphi 0, %s158
      %s175 = sphi 0, %s159
    $region4: #{transformer_forward.27} parent=1 // loop_header_branch
      %14 = sbr.rel (%p12) target = $region8
    $region5: #{transformer_forward.27} parent=1 // loop_body
      %s16 = ssub.s32 %s11, 1
      %s17 = ssub.s32 %s11, 2
      %s24 = sadd.s32 1, %s19
      %p25 = scmp.ge.s32.totalorder %s24, 2
      %s26 = scalar_select %p25, 0, %s24
      %s27 = sadd.s32 1, %s18
      %s28 = scalar_select %p25, %s27, %s18
      %p29 = scmp.ge.s32.totalorder %s28, 1
      %s30 = scalar_select %p29, 0, %s28
      %s31 = ssub.s32 %s18, %s30
      %p32 = scmp.eq.s32.totalorder %s31, 0
      %s34 = sadd.s32 %s33, 1
      %s35 = scalar_select %p32, %s33, %s34
      %p38 = pneg %p32
      %p39 = scmp.eq.s32.totalorder %s11, 1
      %p40 = por %p38, %p39
      %p41 = scmp.ne.s32.totalorder %s33, %s36
      %p42 = scmp.eq.s32.totalorder %s11, 0
      %p43 = por %p41, %p42
      %p44 = scmp.ne.s32.totalorder %s33, %s36
      %p45 = scmp.eq.s32.totalorder %s16, 1
      %p46 = por %p44, %p45
      %p47 = scmp.ne.s32.totalorder %s36, %s37
      %p48 = scmp.eq.s32.totalorder %s16, 0
      %p49 = por %p47, %p48
      %p50 = scmp.ne.s32.totalorder %s36, %s37
      %p51 = scmp.eq.s32.totalorder %s17, 1
      %p52 = por %p50, %p51
      %p54 = scmp.ne.s32.totalorder %s37, %s53
      %p55 = scmp.eq.s32.totalorder %s17, 0
      %p56 = por %p54, %p55
      %s57 = ssub.s32 %s19, %s26
      %p58 = scmp.eq.s32.totalorder %s57, 0
      %s60 = sadd.s32 %s59, 1
      %s61 = scalar_select %p58, %s59, %s60
      %p64 = pneg %p58
      %p65 = scmp.eq.s32.totalorder %s11, 1
      %p66 = por %p64, %p65
      %p67 = scmp.ne.s32.totalorder %s59, %s62
      %p68 = scmp.eq.s32.totalorder %s11, 0
      %p69 = por %p67, %p68
      %p70 = scmp.ne.s32.totalorder %s59, %s62
      %p71 = scmp.eq.s32.totalorder %s16, 1
      %p72 = por %p70, %p71
      %p73 = scmp.ne.s32.totalorder %s62, %s63
      %p74 = scmp.eq.s32.totalorder %s16, 0
      %p75 = por %p73, %p74
      %p76 = scmp.ne.s32.totalorder %s62, %s63
      %p77 = scmp.eq.s32.totalorder %s17, 1
      %p78 = por %p76, %p77
      %p80 = scmp.ne.s32.totalorder %s63, %s79
      %p81 = scmp.eq.s32.totalorder %s17, 0
      %p82 = por %p80, %p81
      %s83 = ssub.s32 %s19, %s26
      %p84 = scmp.eq.s32.totalorder %s83, 0
      %s86 = sadd.s32 %s85, 1
      %s87 = scalar_select %p84, %s85, %s86
      %p90 = pneg %p84
      %p91 = scmp.eq.s32.totalorder %s11, 1
      %p92 = por %p90, %p91
      %p93 = scmp.ne.s32.totalorder %s85, %s88
      %p94 = scmp.eq.s32.totalorder %s11, 0
      %p95 = por %p93, %p94
      %p96 = scmp.ne.s32.totalorder %s85, %s88
      %p97 = scmp.eq.s32.totalorder %s16, 1
      %p98 = por %p96, %p97
      %p99 = scmp.ne.s32.totalorder %s88, %s89
      %p100 = scmp.eq.s32.totalorder %s16, 0
      %p101 = por %p99, %p100
      %p102 = scmp.ne.s32.totalorder %s88, %s89
      %p103 = scmp.eq.s32.totalorder %s17, 1
      %p104 = por %p102, %p103
      %p106 = scmp.ne.s32.totalorder %s89, %s105
      %p107 = scmp.eq.s32.totalorder %s17, 0
      %p108 = por %p106, %p107
      %s110 = sadd.s32 %s109, 1
      %p113 = scmp.eq.s32.totalorder %s11, 1
      %p114 = scmp.ne.s32.totalorder %s109, %s111
      %p115 = scmp.eq.s32.totalorder %s11, 0
      %p116 = por %p114, %p115
      %p117 = scmp.ne.s32.totalorder %s109, %s111
      %p118 = scmp.eq.s32.totalorder %s16, 1
      %p119 = por %p117, %p118
      %p120 = scmp.ne.s32.totalorder %s111, %s112
      %p121 = scmp.eq.s32.totalorder %s16, 0
      %p122 = por %p120, %p121
      %p123 = scmp.ne.s32.totalorder %s111, %s112
      %p124 = scmp.eq.s32.totalorder %s17, 1
      %p125 = por %p123, %p124
      %p127 = scmp.ne.s32.totalorder %s112, %s126
      %p128 = scmp.eq.s32.totalorder %s17, 0
      %p129 = por %p127, %p128
      %s131 = sadd.s32 %s130, 1
      %p134 = scmp.eq.s32.totalorder %s11, 1
      %p135 = scmp.ne.s32.totalorder %s130, %s132
      %p136 = scmp.eq.s32.totalorder %s11, 0
      %p137 = por %p135, %p136
      %p138 = scmp.ne.s32.totalorder %s130, %s132
      %p139 = scmp.eq.s32.totalorder %s16, 1
      %p140 = por %p138, %p139
      %p141 = scmp.ne.s32.totalorder %s132, %s133
      %p142 = scmp.eq.s32.totalorder %s16, 0
      %p143 = por %p141, %p142
      %p144 = scmp.ne.s32.totalorder %s132, %s133
      %p145 = scmp.eq.s32.totalorder %s17, 1
      %p146 = por %p144, %p145
      %p148 = scmp.ne.s32.totalorder %s133, %s147
      %p149 = scmp.eq.s32.totalorder %s17, 0
      %p150 = por %p148, %p149
      %s151 = ssub.s32 %s18, %s30
      %s152 = ssub.s32 %s19, %s26
      %s153 = sor.u32 %s151, %s152
      %p154 = scmp.eq.s32.totalorder %s153, 0
      %s156 = sadd.s32 %s155, 1
      %s157 = scalar_select %p154, %s155, %s156
      %p160 = pneg %p154
      %p161 = scmp.eq.s32.totalorder %s11, 1
      %p162 = por %p160, %p161
      %p163 = scmp.ne.s32.totalorder %s155, %s158
      %p164 = scmp.eq.s32.totalorder %s11, 0
      %p165 = por %p163, %p164
      %p166 = scmp.ne.s32.totalorder %s155, %s158
      %p167 = scmp.eq.s32.totalorder %s16, 1
      %p168 = por %p166, %p167
      %p169 = scmp.ne.s32.totalorder %s158, %s159
      %p170 = scmp.eq.s32.totalorder %s16, 0
      %p171 = por %p169, %p170
      %p172 = scmp.ne.s32.totalorder %s158, %s159
      %p173 = scmp.eq.s32.totalorder %s17, 1
      %p174 = por %p172, %p173
      %p176 = scmp.ne.s32.totalorder %s159, %s175
      %p177 = scmp.eq.s32.totalorder %s17, 0
      %p178 = por %p176, %p177
      %p179 = scmp.le.s32.totalorder 1, %s11
      %p180 = scmp.lt.s32.totalorder %s11, 3
      %p181 = pnand %p179, %p180
      %p182 = pneg %p181
      // Predicated region
      $region9: #{transformer_forward.27} parent=5 // pred_check
        _
      $region10: #{transformer_forward.27} parent=5 // pred_check_branch
        %184 = sbr.rel (%p181) target = $region12
      $region11: #{transformer_forward.27} parent=5 // pred_region
        %s185 = ssub.s32 %s11, 1
        // Predicated region
        $region13: #{transformer_forward.27} parent=11 // pred_check
          %p186 = pneg %p49
        $region14: #{transformer_forward.27} parent=11 // pred_check_branch
          %188 = sbr.rel (%p186) target = $region16
        $region15: #{transformer_forward.27} parent=11 // pred_region
          %s189 = smul.u32 2, %s20
          %p190 = scmp.lt.s32.totalorder %s189, 1
          %s191 = scalar_select %p190, %s189, 1
          %s192 = smul.addr %s191, 8
          %s193 = scalar_lea.vmem %s0, %s192
          %s194 = smul.u32 2, %s20
        $region16: #{transformer_forward.27} parent=11 // pred_fallthru
          _
        // Predicated region
        $region17: #{transformer_forward.27} parent=11 // pred_check
          %p195 = pneg %p122
        $region18: #{transformer_forward.27} parent=11 // pred_check_branch
          %197 = sbr.rel (%p195) target = $region20
        $region19: #{transformer_forward.27} parent=11 // pred_region
          _
        $region20: #{transformer_forward.27} parent=11 // pred_fallthru
          _
        // Predicated region
        $region21: #{transformer_forward.27} parent=11 // pred_check
          %p198 = pneg %p143
        $region22: #{transformer_forward.27} parent=11 // pred_check_branch
          %200 = sbr.rel (%p198) target = $region24
        $region23: #{transformer_forward.27} parent=11 // pred_region
          _
        $region24: #{transformer_forward.27} parent=11 // pred_fallthru
          _
      $region12: #{transformer_forward.27} parent=5 // pred_fallthru
        _
      %p201 = scmp.lt.s32.totalorder %s11, 2
      // Predicated region
      $region25: #{transformer_forward.27} parent=5 // pred_check
        %p202 = pneg %p201
      $region26: #{transformer_forward.27} parent=5 // pred_check_branch
        %204 = sbr.rel (%p202) target = $region28
      $region27: #{transformer_forward.27} parent=5 // pred_region
        // Predicated region
        $region29: #{transformer_forward.27} parent=27 // pred_check
          %p205 = pneg %p69
        $region30: #{transformer_forward.27} parent=27 // pred_check_branch
          %207 = sbr.rel (%p205) target = $region32
        $region31: #{transformer_forward.27} parent=27 // pred_region
          %s208 = sand.u32 %s59, 1
          %s209 = sand.u32 %s59, 1
          %s210 = smul.addr %s209, 64
          %s211 = scalar_lea.vmem [#allocation2], %s210
          %s212 = smul.addr %s19, 8
          %s213 = scalar_lea.vmem %s1, %s212
          // Predicated region
          $region33: #{transformer_forward.27} parent=31 // pred_check
            _
          $region34: #{transformer_forward.27} parent=31 // pred_check_branch
            %215 = sbr.rel (0) target = $region36
          $region35: #{transformer_forward.27} parent=31 // pred_region
            // Predicated region
            $region37: #{transformer_forward.27} parent=35 // pred_check
              _
            $region38: #{transformer_forward.27} parent=35 // pred_check_branch
              %217 = sbr.rel (0) target = $region40
            $region39: #{transformer_forward.27} parent=35 // pred_region
              // Predicated region
              $region52: #{transformer_forward.27} parent=39 // pred_check
                _
              $region53: #{transformer_forward.27} parent=39 // pred_check_branch
                %247 = sbr.rel (0) target = $region55
              $region54: #{transformer_forward.27} parent=39 // pred_region
                loop: start=0, step=1, limit=1
                $region56: #{transformer_forward.27} parent=54 // loop_pre_header
                  _
                $region57: #{transformer_forward.27} parent=54 // loop_header
                  %s249 = sphi 0, %s253
                  %p250 = scmp.ge.s32.totalorder %s249, 1
                  %s254 = sphi %s213, %s213
                  %s255 = sphi %s211, %s211
                $region58: #{transformer_forward.27} parent=54 // loop_header_branch
                  %252 = sbr.rel (%p250) target = $region62
                $region59: #{transformer_forward.27} parent=54 // loop_body
                  %v256 = vld [vmem:[%s254] sm:$0xff]
                  %257 = vst [vmem:[%s255] sm:$0xff] %v256
                  %v258 = vld [vmem:[%s254 + $0x10] sm:$0xff]
                  %259 = vst [vmem:[%s255 + $0x8] sm:$0xff] %v258
                  %v260 = vld [vmem:[%s254 + $0x20] sm:$0xff]
                  %261 = vst [vmem:[%s255 + $0x10] sm:$0xff] %v260
                  %v262 = vld [vmem:[%s254 + $0x30] sm:$0xff]
                  %263 = vst [vmem:[%s255 + $0x18] sm:$0xff] %v262
                  %v264 = vld [vmem:[%s254 + $0x40] sm:$0xff]
                  %265 = vst [vmem:[%s255 + $0x20] sm:$0xff] %v264
                  %v266 = vld [vmem:[%s254 + $0x50] sm:$0xff]
                  %267 = vst [vmem:[%s255 + $0x28] sm:$0xff] %v266
                  %v268 = vld [vmem:[%s254 + $0x60] sm:$0xff]
                  %269 = vst [vmem:[%s255 + $0x30] sm:$0xff] %v268
                  %v270 = vld [vmem:[%s254 + $0x70] sm:$0xff]
                  %271 = vst [vmem:[%s255 + $0x38] sm:$0xff] %v270
                $region60: #{transformer_forward.27} parent=54 // loop_footer
                  %s253 = sadd.s32 1, %s249
                $region61: #{transformer_forward.27} parent=54 // loop_footer_branch
                  %248 = sbr.rel target = $region57
                $region62: #{transformer_forward.27} parent=54 // loop_exit
                  _
              $region55: #{transformer_forward.27} parent=39 // pred_fallthru
                _
              // Predicated region
              $region63: #{transformer_forward.27} parent=39 // pred_check
                _
              $region64: #{transformer_forward.27} parent=39 // pred_check_branch
                %273 = sbr.rel target = $region66
              $region65: #{transformer_forward.27} parent=39 // pred_region
                _
              $region66: #{transformer_forward.27} parent=39 // pred_fallthru
                _
            $region40: #{transformer_forward.27} parent=35 // pred_fallthru
              _
            // Predicated region
            $region41: #{transformer_forward.27} parent=35 // pred_check
              _
            $region42: #{transformer_forward.27} parent=35 // pred_check_branch
              %219 = sbr.rel target = $region44
            $region43: #{transformer_forward.27} parent=35 // pred_region
              %s221 = ssub.s32 256, 1
              loop: start=0, step=1, limit=1
              $region45: #{transformer_forward.27} parent=43 // loop_pre_header
                _
              $region46: #{transformer_forward.27} parent=43 // loop_header
                %s223 = sphi 0, %s227
                %p224 = scmp.ge.s32.totalorder %s223, 1
                %s228 = sphi %s213, %s213
                %s229 = sphi %s211, %s211
              $region47: #{transformer_forward.27} parent=43 // loop_header_branch
                %226 = sbr.rel (%p224) target = $region51
              $region48: #{transformer_forward.27} parent=43 // loop_body
                %v230 = vld [vmem:[%s228] sm:%s221]
                %231 = vst [vmem:[%s229] sm:%s221] %v230
                %v232 = vld [vmem:[%s228 + $0x10] sm:%s221]
                %233 = vst [vmem:[%s229 + $0x8] sm:%s221] %v232
                %v234 = vld [vmem:[%s228 + $0x20] sm:%s221]
                %235 = vst [vmem:[%s229 + $0x10] sm:%s221] %v234
                %v236 = vld [vmem:[%s228 + $0x30] sm:%s221]
                %237 = vst [vmem:[%s229 + $0x18] sm:%s221] %v236
                %v238 = vld [vmem:[%s228 + $0x40] sm:%s221]
                %239 = vst [vmem:[%s229 + $0x20] sm:%s221] %v238
                %v240 = vld [vmem:[%s228 + $0x50] sm:%s221]
                %241 = vst [vmem:[%s229 + $0x28] sm:%s221] %v240
                %v242 = vld [vmem:[%s228 + $0x60] sm:%s221]
                %243 = vst [vmem:[%s229 + $0x30] sm:%s221] %v242
                %v244 = vld [vmem:[%s228 + $0x70] sm:%s221]
                %245 = vst [vmem:[%s229 + $0x38] sm:%s221] %v244
              $region49: #{transformer_forward.27} parent=43 // loop_footer
                %s227 = sadd.s32 1, %s223
              $region50: #{transformer_forward.27} parent=43 // loop_footer_branch
                %222 = sbr.rel target = $region46
              $region51: #{transformer_forward.27} parent=43 // loop_exit
                _
            $region44: #{transformer_forward.27} parent=35 // pred_fallthru
              _
          $region36: #{transformer_forward.27} parent=31 // pred_fallthru
            _
          %274 = vnop
        $region32: #{transformer_forward.27} parent=27 // pred_fallthru
          _
        // Predicated region
        $region67: #{transformer_forward.27} parent=27 // pred_check
          %p275 = pneg %p95
        $region68: #{transformer_forward.27} parent=27 // pred_check_branch
          %277 = sbr.rel (%p275) target = $region70
        $region69: #{transformer_forward.27} parent=27 // pred_region
          %p278 = scmp.lt.s32.totalorder %s19, 1
          %s279 = scalar_select %p278, %s19, 1
          %s280 = scalar_lea.vmem %s2, %s279
        $region70: #{transformer_forward.27} parent=27 // pred_fallthru
          _
      $region28: #{transformer_forward.27} parent=5 // pred_fallthru
        _
      %p281 = scmp.le.s32.totalorder 1, %s11
      %p282 = scmp.lt.s32.totalorder %s11, 3
      %p283 = pnand %p281, %p282
      %p284 = pneg %p283
      // Predicated region
      $region71: #{transformer_forward.27} parent=5 // pred_check
        _
      $region72: #{transformer_forward.27} parent=5 // pred_check_branch
        %286 = sbr.rel (%p283) target = $region74
      $region73: #{transformer_forward.27} parent=5 // pred_region
        %s287 = ssub.s32 %s11, 1
        %s288 = sand.u32 %s62, 1
        %s289 = sand.u32 %s62, 1
        %s290 = smul.addr %s289, 64
        %s291 = scalar_lea.vmem [#allocation2], %s290
        // Predicated region
        $region75: #{transformer_forward.27} parent=73 // pred_check
          %p292 = pneg %p75
        $region76: #{transformer_forward.27} parent=73 // pred_check_branch
          %294 = sbr.rel (%p292) target = $region78
        $region77: #{transformer_forward.27} parent=73 // pred_region
          _
        $region78: #{transformer_forward.27} parent=73 // pred_fallthru
          _
        %s295 = smul.u32 2, %s20
        %p296 = scmp.lt.s32.totalorder %s295, 1
        %s297 = scalar_select %p296, %s295, 1
        %s298 = smul.addr %s297, 8
        %s299 = scalar_lea.vmem %s0, %s298
        %p300 = pneg %p49
        %p301 = pneg %p46
        %s302 = sand.u32 %s62, 1
        %s303 = sand.u32 %s62, 1
        %s304 = smul.addr %s303, 64
        %s305 = scalar_lea.vmem [#allocation2], %s304
        %p306 = pneg %p75
        %p307 = pneg %p72
        %p308 = scmp.lt.s32.totalorder %s21, 1
        %s309 = scalar_select %p308, %s21, 1
        %s310 = scalar_lea.vmem %s2, %s309
        %p311 = pneg %p101
        %p312 = pneg %p98
        %p313 = pneg %p122
        %p314 = pneg %p119
        %p315 = pneg %p143
        %p316 = pneg %p140
        %p317 = pneg %p171
        %p318 = pneg %p168
        %s319 = sand.u32 %s158, 1
        %s320 = sand.u32 %s158, 1
        %s321 = smul.addr %s320, 16
        %s322 = scalar_lea.vmem [#allocation3], %s321
        %s323 = smul.u32 2, %s20
        %p324 = scmp.lt.s32.totalorder %s323, 1
        %s325 = scalar_select %p324, %s323, 1
        %s326 = smul.addr %s325, 8
        %s327 = scalar_lea.vmem %s0, %s326
        %s328 = smul.u32 2, %s20
        %p329 = scmp.lt.s32.totalorder %s21, 1
        %s330 = scalar_select %p329, %s21, 1
        %s331 = scalar_lea.vmem %s2, %s330
        %s332 = smul.u32 2, %s20
        %v333 = vld [vmem:[%s327] sm:$0xff]
        %v334 = vld [vmem:[%s327 + $0x8] sm:$0xff]
        %vm335 = vcmask 523264
        %v336 = vsel %vm335, %v333, 0.0
        %337 = vadd.xlane.f32.xlu0 %v336
        %v338 = vpop.xlane.xlu0 %337
        %v339 = vsel %vm335, %v334, 0.0
        %340 = vadd.xlane.f32.xlu0 %v339
        %v341 = vpop.xlane.xlu0 %340
        %v342 = vrcp.pop 64.0
        %v343 = vmul.f32 64.0, %v342
        %v344 = vsub.f32 1.0, %v343
        %v345 = vmul.f32 %v342, %v344
        %v346 = vadd.f32 %v342, %v345
        %vm347 = vweird.f32 %v342
        %v348 = vsel %vm347, %v342, %v346
        %v349 = vmul.f32 %v338, %v348
        %v350 = vmul.f32 %v341, %v348
        %v351 = vsub.f32 %v333, %v349
        %v352 = vsub.f32 %v334, %v350
        %v353 = vmul.f32 %v351, %v351
        %v354 = vmul.f32 %v352, %v352
        %v355 = vsel %vm335, %v353, 0.0
        %356 = vadd.xlane.f32.xlu0 %v355
        %v357 = vpop.xlane.xlu0 %356
        %v358 = vsel %vm335, %v354, 0.0
        %359 = vadd.xlane.f32.xlu0 %v358
        %v360 = vpop.xlane.xlu0 %359
        %v361 = vrcp.pop 63.0
        %v362 = vmul.f32 63.0, %v361
        %v363 = vsub.f32 1.0, %v362
        %v364 = vmul.f32 %v361, %v363
        %v365 = vadd.f32 %v361, %v364
        %vm366 = vweird.f32 %v361
        %v367 = vsel %vm366, %v361, %v365
        %v368 = vmul.f32 %v357, %v367
        %v369 = vmul.f32 %v360, %v367
        %v370 = vrsqrt.pop %v368
        %v371 = vmul.f32 %v370, %v368
        %v372 = vmul.f32 %v371, %v370
        %v373 = vmul.f32 0.5, %v372
        %v374 = vsub.f32 1.5, %v373
        %v375 = vmul.f32 %v370, %v374
        %v376 = vmul.f32 %v368, %v375
        %vm377 = vcmp.eq.f32.partialorder %v368, inf
        %v378 = vsel %vm377, %v368, %v376
        %vm379 = vcmp.eq.f32.partialorder %v368, 0.0
        %v380 = vand.u32 %v368, 2147483648
        %v381 = vsel %vm379, %v380, %v378
        %v382 = vrsqrt.pop %v369
        %v383 = vmul.f32 %v382, %v369
        %v384 = vmul.f32 %v383, %v382
        %v385 = vmul.f32 0.5, %v384
        %v386 = vsub.f32 1.5, %v385
        %v387 = vmul.f32 %v382, %v386
        %v388 = vmul.f32 %v369, %v387
        %vm389 = vcmp.eq.f32.partialorder %v369, inf
        %v390 = vsel %vm389, %v369, %v388
        %vm391 = vcmp.eq.f32.partialorder %v369, 0.0
        %v392 = vand.u32 %v369, 2147483648
        %v393 = vsel %vm391, %v392, %v390
        %v394 = vadd.f32 %v381, 1e-06
        %v395 = vadd.f32 %v393, 1e-06
        %v396 = vrcp.pop %v394
        %v397 = vrcp.pop %v395
        %v398 = vld [vmem:[%s3] sm:$0x1]
        %v400 = vperm.slane %v398, 0
        %v402 = vmul.f32 %v400, %v351
        %v403 = vmul.f32 %v400, %v352
        %v404 = vmul.f32 %v402, %v396
        %v405 = vmul.f32 %v403, %v397
        %v406 = vld [vmem:[%s4] sm:$0x1]
        %v408 = vperm.slane %v406, 0
        %v410 = vadd.f32 %v404, %v408
        %v411 = vadd.f32 %v405, %v408
        %v412 = vld [vmem:[%s291] sm:$0xff]
        %v413 = vld [vmem:[%s291 + $0x8] sm:$0xff]
        %v414 = vld [vmem:[%s291 + $0x10] sm:$0xff]
        %v415 = vld [vmem:[%s291 + $0x18] sm:$0xff]
        %v416 = vld [vmem:[%s291 + $0x20] sm:$0xff]
        %v417 = vld [vmem:[%s291 + $0x28] sm:$0xff]
        %v418 = vld [vmem:[%s291 + $0x30] sm:$0xff]
        %v419 = vld [vmem:[%s291 + $0x38] sm:$0xff]
        %v420 = vld [vmem:[%s331] sm:$0x1]
        %v422 = vperm.slane %v420, 0
        %v425 = vsel %vm335, %v410, 0
        %v428 = vsel %vm335, %v411, 0
        %430 = vmatpush.msra.mxu0 0.0
        %431 = vmatpush.msra.mxu0 0.0
        %432 = vmatpush.msra.mxu0 0.0
        %433 = vmatpush.msra.mxu0 0.0
        %434 = vmatpush.msra.mxu0 0.0
        %435 = vmatpush.msra.mxu0 0.0
        %436 = vmatpush.msra.mxu0 0.0
        %437 = vmatpush.msra.mxu0 0.0
        %438 = vmatpush.msra.mxu0 %v419
        %439 = vmatpush.msra.mxu0 %v418
        %440 = vmatpush.msra.mxu0 %v417
        %441 = vmatpush.msra.mxu0 %v416
        %442 = vmatpush.msra.mxu0 %v415
        %443 = vmatpush.msra.mxu0 %v414
        %444 = vmatpush.msra.mxu0 %v413
        %445 = vmatpush.msra.mxu0 %v412
        %446 = vmatmul.f32.gmra.mxu0 %v425
        %v447 = vpop.f32.mrf.mxu0
        %v448 = vadd.f32 %v422, %v447
        %449 = vmatmul.f32.gmra.mxu0 %v428
        %v450 = vpop.f32.mrf.mxu0
        %v451 = vadd.f32 %v422, %v450
        %452 = vdwg.mxu0
        %453 = vst [vmem:[%s322] sm:$0xff] %v448
        %454 = vst [vmem:[%s322 + $0x8] sm:$0xff] %v451
        %s455 = sand.u32 %s158, 1
        %s456 = sand.u32 %s158, 1
        %s457 = smul.addr %s456, 16
        %s458 = scalar_lea.vmem [#allocation3], %s457
        // Predicated region
        $region79: #{transformer_forward.27} parent=73 // pred_check
          %p459 = pneg %p168
        $region80: #{transformer_forward.27} parent=73 // pred_check_branch
          %461 = sbr.rel (%p459) target = $region82
        $region81: #{transformer_forward.27} parent=73 // pred_region
          %s462 = smul.u32 2, %s20
          %s463 = smul.addr %s462, 2
          %s464 = sadd.s32 %s21, %s463
          %s465 = smul.addr %s464, 8
          %s466 = scalar_lea.vmem %s5, %s465
          // Predicated region
          $region83: #{transformer_forward.27} parent=81 // pred_check
            _
          $region84: #{transformer_forward.27} parent=81 // pred_check_branch
            %468 = sbr.rel (0) target = $region86
          $region85: #{transformer_forward.27} parent=81 // pred_region
            // Predicated region
            $region87: #{transformer_forward.27} parent=85 // pred_check
              _
            $region88: #{transformer_forward.27} parent=85 // pred_check_branch
              %470 = sbr.rel (0) target = $region90
            $region89: #{transformer_forward.27} parent=85 // pred_region
              // Predicated region
              $region102: #{transformer_forward.27} parent=89 // pred_check
                _
              $region103: #{transformer_forward.27} parent=89 // pred_check_branch
                %488 = sbr.rel (0) target = $region105
              $region104: #{transformer_forward.27} parent=89 // pred_region
                loop: start=0, step=1, limit=1
                $region106: #{transformer_forward.27} parent=104 // loop_pre_header
                  _
                $region107: #{transformer_forward.27} parent=104 // loop_header
                  %s490 = sphi 0, %s494
                  %p491 = scmp.ge.s32.totalorder %s490, 1
                  %s495 = sphi %s458, %s458
                  %s496 = sphi %s466, %s466
                $region108: #{transformer_forward.27} parent=104 // loop_header_branch
                  %493 = sbr.rel (%p491) target = $region112
                $region109: #{transformer_forward.27} parent=104 // loop_body
                  %v497 = vld [vmem:[%s495] sm:$0xff]
                  %498 = vst [vmem:[%s496] sm:$0xff] %v497
                  %v499 = vld [vmem:[%s495 + $0x8] sm:$0xff]
                  %500 = vst [vmem:[%s496 + $0x10] sm:$0xff] %v499
                $region110: #{transformer_forward.27} parent=104 // loop_footer
                  %s494 = sadd.s32 1, %s490
                $region111: #{transformer_forward.27} parent=104 // loop_footer_branch
                  %489 = sbr.rel target = $region107
                $region112: #{transformer_forward.27} parent=104 // loop_exit
                  _
              $region105: #{transformer_forward.27} parent=89 // pred_fallthru
                _
              // Predicated region
              $region113: #{transformer_forward.27} parent=89 // pred_check
                _
              $region114: #{transformer_forward.27} parent=89 // pred_check_branch
                %502 = sbr.rel target = $region116
              $region115: #{transformer_forward.27} parent=89 // pred_region
                _
              $region116: #{transformer_forward.27} parent=89 // pred_fallthru
                _
            $region90: #{transformer_forward.27} parent=85 // pred_fallthru
              _
            // Predicated region
            $region91: #{transformer_forward.27} parent=85 // pred_check
              _
            $region92: #{transformer_forward.27} parent=85 // pred_check_branch
              %472 = sbr.rel target = $region94
            $region93: #{transformer_forward.27} parent=85 // pred_region
              %s474 = ssub.s32 256, 1
              loop: start=0, step=1, limit=1
              $region95: #{transformer_forward.27} parent=93 // loop_pre_header
                _
              $region96: #{transformer_forward.27} parent=93 // loop_header
                %s476 = sphi 0, %s480
                %p477 = scmp.ge.s32.totalorder %s476, 1
                %s481 = sphi %s458, %s458
                %s482 = sphi %s466, %s466
              $region97: #{transformer_forward.27} parent=93 // loop_header_branch
                %479 = sbr.rel (%p477) target = $region101
              $region98: #{transformer_forward.27} parent=93 // loop_body
                %v483 = vld [vmem:[%s481] sm:%s474]
                %484 = vst [vmem:[%s482] sm:%s474] %v483
                %v485 = vld [vmem:[%s481 + $0x8] sm:%s474]
                %486 = vst [vmem:[%s482 + $0x10] sm:%s474] %v485
              $region99: #{transformer_forward.27} parent=93 // loop_footer
                %s480 = sadd.s32 1, %s476
              $region100: #{transformer_forward.27} parent=93 // loop_footer_branch
                %475 = sbr.rel target = $region96
              $region101: #{transformer_forward.27} parent=93 // loop_exit
                _
            $region94: #{transformer_forward.27} parent=85 // pred_fallthru
              _
          $region86: #{transformer_forward.27} parent=81 // pred_fallthru
            _
          %503 = vnop
        $region82: #{transformer_forward.27} parent=73 // pred_fallthru
          _
      $region74: #{transformer_forward.27} parent=5 // pred_fallthru
        _
      %p504 = scmp.le.s32.totalorder 2, %s11
      // Predicated region
      $region117: #{transformer_forward.27} parent=5 // pred_check
        %p505 = pneg %p504
      $region118: #{transformer_forward.27} parent=5 // pred_check_branch
        %507 = sbr.rel (%p505) target = $region120
      $region119: #{transformer_forward.27} parent=5 // pred_region
        %s508 = ssub.s32 %s11, 2
        // Predicated region
        $region121: #{transformer_forward.27} parent=119 // pred_check
          %p509 = pneg %p174
        $region122: #{transformer_forward.27} parent=119 // pred_check_branch
          %511 = sbr.rel (%p509) target = $region124
        $region123: #{transformer_forward.27} parent=119 // pred_region
          %s512 = sand.u32 %s159, 1
          %s513 = sand.u32 %s159, 1
          %s514 = smul.addr %s513, 16
          %s515 = scalar_lea.vmem [#allocation3], %s514
        $region124: #{transformer_forward.27} parent=119 // pred_fallthru
          _
      $region120: #{transformer_forward.27} parent=5 // pred_fallthru
        _
    $region6: #{transformer_forward.27} parent=1 // loop_footer
      %s15 = sadd.s32 1, %s11
    $region7: #{transformer_forward.27} parent=1 // loop_footer_branch
      %10 = sbr.rel target = $region3
    $region8: #{transformer_forward.27} parent=1 // loop_exit
      _

// kernel: transformer_forward.26
$region0: #{transformer_forward.26}
  #allocation0 [shape = 'u32[]', space=smem, size = 0x4, offset = 0x4, fixed_abs, tag = 'smem constant byte address 0x4 - core index']
  #allocation1 [shape = 'u32[72,128]{1,0:T(1,128)}', space=vmem, size = 0x9000, scoped, tag = 'internal scratch']
  %s0 = inlined_call_operand.vmem [shape: f32[2,8,64], index: 0, kind: input, shape index: {}]
  %s1 = inlined_call_operand.vmem [shape: f32[8,64], index: 1, kind: input, shape index: {}]
  %s2 = inlined_call_operand.vmem [shape: f32[2,8,64], index: 2, kind: output, shape index: {}]
  %s3 = sld [smem:[#allocation0]]
  $region41: #{transformer_forward.26} parent=0
    _
  %s5 = ssub.s32 1, %s3
  %s6 = scalar_select 0, %s5, %s3
  loop: start=0, step=1, limit=4
  $region2: #{transformer_forward.26} parent=0 // loop_pre_header
    _
  $region3: #{transformer_forward.26} parent=0 // loop_header
    %s8 = sphi 0, %s12
    %p9 = scmp.ge.s32.totalorder %s8, 4
    %s18 = sphi 0, %s20
    %s21 = sphi 0, %s18
    %s22 = sphi 0, %s21
    %s38 = sphi 0, %s22
    %s42 = sphi 0, %s42
    %s44 = sphi 0, %s42
    %s45 = sphi 0, %s44
    %s59 = sphi 0, %s45
    %s65 = sphi 0, %s67
    %s68 = sphi 0, %s65
    %s69 = sphi 0, %s68
    %s85 = sphi 0, %s69
  $region4: #{transformer_forward.26} parent=0 // loop_header_branch
    %11 = sbr.rel (%p9) target = $region8
  $region5: #{transformer_forward.26} parent=0 // loop_body
    %s13 = ssub.s32 %s8, 1
    %s14 = ssub.s32 %s8, 2
    %s15 = sadd.s32 %s8, 1
    %s16 = ssub.s32 %s8, %s15
    %p17 = scmp.eq.s32.totalorder %s16, 0
    %s19 = sadd.s32 %s18, 1
    %s20 = scalar_select %p17, %s18, %s19
    %p23 = pneg %p17
    %p24 = scmp.eq.s32.totalorder %s8, 1
    %p25 = por %p23, %p24
    %p26 = scmp.ne.s32.totalorder %s18, %s21
    %p27 = scmp.eq.s32.totalorder %s8, 0
    %p28 = por %p26, %p27
    %p29 = scmp.ne.s32.totalorder %s18, %s21
    %p30 = scmp.eq.s32.totalorder %s13, 1
    %p31 = por %p29, %p30
    %p32 = scmp.ne.s32.totalorder %s21, %s22
    %p33 = scmp.eq.s32.totalorder %s13, 0
    %p34 = por %p32, %p33
    %p35 = scmp.ne.s32.totalorder %s21, %s22
    %p36 = scmp.eq.s32.totalorder %s14, 1
    %p37 = por %p35, %p36
    %p39 = scmp.ne.s32.totalorder %s22, %s38
    %p40 = scmp.eq.s32.totalorder %s14, 0
    %p41 = por %p39, %p40
    %s43 = sadd.s32 %s42, 1
    %p46 = scmp.eq.s32.totalorder %s8, 1
    %p47 = scmp.ne.s32.totalorder %s42, %s44
    %p48 = scmp.eq.s32.totalorder %s8, 0
    %p49 = por %p47, %p48
    %p50 = scmp.ne.s32.totalorder %s42, %s44
    %p51 = scmp.eq.s32.totalorder %s13, 1
    %p52 = por %p50, %p51
    %p53 = scmp.ne.s32.totalorder %s44, %s45
    %p54 = scmp.eq.s32.totalorder %s13, 0
    %p55 = por %p53, %p54
    %p56 = scmp.ne.s32.totalorder %s44, %s45
    %p57 = scmp.eq.s32.totalorder %s14, 1
    %p58 = por %p56, %p57
    %p60 = scmp.ne.s32.totalorder %s45, %s59
    %p61 = scmp.eq.s32.totalorder %s14, 0
    %p62 = por %p60, %p61
    %s63 = ssub.s32 %s8, %s15
    %p64 = scmp.eq.s32.totalorder %s63, 0
    %s66 = sadd.s32 %s65, 1
    %s67 = scalar_select %p64, %s65, %s66
    %p70 = pneg %p64
    %p71 = scmp.eq.s32.totalorder %s8, 1
    %p72 = por %p70, %p71
    %p73 = scmp.ne.s32.totalorder %s65, %s68
    %p74 = scmp.eq.s32.totalorder %s8, 0
    %p75 = por %p73, %p74
    %p76 = scmp.ne.s32.totalorder %s65, %s68
    %p77 = scmp.eq.s32.totalorder %s13, 1
    %p78 = por %p76, %p77
    %p79 = scmp.ne.s32.totalorder %s68, %s69
    %p80 = scmp.eq.s32.totalorder %s13, 0
    %p81 = por %p79, %p80
    %p82 = scmp.ne.s32.totalorder %s68, %s69
    %p83 = scmp.eq.s32.totalorder %s14, 1
    %p84 = por %p82, %p83
    %p86 = scmp.ne.s32.totalorder %s69, %s85
    %p87 = scmp.eq.s32.totalorder %s14, 0
    %p88 = por %p86, %p87
    %p89 = scmp.le.s32.totalorder 1, %s8
    %p90 = scmp.lt.s32.totalorder %s8, 3
    %p91 = pnand %p89, %p90
    %p92 = pneg %p91
    // Predicated region
    $region9: #{transformer_forward.26} parent=5 // pred_check
      _
    $region10: #{transformer_forward.26} parent=5 // pred_check_branch
      %94 = sbr.rel (%p91) target = $region12
    $region11: #{transformer_forward.26} parent=5 // pred_region
      %s95 = ssub.s32 %s8, 1
      // Predicated region
      $region13: #{transformer_forward.26} parent=11 // pred_check
        %p96 = pneg %p55
      $region14: #{transformer_forward.26} parent=11 // pred_check_branch
        %98 = sbr.rel (%p96) target = $region16
      $region15: #{transformer_forward.26} parent=11 // pred_region
        _
      $region16: #{transformer_forward.26} parent=11 // pred_fallthru
        _
    $region12: #{transformer_forward.26} parent=5 // pred_fallthru
      _
    %p99 = scmp.lt.s32.totalorder %s8, 2
    // Predicated region
    $region17: #{transformer_forward.26} parent=5 // pred_check
      %p100 = pneg %p99
    $region18: #{transformer_forward.26} parent=5 // pred_check_branch
      %102 = sbr.rel (%p100) target = $region20
    $region19: #{transformer_forward.26} parent=5 // pred_region
      // Predicated region
      $region21: #{transformer_forward.26} parent=19 // pred_check
        %p103 = pneg %p28
      $region22: #{transformer_forward.26} parent=19 // pred_check_branch
        %105 = sbr.rel (%p103) target = $region24
      $region23: #{transformer_forward.26} parent=19 // pred_region
        %p106 = scmp.lt.s32.totalorder %s8, 1
        %s107 = scalar_select %p106, %s8, 1
        %s108 = smul.addr %s107, 8
        %s109 = scalar_lea.vmem %s0, %s108
      $region24: #{transformer_forward.26} parent=19 // pred_fallthru
        _
    $region20: #{transformer_forward.26} parent=5 // pred_fallthru
      _
    %p110 = scmp.le.s32.totalorder 1, %s8
    %p111 = scmp.lt.s32.totalorder %s8, 3
    %p112 = pnand %p110, %p111
    %p113 = pneg %p112
    // Predicated region
    $region25: #{transformer_forward.26} parent=5 // pred_check
      _
    $region26: #{transformer_forward.26} parent=5 // pred_check_branch
      %115 = sbr.rel (%p112) target = $region28
    $region27: #{transformer_forward.26} parent=5 // pred_region
      %s116 = ssub.s32 %s8, 1
      %p117 = scmp.lt.s32.totalorder %s13, 1
      %s118 = scalar_select %p117, %s13, 1
      %s119 = smul.addr %s118, 8
      %s120 = scalar_lea.vmem %s0, %s119
      %p121 = pneg %p34
      %p122 = pneg %p31
      %p123 = pneg %p55
      %p124 = pneg %p52
      %p125 = pneg %p81
      %p126 = pneg %p78
      %p127 = scmp.lt.s32.totalorder %s13, 1
      %s128 = scalar_select %p127, %s13, 1
      %s129 = smul.addr %s128, 8
      %s130 = scalar_lea.vmem %s2, %s129
      %p131 = scmp.lt.s32.totalorder %s13, 1
      %s132 = scalar_select %p131, %s13, 1
      %s133 = smul.addr %s132, 8
      %s134 = scalar_lea.vmem %s0, %s133
      %p135 = scmp.lt.s32.totalorder %s13, 1
      %s136 = scalar_select %p135, %s13, 1
      %s137 = smul.addr %s136, 8
      %s138 = scalar_lea.vmem %s2, %s137
      %v139 = vld [vmem:[%s134] sm:$0xff]
      %v140 = vld [vmem:[%s1] sm:$0xff]
      %v141 = vadd.f32 %v139, %v140
      %vm142 = vcmask 523264
      %143 = vst.msk [vmem:[%s138] sm:$0xff] %vm142, %v141
      %p144 = scmp.lt.s32.totalorder %s13, 1
      %s145 = scalar_select %p144, %s13, 1
      %s146 = smul.addr %s145, 8
      %s147 = scalar_lea.vmem %s2, %s146
      // Predicated region
      $region29: #{transformer_forward.26} parent=27 // pred_check
        %p148 = pneg %p78
      $region30: #{transformer_forward.26} parent=27 // pred_check_branch
        %150 = sbr.rel (%p148) target = $region32
      $region31: #{transformer_forward.26} parent=27 // pred_region
        _
      $region32: #{transformer_forward.26} parent=27 // pred_fallthru
        _
    $region28: #{transformer_forward.26} parent=5 // pred_fallthru
      _
    %p151 = scmp.le.s32.totalorder 2, %s8
    // Predicated region
    $region33: #{transformer_forward.26} parent=5 // pred_check
      %p152 = pneg %p151
    $region34: #{transformer_forward.26} parent=5 // pred_check_branch
      %154 = sbr.rel (%p152) target = $region36
    $region35: #{transformer_forward.26} parent=5 // pred_region
      %s155 = ssub.s32 %s8, 2
      // Predicated region
      $region37: #{transformer_forward.26} parent=35 // pred_check
        %p156 = pneg %p84
      $region38: #{transformer_forward.26} parent=35 // pred_check_branch
        %158 = sbr.rel (%p156) target = $region40
      $region39: #{transformer_forward.26} parent=35 // pred_region
        %p159 = scmp.lt.s32.totalorder %s14, 1
        %s160 = scalar_select %p159, %s14, 1
        %s161 = smul.addr %s160, 8
        %s162 = scalar_lea.vmem %s2, %s161
      $region40: #{transformer_forward.26} parent=35 // pred_fallthru
        _
    $region36: #{transformer_forward.26} parent=5 // pred_fallthru
      _
  $region6: #{transformer_forward.26} parent=0 // loop_footer
    %s12 = sadd.s32 1, %s8
  $region7: #{transformer_forward.26} parent=0 // loop_footer_branch
    %7 = sbr.rel target = $region3
  $region8: #{transformer_forward.26} parent=0 // loop_exit
    _

// kernel: transformer_forward.31
$region0: #{transformer_forward.31}
  #allocation0 [shape = 'u32[]', space=smem, size = 0x4, offset = 0x4, fixed_abs, tag = 'smem constant byte address 0x4 - core index']
  #allocation1 [shape = 'u32[72,128]{1,0:T(1,128)}', space=vmem, size = 0x9000, scoped, tag = 'internal scratch']
  %s0 = inlined_call_operand.vmem [shape: f32[16,64], index: 0, kind: input, shape index: {}]
  %s1 = inlined_call_operand.vmem [shape: f32[64,128], index: 1, kind: input, shape index: {}]
  %s2 = inlined_call_operand.vmem [shape: f32[1,128], index: 2, kind: input, shape index: {}]
  %s3 = inlined_call_operand.vmem [shape: f32[1,64], index: 3, kind: input, shape index: {}]
  %s4 = inlined_call_operand.vmem [shape: f32[1,64], index: 4, kind: input, shape index: {}]
  %s5 = inlined_call_operand.vmem [shape: f32[16,128], index: 5, kind: output, shape index: {}]
  %s6 = sld [smem:[#allocation0]]
  $region30: #{transformer_forward.31} parent=0
    _
  %s8 = ssub.s32 1, %s6
  %s9 = scalar_select 0, %s8, %s6
  // Predicated region
  $region2: #{transformer_forward.31} parent=0 // pred_check
    _
  $region3: #{transformer_forward.31} parent=0 // pred_check_branch
    %11 = sbr.rel (0) target = $region5
  $region4: #{transformer_forward.31} parent=0 // pred_region
    _
  $region5: #{transformer_forward.31} parent=0 // pred_fallthru
    _
  // Predicated region
  $region6: #{transformer_forward.31} parent=0 // pred_check
    _
  $region7: #{transformer_forward.31} parent=0 // pred_check_branch
    %13 = sbr.rel (0) target = $region9
  $region8: #{transformer_forward.31} parent=0 // pred_region
    _
  $region9: #{transformer_forward.31} parent=0 // pred_fallthru
    _
  // Predicated region
  $region10: #{transformer_forward.31} parent=0 // pred_check
    _
  $region11: #{transformer_forward.31} parent=0 // pred_check_branch
    %15 = sbr.rel (0) target = $region13
  $region12: #{transformer_forward.31} parent=0 // pred_region
    _
  $region13: #{transformer_forward.31} parent=0 // pred_fallthru
    _
  // Predicated region
  $region14: #{transformer_forward.31} parent=0 // pred_check
    _
  $region15: #{transformer_forward.31} parent=0 // pred_check_branch
    %17 = sbr.rel (0) target = $region17
  $region16: #{transformer_forward.31} parent=0 // pred_region
    _
  $region17: #{transformer_forward.31} parent=0 // pred_fallthru
    _
  // Predicated region
  $region18: #{transformer_forward.31} parent=0 // pred_check
    _
  $region19: #{transformer_forward.31} parent=0 // pred_check_branch
    %19 = sbr.rel (0) target = $region21
  $region20: #{transformer_forward.31} parent=0 // pred_region
    _
  $region21: #{transformer_forward.31} parent=0 // pred_fallthru
    _
  %v20 = vld [vmem:[%s0] sm:$0xff]
  %v21 = vld [vmem:[%s0 + $0x8] sm:$0xff]
  %vm22 = vcmask 523264
  %v23 = vsel %vm22, %v20, 0.0
  %24 = vadd.xlane.f32.xlu0 %v23
  %v25 = vpop.xlane.xlu0 %24
  %v26 = vsel %vm22, %v21, 0.0
  %27 = vadd.xlane.f32.xlu0 %v26
  %v28 = vpop.xlane.xlu0 %27
  %v29 = vrcp.pop 64.0
  %v30 = vmul.f32 64.0, %v29
  %v31 = vsub.f32 1.0, %v30
  %v32 = vmul.f32 %v29, %v31
  %v33 = vadd.f32 %v29, %v32
  %vm34 = vweird.f32 %v29
  %v35 = vsel %vm34, %v29, %v33
  %v36 = vmul.f32 %v25, %v35
  %v37 = vmul.f32 %v28, %v35
  %v38 = vsub.f32 %v20, %v36
  %v39 = vsub.f32 %v21, %v37
  %v40 = vmul.f32 %v38, %v38
  %v41 = vmul.f32 %v39, %v39
  %v42 = vsel %vm22, %v40, 0.0
  %43 = vadd.xlane.f32.xlu0 %v42
  %v44 = vpop.xlane.xlu0 %43
  %v45 = vsel %vm22, %v41, 0.0
  %46 = vadd.xlane.f32.xlu0 %v45
  %v47 = vpop.xlane.xlu0 %46
  %v48 = vrcp.pop 63.0
  %v49 = vmul.f32 63.0, %v48
  %v50 = vsub.f32 1.0, %v49
  %v51 = vmul.f32 %v48, %v50
  %v52 = vadd.f32 %v48, %v51
  %vm53 = vweird.f32 %v48
  %v54 = vsel %vm53, %v48, %v52
  %v55 = vmul.f32 %v44, %v54
  %v56 = vmul.f32 %v47, %v54
  %v57 = vrsqrt.pop %v55
  %v58 = vmul.f32 %v57, %v55
  %v59 = vmul.f32 %v58, %v57
  %v60 = vmul.f32 0.5, %v59
  %v61 = vsub.f32 1.5, %v60
  %v62 = vmul.f32 %v57, %v61
  %v63 = vmul.f32 %v55, %v62
  %vm64 = vcmp.eq.f32.partialorder %v55, inf
  %v65 = vsel %vm64, %v55, %v63
  %vm66 = vcmp.eq.f32.partialorder %v55, 0.0
  %v67 = vand.u32 %v55, 2147483648
  %v68 = vsel %vm66, %v67, %v65
  %v69 = vrsqrt.pop %v56
  %v70 = vmul.f32 %v69, %v56
  %v71 = vmul.f32 %v70, %v69
  %v72 = vmul.f32 0.5, %v71
  %v73 = vsub.f32 1.5, %v72
  %v74 = vmul.f32 %v69, %v73
  %v75 = vmul.f32 %v56, %v74
  %vm76 = vcmp.eq.f32.partialorder %v56, inf
  %v77 = vsel %vm76, %v56, %v75
  %vm78 = vcmp.eq.f32.partialorder %v56, 0.0
  %v79 = vand.u32 %v56, 2147483648
  %v80 = vsel %vm78, %v79, %v77
  %v81 = vadd.f32 %v68, 1e-06
  %v82 = vadd.f32 %v80, 1e-06
  %v83 = vrcp.pop %v81
  %v84 = vrcp.pop %v82
  %v85 = vld [vmem:[%s3] sm:$0x1]
  %v87 = vperm.slane %v85, 0
  %v89 = vmul.f32 %v87, %v38
  %v90 = vmul.f32 %v87, %v39
  %v91 = vmul.f32 %v89, %v83
  %v92 = vmul.f32 %v90, %v84
  %v93 = vld [vmem:[%s4] sm:$0x1]
  %v95 = vperm.slane %v93, 0
  %v97 = vadd.f32 %v91, %v95
  %v98 = vadd.f32 %v92, %v95
  %v99 = vld [vmem:[%s1] sm:$0xff]
  %v100 = vld [vmem:[%s1 + $0x8] sm:$0xff]
  %v101 = vld [vmem:[%s1 + $0x10] sm:$0xff]
  %v102 = vld [vmem:[%s1 + $0x18] sm:$0xff]
  %v103 = vld [vmem:[%s1 + $0x20] sm:$0xff]
  %v104 = vld [vmem:[%s1 + $0x28] sm:$0xff]
  %v105 = vld [vmem:[%s1 + $0x30] sm:$0xff]
  %v106 = vld [vmem:[%s1 + $0x38] sm:$0xff]
  %v107 = vld [vmem:[%s2] sm:$0x1]
  %v109 = vperm.slane %v107, 0
  %v112 = vsel %vm22, %v97, 0
  %v115 = vsel %vm22, %v98, 0
  %117 = vmatpush.msra.mxu0 0.0
  %118 = vmatpush.msra.mxu0 0.0
  %119 = vmatpush.msra.mxu0 0.0
  %120 = vmatpush.msra.mxu0 0.0
  %121 = vmatpush.msra.mxu0 0.0
  %122 = vmatpush.msra.mxu0 0.0
  %123 = vmatpush.msra.mxu0 0.0
  %124 = vmatpush.msra.mxu0 0.0
  %125 = vmatpush.msra.mxu0 %v106
  %126 = vmatpush.msra.mxu0 %v105
  %127 = vmatpush.msra.mxu0 %v104
  %128 = vmatpush.msra.mxu0 %v103
  %129 = vmatpush.msra.mxu0 %v102
  %130 = vmatpush.msra.mxu0 %v101
  %131 = vmatpush.msra.mxu0 %v100
  %132 = vmatpush.msra.mxu0 %v99
  %133 = vmatmul.f32.gmra.mxu0 %v112
  %v134 = vpop.f32.mrf.mxu0
  %v135 = vadd.f32 %v109, %v134
  %136 = vmatmul.f32.gmra.mxu0 %v115
  %v137 = vpop.f32.mrf.mxu0
  %v138 = vadd.f32 %v109, %v137
  %139 = vdwg.mxu0
  %140 = vst [vmem:[%s5] sm:$0xff] %v135
  %141 = vst [vmem:[%s5 + $0x8] sm:$0xff] %v138
  // Predicated region
  $region22: #{transformer_forward.31} parent=0 // pred_check
    _
  $region23: #{transformer_forward.31} parent=0 // pred_check_branch
    %143 = sbr.rel (0) target = $region25
  $region24: #{transformer_forward.31} parent=0 // pred_region
    _
  $region25: #{transformer_forward.31} parent=0 // pred_fallthru
    _
  // Predicated region
  $region26: #{transformer_forward.31} parent=0 // pred_check
    _
  $region27: #{transformer_forward.31} parent=0 // pred_check_branch
    %145 = sbr.rel (0) target = $region29
  $region28: #{transformer_forward.31} parent=0 // pred_region
    _
  $region29: #{transformer_forward.31} parent=0 // pred_fallthru
    _

// kernel: transformer_forward.23
$region0: #{transformer_forward.23}
  #allocation0 [shape = 'u32[]', space=smem, size = 0x4, offset = 0x4, fixed_abs, tag = 'smem constant byte address 0x4 - core index']
  #allocation1 [shape = 'u32[72,128]{1,0:T(1,128)}', space=vmem, size = 0x9000, scoped, tag = 'internal scratch']
  %s0 = inlined_call_operand.vmem [shape: f32[2,64,64], index: 0, kind: input, shape index: {}]
  %s1 = inlined_call_operand.vmem [shape: f32[64,64], index: 1, kind: input, shape index: {}]
  %s2 = inlined_call_operand.vmem [shape: f32[2,64,64], index: 2, kind: output, shape index: {}]
  %s3 = sld [smem:[#allocation0]]
  $region41: #{transformer_forward.23} parent=0
    _
  %s5 = ssub.s32 1, %s3
  %s6 = scalar_select 0, %s5, %s3
  loop: start=0, step=1, limit=4
  $region2: #{transformer_forward.23} parent=0 // loop_pre_header
    _
  $region3: #{transformer_forward.23} parent=0 // loop_header
    %s8 = sphi 0, %s12
    %p9 = scmp.ge.s32.totalorder %s8, 4
    %s18 = sphi 0, %s20
    %s21 = sphi 0, %s18
    %s22 = sphi 0, %s21
    %s38 = sphi 0, %s22
    %s42 = sphi 0, %s42
    %s44 = sphi 0, %s42
    %s45 = sphi 0, %s44
    %s59 = sphi 0, %s45
    %s65 = sphi 0, %s67
    %s68 = sphi 0, %s65
    %s69 = sphi 0, %s68
    %s85 = sphi 0, %s69
  $region4: #{transformer_forward.23} parent=0 // loop_header_branch
    %11 = sbr.rel (%p9) target = $region8
  $region5: #{transformer_forward.23} parent=0 // loop_body
    %s13 = ssub.s32 %s8, 1
    %s14 = ssub.s32 %s8, 2
    %s15 = sadd.s32 %s8, 1
    %s16 = ssub.s32 %s8, %s15
    %p17 = scmp.eq.s32.totalorder %s16, 0
    %s19 = sadd.s32 %s18, 1
    %s20 = scalar_select %p17, %s18, %s19
    %p23 = pneg %p17
    %p24 = scmp.eq.s32.totalorder %s8, 1
    %p25 = por %p23, %p24
    %p26 = scmp.ne.s32.totalorder %s18, %s21
    %p27 = scmp.eq.s32.totalorder %s8, 0
    %p28 = por %p26, %p27
    %p29 = scmp.ne.s32.totalorder %s18, %s21
    %p30 = scmp.eq.s32.totalorder %s13, 1
    %p31 = por %p29, %p30
    %p32 = scmp.ne.s32.totalorder %s21, %s22
    %p33 = scmp.eq.s32.totalorder %s13, 0
    %p34 = por %p32, %p33
    %p35 = scmp.ne.s32.totalorder %s21, %s22
    %p36 = scmp.eq.s32.totalorder %s14, 1
    %p37 = por %p35, %p36
    %p39 = scmp.ne.s32.totalorder %s22, %s38
    %p40 = scmp.eq.s32.totalorder %s14, 0
    %p41 = por %p39, %p40
    %s43 = sadd.s32 %s42, 1
    %p46 = scmp.eq.s32.totalorder %s8, 1
    %p47 = scmp.ne.s32.totalorder %s42, %s44
    %p48 = scmp.eq.s32.totalorder %s8, 0
    %p49 = por %p47, %p48
    %p50 = scmp.ne.s32.totalorder %s42, %s44
    %p51 = scmp.eq.s32.totalorder %s13, 1
    %p52 = por %p50, %p51
    %p53 = scmp.ne.s32.totalorder %s44, %s45
    %p54 = scmp.eq.s32.totalorder %s13, 0
    %p55 = por %p53, %p54
    %p56 = scmp.ne.s32.totalorder %s44, %s45
    %p57 = scmp.eq.s32.totalorder %s14, 1
    %p58 = por %p56, %p57
    %p60 = scmp.ne.s32.totalorder %s45, %s59
    %p61 = scmp.eq.s32.totalorder %s14, 0
    %p62 = por %p60, %p61
    %s63 = ssub.s32 %s8, %s15
    %p64 = scmp.eq.s32.totalorder %s63, 0
    %s66 = sadd.s32 %s65, 1
    %s67 = scalar_select %p64, %s65, %s66
    %p70 = pneg %p64
    %p71 = scmp.eq.s32.totalorder %s8, 1
    %p72 = por %p70, %p71
    %p73 = scmp.ne.s32.totalorder %s65, %s68
    %p74 = scmp.eq.s32.totalorder %s8, 0
    %p75 = por %p73, %p74
    %p76 = scmp.ne.s32.totalorder %s65, %s68
    %p77 = scmp.eq.s32.totalorder %s13, 1
    %p78 = por %p76, %p77
    %p79 = scmp.ne.s32.totalorder %s68, %s69
    %p80 = scmp.eq.s32.totalorder %s13, 0
    %p81 = por %p79, %p80
    %p82 = scmp.ne.s32.totalorder %s68, %s69
    %p83 = scmp.eq.s32.totalorder %s14, 1
    %p84 = por %p82, %p83
    %p86 = scmp.ne.s32.totalorder %s69, %s85
    %p87 = scmp.eq.s32.totalorder %s14, 0
    %p88 = por %p86, %p87
    %p89 = scmp.le.s32.totalorder 1, %s8
    %p90 = scmp.lt.s32.totalorder %s8, 3
    %p91 = pnand %p89, %p90
    %p92 = pneg %p91
    // Predicated region
    $region9: #{transformer_forward.23} parent=5 // pred_check
      _
    $region10: #{transformer_forward.23} parent=5 // pred_check_branch
      %94 = sbr.rel (%p91) target = $region12
    $region11: #{transformer_forward.23} parent=5 // pred_region
      %s95 = ssub.s32 %s8, 1
      // Predicated region
      $region13: #{transformer_forward.23} parent=11 // pred_check
        %p96 = pneg %p55
      $region14: #{transformer_forward.23} parent=11 // pred_check_branch
        %98 = sbr.rel (%p96) target = $region16
      $region15: #{transformer_forward.23} parent=11 // pred_region
        _
      $region16: #{transformer_forward.23} parent=11 // pred_fallthru
        _
    $region12: #{transformer_forward.23} parent=5 // pred_fallthru
      _
    %p99 = scmp.lt.s32.totalorder %s8, 2
    // Predicated region
    $region17: #{transformer_forward.23} parent=5 // pred_check
      %p100 = pneg %p99
    $region18: #{transformer_forward.23} parent=5 // pred_check_branch
      %102 = sbr.rel (%p100) target = $region20
    $region19: #{transformer_forward.23} parent=5 // pred_region
      // Predicated region
      $region21: #{transformer_forward.23} parent=19 // pred_check
        %p103 = pneg %p28
      $region22: #{transformer_forward.23} parent=19 // pred_check_branch
        %105 = sbr.rel (%p103) target = $region24
      $region23: #{transformer_forward.23} parent=19 // pred_region
        %p106 = scmp.lt.s32.totalorder %s8, 1
        %s107 = scalar_select %p106, %s8, 1
        %s108 = smul.addr %s107, 8
        %s109 = smul.addr %s108, 8
        %s110 = scalar_lea.vmem %s0, %s109
      $region24: #{transformer_forward.23} parent=19 // pred_fallthru
        _
    $region20: #{transformer_forward.23} parent=5 // pred_fallthru
      _
    %p111 = scmp.le.s32.totalorder 1, %s8
    %p112 = scmp.lt.s32.totalorder %s8, 3
    %p113 = pnand %p111, %p112
    %p114 = pneg %p113
    // Predicated region
    $region25: #{transformer_forward.23} parent=5 // pred_check
      _
    $region26: #{transformer_forward.23} parent=5 // pred_check_branch
      %116 = sbr.rel (%p113) target = $region28
    $region27: #{transformer_forward.23} parent=5 // pred_region
      %s117 = ssub.s32 %s8, 1
      %p118 = scmp.lt.s32.totalorder %s13, 1
      %s119 = scalar_select %p118, %s13, 1
      %s120 = smul.addr %s119, 8
      %s121 = smul.addr %s120, 8
      %s122 = scalar_lea.vmem %s0, %s121
      %p123 = pneg %p34
      %p124 = pneg %p31
      %p125 = pneg %p55
      %p126 = pneg %p52
      %p127 = pneg %p81
      %p128 = pneg %p78
      %p129 = scmp.lt.s32.totalorder %s13, 1
      %s130 = scalar_select %p129, %s13, 1
      %s131 = smul.addr %s130, 8
      %s132 = smul.addr %s131, 8
      %s133 = scalar_lea.vmem %s2, %s132
      %p134 = scmp.lt.s32.totalorder %s13, 1
      %s135 = scalar_select %p134, %s13, 1
      %s136 = smul.addr %s135, 8
      %s137 = smul.addr %s136, 8
      %s138 = scalar_lea.vmem %s0, %s137
      %p139 = scmp.lt.s32.totalorder %s13, 1
      %s140 = scalar_select %p139, %s13, 1
      %s141 = smul.addr %s140, 8
      %s142 = smul.addr %s141, 8
      %s143 = scalar_lea.vmem %s2, %s142
      %v144 = vld [vmem:[%s138] sm:$0xff]
      %v145 = vld [vmem:[%s138 + $0x8] sm:$0xff]
      %v146 = vld [vmem:[%s138 + $0x10] sm:$0xff]
      %v147 = vld [vmem:[%s138 + $0x18] sm:$0xff]
      %v148 = vld [vmem:[%s138 + $0x20] sm:$0xff]
      %v149 = vld [vmem:[%s138 + $0x28] sm:$0xff]
      %v150 = vld [vmem:[%s138 + $0x30] sm:$0xff]
      %v151 = vld [vmem:[%s138 + $0x38] sm:$0xff]
      %v152 = vld [vmem:[%s1] sm:$0xff]
      %v153 = vld [vmem:[%s1 + $0x8] sm:$0xff]
      %v154 = vld [vmem:[%s1 + $0x10] sm:$0xff]
      %v155 = vld [vmem:[%s1 + $0x18] sm:$0xff]
      %v156 = vld [vmem:[%s1 + $0x20] sm:$0xff]
      %v157 = vld [vmem:[%s1 + $0x28] sm:$0xff]
      %v158 = vld [vmem:[%s1 + $0x30] sm:$0xff]
      %v159 = vld [vmem:[%s1 + $0x38] sm:$0xff]
      %v160 = vadd.f32 %v144, %v152
      %v161 = vadd.f32 %v145, %v153
      %v162 = vadd.f32 %v146, %v154
      %v163 = vadd.f32 %v147, %v155
      %v164 = vadd.f32 %v148, %v156
      %v165 = vadd.f32 %v149, %v157
      %v166 = vadd.f32 %v150, %v158
      %v167 = vadd.f32 %v151, %v159
      %vm168 = vcmask 523264
      %169 = vst.msk [vmem:[%s143] sm:$0xff] %vm168, %v160
      %170 = vst.msk [vmem:[%s143 + $0x8] sm:$0xff] %vm168, %v161
      %171 = vst.msk [vmem:[%s143 + $0x10] sm:$0xff] %vm168, %v162
      %172 = vst.msk [vmem:[%s143 + $0x18] sm:$0xff] %vm168, %v163
      %173 = vst.msk [vmem:[%s143 + $0x20] sm:$0xff] %vm168, %v164
      %174 = vst.msk [vmem:[%s143 + $0x28] sm:$0xff] %vm168, %v165
      %175 = vst.msk [vmem:[%s143 + $0x30] sm:$0xff] %vm168, %v166
      %176 = vst.msk [vmem:[%s143 + $0x38] sm:$0xff] %vm168, %v167
      %p177 = scmp.lt.s32.totalorder %s13, 1
      %s178 = scalar_select %p177, %s13, 1
      %s179 = smul.addr %s178, 8
      %s180 = smul.addr %s179, 8
      %s181 = scalar_lea.vmem %s2, %s180
      // Predicated region
      $region29: #{transformer_forward.23} parent=27 // pred_check
        %p182 = pneg %p78
      $region30: #{transformer_forward.23} parent=27 // pred_check_branch
        %184 = sbr.rel (%p182) target = $region32
      $region31: #{transformer_forward.23} parent=27 // pred_region
        _
      $region32: #{transformer_forward.23} parent=27 // pred_fallthru
        _
    $region28: #{transformer_forward.23} parent=5 // pred_fallthru
      _
    %p185 = scmp.le.s32.totalorder 2, %s8
    // Predicated region
    $region33: #{transformer_forward.23} parent=5 // pred_check
      %p186 = pneg %p185
    $region34: #{transformer_forward.23} parent=5 // pred_check_branch
      %188 = sbr.rel (%p186) target = $region36
    $region35: #{transformer_forward.23} parent=5 // pred_region
      %s189 = ssub.s32 %s8, 2
      // Predicated region
      $region37: #{transformer_forward.23} parent=35 // pred_check
        %p190 = pneg %p84
      $region38: #{transformer_forward.23} parent=35 // pred_check_branch
        %192 = sbr.rel (%p190) target = $region40
      $region39: #{transformer_forward.23} parent=35 // pred_region
        %p193 = scmp.lt.s32.totalorder %s14, 1
        %s194 = scalar_select %p193, %s14, 1
        %s195 = smul.addr %s194, 8
        %s196 = smul.addr %s195, 8
        %s197 = scalar_lea.vmem %s2, %s196
      $region40: #{transformer_forward.23} parent=35 // pred_fallthru
        _
    $region36: #{transformer_forward.23} parent=5 // pred_fallthru
      _
  $region6: #{transformer_forward.23} parent=0 // loop_footer
    %s12 = sadd.s32 1, %s8
  $region7: #{transformer_forward.23} parent=0 // loop_footer_branch
    %7 = sbr.rel target = $region3
  $region8: #{transformer_forward.23} parent=0 // loop_exit
    _

// kernel: transformer_forward.24
$region0: #{transformer_forward.24}
  #allocation0 [shape = 'u32[]', space=smem, size = 0x4, offset = 0x4, fixed_abs, tag = 'smem constant byte address 0x4 - core index']
  #allocation1 [shape = 'u32[72,128]{1,0:T(1,128)}', space=vmem, size = 0x9000, scoped, tag = 'internal scratch']
  %s0 = inlined_call_operand.vmem [shape: f32[128,64], index: 0, kind: input, shape index: {}]
  %s1 = inlined_call_operand.vmem [shape: f32[64,128], index: 1, kind: input, shape index: {}]
  %s2 = inlined_call_operand.vmem [shape: f32[1,128], index: 2, kind: input, shape index: {}]
  %s3 = inlined_call_operand.vmem [shape: f32[128,128], index: 3, kind: output, shape index: {}]
  %s4 = sld [smem:[#allocation0]]
  $region22: #{transformer_forward.24} parent=0
    _
  %s6 = ssub.s32 1, %s4
  %s7 = scalar_select 0, %s6, %s4
  // Predicated region
  $region2: #{transformer_forward.24} parent=0 // pred_check
    _
  $region3: #{transformer_forward.24} parent=0 // pred_check_branch
    %9 = sbr.rel (0) target = $region5
  $region4: #{transformer_forward.24} parent=0 // pred_region
    _
  $region5: #{transformer_forward.24} parent=0 // pred_fallthru
    _
  // Predicated region
  $region6: #{transformer_forward.24} parent=0 // pred_check
    _
  $region7: #{transformer_forward.24} parent=0 // pred_check_branch
    %11 = sbr.rel (0) target = $region9
  $region8: #{transformer_forward.24} parent=0 // pred_region
    _
  $region9: #{transformer_forward.24} parent=0 // pred_fallthru
    _
  // Predicated region
  $region10: #{transformer_forward.24} parent=0 // pred_check
    _
  $region11: #{transformer_forward.24} parent=0 // pred_check_branch
    %13 = sbr.rel (0) target = $region13
  $region12: #{transformer_forward.24} parent=0 // pred_region
    _
  $region13: #{transformer_forward.24} parent=0 // pred_fallthru
    _
  %v14 = vld [vmem:[%s0] sm:$0xff]
  %v15 = vld [vmem:[%s0 + $0x8] sm:$0xff]
  %v16 = vld [vmem:[%s0 + $0x10] sm:$0xff]
  %v17 = vld [vmem:[%s0 + $0x18] sm:$0xff]
  %v18 = vld [vmem:[%s0 + $0x20] sm:$0xff]
  %v19 = vld [vmem:[%s0 + $0x28] sm:$0xff]
  %v20 = vld [vmem:[%s0 + $0x30] sm:$0xff]
  %v21 = vld [vmem:[%s0 + $0x38] sm:$0xff]
  %v22 = vld [vmem:[%s0 + $0x40] sm:$0xff]
  %v23 = vld [vmem:[%s0 + $0x48] sm:$0xff]
  %v24 = vld [vmem:[%s0 + $0x50] sm:$0xff]
  %v25 = vld [vmem:[%s0 + $0x58] sm:$0xff]
  %v26 = vld [vmem:[%s0 + $0x60] sm:$0xff]
  %v27 = vld [vmem:[%s0 + $0x68] sm:$0xff]
  %v28 = vld [vmem:[%s0 + $0x70] sm:$0xff]
  %v29 = vld [vmem:[%s0 + $0x78] sm:$0xff]
  %v30 = vld [vmem:[%s1] sm:$0xff]
  %v31 = vld [vmem:[%s1 + $0x8] sm:$0xff]
  %v32 = vld [vmem:[%s1 + $0x10] sm:$0xff]
  %v33 = vld [vmem:[%s1 + $0x18] sm:$0xff]
  %v34 = vld [vmem:[%s1 + $0x20] sm:$0xff]
  %v35 = vld [vmem:[%s1 + $0x28] sm:$0xff]
  %v36 = vld [vmem:[%s1 + $0x30] sm:$0xff]
  %v37 = vld [vmem:[%s1 + $0x38] sm:$0xff]
  %v38 = vld [vmem:[%s2] sm:$0x1]
  %v40 = vperm.slane %v38, 0
  %vm42 = vcmask 523264
  %v44 = vsel %vm42, %v14, 0
  %v47 = vsel %vm42, %v15, 0
  %v50 = vsel %vm42, %v16, 0
  %v53 = vsel %vm42, %v17, 0
  %v56 = vsel %vm42, %v18, 0
  %v59 = vsel %vm42, %v19, 0
  %v62 = vsel %vm42, %v20, 0
  %v65 = vsel %vm42, %v21, 0
  %v68 = vsel %vm42, %v22, 0
  %v71 = vsel %vm42, %v23, 0
  %v74 = vsel %vm42, %v24, 0
  %v77 = vsel %vm42, %v25, 0
  %v80 = vsel %vm42, %v26, 0
  %v83 = vsel %vm42, %v27, 0
  %v86 = vsel %vm42, %v28, 0
  %v89 = vsel %vm42, %v29, 0
  %91 = vmatpush.msra.mxu0 0.0
  %92 = vmatpush.msra.mxu0 0.0
  %93 = vmatpush.msra.mxu0 0.0
  %94 = vmatpush.msra.mxu0 0.0
  %95 = vmatpush.msra.mxu0 0.0
  %96 = vmatpush.msra.mxu0 0.0
  %97 = vmatpush.msra.mxu0 0.0
  %98 = vmatpush.msra.mxu0 0.0
  %99 = vmatpush.msra.mxu0 %v37
  %100 = vmatpush.msra.mxu0 %v36
  %101 = vmatpush.msra.mxu0 %v35
  %102 = vmatpush.msra.mxu0 %v34
  %103 = vmatpush.msra.mxu0 %v33
  %104 = vmatpush.msra.mxu0 %v32
  %105 = vmatpush.msra.mxu0 %v31
  %106 = vmatpush.msra.mxu0 %v30
  %107 = vmatmul.f32.gmra.mxu0 %v44
  %v108 = vpop.f32.mrf.mxu0
  %v109 = vadd.f32 %v40, %v108
  %110 = vmatmul.f32.gmra.mxu0 %v47
  %v111 = vpop.f32.mrf.mxu0
  %v112 = vadd.f32 %v40, %v111
  %113 = vmatmul.f32.gmra.mxu0 %v50
  %v114 = vpop.f32.mrf.mxu0
  %v115 = vadd.f32 %v40, %v114
  %116 = vmatmul.f32.gmra.mxu0 %v53
  %v117 = vpop.f32.mrf.mxu0
  %v118 = vadd.f32 %v40, %v117
  %119 = vmatmul.f32.gmra.mxu0 %v56
  %v120 = vpop.f32.mrf.mxu0
  %v121 = vadd.f32 %v40, %v120
  %122 = vmatmul.f32.gmra.mxu0 %v59
  %v123 = vpop.f32.mrf.mxu0
  %v124 = vadd.f32 %v40, %v123
  %125 = vmatmul.f32.gmra.mxu0 %v62
  %v126 = vpop.f32.mrf.mxu0
  %v127 = vadd.f32 %v40, %v126
  %128 = vmatmul.f32.gmra.mxu0 %v65
  %v129 = vpop.f32.mrf.mxu0
  %v130 = vadd.f32 %v40, %v129
  %131 = vmatmul.f32.gmra.mxu0 %v68
  %v132 = vpop.f32.mrf.mxu0
  %v133 = vadd.f32 %v40, %v132
  %134 = vmatmul.f32.gmra.mxu0 %v71
  %v135 = vpop.f32.mrf.mxu0
  %v136 = vadd.f32 %v40, %v135
  %137 = vmatmul.f32.gmra.mxu0 %v74
  %v138 = vpop.f32.mrf.mxu0
  %v139 = vadd.f32 %v40, %v138
  %140 = vmatmul.f32.gmra.mxu0 %v77
  %v141 = vpop.f32.mrf.mxu0
  %v142 = vadd.f32 %v40, %v141
  %143 = vmatmul.f32.gmra.mxu0 %v80
  %v144 = vpop.f32.mrf.mxu0
  %v145 = vadd.f32 %v40, %v144
  %146 = vmatmul.f32.gmra.mxu0 %v83
  %v147 = vpop.f32.mrf.mxu0
  %v148 = vadd.f32 %v40, %v147
  %149 = vmatmul.f32.gmra.mxu0 %v86
  %v150 = vpop.f32.mrf.mxu0
  %v151 = vadd.f32 %v40, %v150
  %152 = vmatmul.f32.gmra.mxu0 %v89
  %v153 = vpop.f32.mrf.mxu0
  %v154 = vadd.f32 %v40, %v153
  %155 = vdwg.mxu0
  %v156 = vmax.f32 %v109, 0.0
  %v157 = vmax.f32 %v112, 0.0
  %v158 = vmax.f32 %v115, 0.0
  %v159 = vmax.f32 %v118, 0.0
  %v160 = vmax.f32 %v121, 0.0
  %v161 = vmax.f32 %v124, 0.0
  %v162 = vmax.f32 %v127, 0.0
  %v163 = vmax.f32 %v130, 0.0
  %v164 = vmax.f32 %v133, 0.0
  %v165 = vmax.f32 %v136, 0.0
  %v166 = vmax.f32 %v139, 0.0
  %v167 = vmax.f32 %v142, 0.0
  %v168 = vmax.f32 %v145, 0.0
  %v169 = vmax.f32 %v148, 0.0
  %v170 = vmax.f32 %v151, 0.0
  %v171 = vmax.f32 %v154, 0.0
  %172 = vst [vmem:[%s3] sm:$0xff] %v156
  %173 = vst [vmem:[%s3 + $0x8] sm:$0xff] %v157
  %174 = vst [vmem:[%s3 + $0x10] sm:$0xff] %v158
  %175 = vst [vmem:[%s3 + $0x18] sm:$0xff] %v159
  %176 = vst [vmem:[%s3 + $0x20] sm:$0xff] %v160
  %177 = vst [vmem:[%s3 + $0x28] sm:$0xff] %v161
  %178 = vst [vmem:[%s3 + $0x30] sm:$0xff] %v162
  %179 = vst [vmem:[%s3 + $0x38] sm:$0xff] %v163
  %180 = vst [vmem:[%s3 + $0x40] sm:$0xff] %v164
  %181 = vst [vmem:[%s3 + $0x48] sm:$0xff] %v165
  %182 = vst [vmem:[%s3 + $0x50] sm:$0xff] %v166
  %183 = vst [vmem:[%s3 + $0x58] sm:$0xff] %v167
  %184 = vst [vmem:[%s3 + $0x60] sm:$0xff] %v168
  %185 = vst [vmem:[%s3 + $0x68] sm:$0xff] %v169
  %186 = vst [vmem:[%s3 + $0x70] sm:$0xff] %v170
  %187 = vst [vmem:[%s3 + $0x78] sm:$0xff] %v171
  // Predicated region
  $region14: #{transformer_forward.24} parent=0 // pred_check
    _
  $region15: #{transformer_forward.24} parent=0 // pred_check_branch
    %189 = sbr.rel (0) target = $region17
  $region16: #{transformer_forward.24} parent=0 // pred_region
    _
  $region17: #{transformer_forward.24} parent=0 // pred_fallthru
    _
  // Predicated region
  $region18: #{transformer_forward.24} parent=0 // pred_check
    _
  $region19: #{transformer_forward.24} parent=0 // pred_check_branch
    %191 = sbr.rel (0) target = $region21
  $region20: #{transformer_forward.24} parent=0 // pred_region
    _
  $region21: #{transformer_forward.24} parent=0 // pred_fallthru
    _

// kernel: transformer_forward.30
$region0: #{transformer_forward.30}
  #allocation0 [shape = 'u32[]', space=smem, size = 0x4, offset = 0x4, fixed_abs, tag = 'smem constant byte address 0x4 - core index']
  #allocation1 [shape = 'u32[72,128]{1,0:T(1,128)}', space=vmem, size = 0x9000, scoped, tag = 'internal scratch']
  %s0 = inlined_call_operand.vmem [shape: f32[32,64], index: 0, kind: input, shape index: {}]
  %s1 = inlined_call_operand.vmem [shape: f32[64,128], index: 1, kind: input, shape index: {}]
  %s2 = inlined_call_operand.vmem [shape: f32[1,128], index: 2, kind: input, shape index: {}]
  %s3 = inlined_call_operand.vmem [shape: f32[32,128], index: 3, kind: output, shape index: {}]
  %s4 = sld [smem:[#allocation0]]
  $region22: #{transformer_forward.30} parent=0
    _
  %s6 = ssub.s32 1, %s4
  %s7 = scalar_select 0, %s6, %s4
  // Predicated region
  $region2: #{transformer_forward.30} parent=0 // pred_check
    _
  $region3: #{transformer_forward.30} parent=0 // pred_check_branch
    %9 = sbr.rel (0) target = $region5
  $region4: #{transformer_forward.30} parent=0 // pred_region
    _
  $region5: #{transformer_forward.30} parent=0 // pred_fallthru
    _
  // Predicated region
  $region6: #{transformer_forward.30} parent=0 // pred_check
    _
  $region7: #{transformer_forward.30} parent=0 // pred_check_branch
    %11 = sbr.rel (0) target = $region9
  $region8: #{transformer_forward.30} parent=0 // pred_region
    _
  $region9: #{transformer_forward.30} parent=0 // pred_fallthru
    _
  // Predicated region
  $region10: #{transformer_forward.30} parent=0 // pred_check
    _
  $region11: #{transformer_forward.30} parent=0 // pred_check_branch
    %13 = sbr.rel (0) target = $region13
  $region12: #{transformer_forward.30} parent=0 // pred_region
    _
  $region13: #{transformer_forward.30} parent=0 // pred_fallthru
    _
  %v14 = vld [vmem:[%s0] sm:$0xff]
  %v15 = vld [vmem:[%s0 + $0x8] sm:$0xff]
  %v16 = vld [vmem:[%s0 + $0x10] sm:$0xff]
  %v17 = vld [vmem:[%s0 + $0x18] sm:$0xff]
  %v18 = vld [vmem:[%s1] sm:$0xff]
  %v19 = vld [vmem:[%s1 + $0x8] sm:$0xff]
  %v20 = vld [vmem:[%s1 + $0x10] sm:$0xff]
  %v21 = vld [vmem:[%s1 + $0x18] sm:$0xff]
  %v22 = vld [vmem:[%s1 + $0x20] sm:$0xff]
  %v23 = vld [vmem:[%s1 + $0x28] sm:$0xff]
  %v24 = vld [vmem:[%s1 + $0x30] sm:$0xff]
  %v25 = vld [vmem:[%s1 + $0x38] sm:$0xff]
  %v26 = vld [vmem:[%s2] sm:$0x1]
  %v28 = vperm.slane %v26, 0
  %vm30 = vcmask 523264
  %v32 = vsel %vm30, %v14, 0
  %v35 = vsel %vm30, %v15, 0
  %v38 = vsel %vm30, %v16, 0
  %v41 = vsel %vm30, %v17, 0
  %43 = vmatpush.msra.mxu0 0.0
  %44 = vmatpush.msra.mxu0 0.0
  %45 = vmatpush.msra.mxu0 0.0
  %46 = vmatpush.msra.mxu0 0.0
  %47 = vmatpush.msra.mxu0 0.0
  %48 = vmatpush.msra.mxu0 0.0
  %49 = vmatpush.msra.mxu0 0.0
  %50 = vmatpush.msra.mxu0 0.0
  %51 = vmatpush.msra.mxu0 %v25
  %52 = vmatpush.msra.mxu0 %v24
  %53 = vmatpush.msra.mxu0 %v23
  %54 = vmatpush.msra.mxu0 %v22
  %55 = vmatpush.msra.mxu0 %v21
  %56 = vmatpush.msra.mxu0 %v20
  %57 = vmatpush.msra.mxu0 %v19
  %58 = vmatpush.msra.mxu0 %v18
  %59 = vmatmul.f32.gmra.mxu0 %v32
  %v60 = vpop.f32.mrf.mxu0
  %v61 = vadd.f32 %v28, %v60
  %62 = vmatmul.f32.gmra.mxu0 %v35
  %v63 = vpop.f32.mrf.mxu0
  %v64 = vadd.f32 %v28, %v63
  %65 = vmatmul.f32.gmra.mxu0 %v38
  %v66 = vpop.f32.mrf.mxu0
  %v67 = vadd.f32 %v28, %v66
  %68 = vmatmul.f32.gmra.mxu0 %v41
  %v69 = vpop.f32.mrf.mxu0
  %v70 = vadd.f32 %v28, %v69
  %71 = vdwg.mxu0
  %72 = vst [vmem:[%s3] sm:$0xff] %v61
  %73 = vst [vmem:[%s3 + $0x8] sm:$0xff] %v64
  %74 = vst [vmem:[%s3 + $0x10] sm:$0xff] %v67
  %75 = vst [vmem:[%s3 + $0x18] sm:$0xff] %v70
  // Predicated region
  $region14: #{transformer_forward.30} parent=0 // pred_check
    _
  $region15: #{transformer_forward.30} parent=0 // pred_check_branch
    %77 = sbr.rel (0) target = $region17
  $region16: #{transformer_forward.30} parent=0 // pred_region
    _
  $region17: #{transformer_forward.30} parent=0 // pred_fallthru
    _
  // Predicated region
  $region18: #{transformer_forward.30} parent=0 // pred_check
    _
  $region19: #{transformer_forward.30} parent=0 // pred_check_branch
    %79 = sbr.rel (0) target = $region21
  $region20: #{transformer_forward.30} parent=0 // pred_region
    _
  $region21: #{transformer_forward.30} parent=0 // pred_fallthru
    _

// kernel: transformer_forward.32
$region0: #{transformer_forward.32}
  #allocation0 [shape = 'u32[]', space=smem, size = 0x4, offset = 0x4, fixed_abs, tag = 'smem constant byte address 0x4 - core index']
  #allocation1 [shape = 'u32[72,128]{1,0:T(1,128)}', space=vmem, size = 0x9000, scoped, tag = 'internal scratch']
  %s0 = inlined_call_operand.vmem [shape: f32[2,8,128], index: 0, kind: input, shape index: {}]
  %s1 = inlined_call_operand.vmem [shape: f32[2,16,128], index: 1, kind: input, shape index: {}]
  %s2 = inlined_call_operand.vmem [shape: f32[2,8,64], index: 2, kind: output, shape index: {}]
  %s3 = sld [smem:[#allocation0]]
  $region41: #{transformer_forward.32} parent=0
    _
  %s5 = ssub.s32 1, %s3
  %s6 = scalar_select 0, %s5, %s3
  loop: start=0, step=1, limit=4
  $region2: #{transformer_forward.32} parent=0 // loop_pre_header
    _
  $region3: #{transformer_forward.32} parent=0 // loop_header
    %s8 = sphi 0, %s12
    %p9 = scmp.ge.s32.totalorder %s8, 4
    %s18 = sphi 0, %s20
    %s21 = sphi 0, %s18
    %s22 = sphi 0, %s21
    %s38 = sphi 0, %s22
    %s44 = sphi 0, %s46
    %s47 = sphi 0, %s44
    %s48 = sphi 0, %s47
    %s64 = sphi 0, %s48
    %s70 = sphi 0, %s72
    %s73 = sphi 0, %s70
    %s74 = sphi 0, %s73
    %s90 = sphi 0, %s74
  $region4: #{transformer_forward.32} parent=0 // loop_header_branch
    %11 = sbr.rel (%p9) target = $region8
  $region5: #{transformer_forward.32} parent=0 // loop_body
    %s13 = ssub.s32 %s8, 1
    %s14 = ssub.s32 %s8, 2
    %s15 = sadd.s32 %s8, 1
    %s16 = ssub.s32 %s8, %s15
    %p17 = scmp.eq.s32.totalorder %s16, 0
    %s19 = sadd.s32 %s18, 1
    %s20 = scalar_select %p17, %s18, %s19
    %p23 = pneg %p17
    %p24 = scmp.eq.s32.totalorder %s8, 1
    %p25 = por %p23, %p24
    %p26 = scmp.ne.s32.totalorder %s18, %s21
    %p27 = scmp.eq.s32.totalorder %s8, 0
    %p28 = por %p26, %p27
    %p29 = scmp.ne.s32.totalorder %s18, %s21
    %p30 = scmp.eq.s32.totalorder %s13, 1
    %p31 = por %p29, %p30
    %p32 = scmp.ne.s32.totalorder %s21, %s22
    %p33 = scmp.eq.s32.totalorder %s13, 0
    %p34 = por %p32, %p33
    %p35 = scmp.ne.s32.totalorder %s21, %s22
    %p36 = scmp.eq.s32.totalorder %s14, 1
    %p37 = por %p35, %p36
    %p39 = scmp.ne.s32.totalorder %s22, %s38
    %p40 = scmp.eq.s32.totalorder %s14, 0
    %p41 = por %p39, %p40
    %s42 = ssub.s32 %s8, %s15
    %p43 = scmp.eq.s32.totalorder %s42, 0
    %s45 = sadd.s32 %s44, 1
    %s46 = scalar_select %p43, %s44, %s45
    %p49 = pneg %p43
    %p50 = scmp.eq.s32.totalorder %s8, 1
    %p51 = por %p49, %p50
    %p52 = scmp.ne.s32.totalorder %s44, %s47
    %p53 = scmp.eq.s32.totalorder %s8, 0
    %p54 = por %p52, %p53
    %p55 = scmp.ne.s32.totalorder %s44, %s47
    %p56 = scmp.eq.s32.totalorder %s13, 1
    %p57 = por %p55, %p56
    %p58 = scmp.ne.s32.totalorder %s47, %s48
    %p59 = scmp.eq.s32.totalorder %s13, 0
    %p60 = por %p58, %p59
    %p61 = scmp.ne.s32.totalorder %s47, %s48
    %p62 = scmp.eq.s32.totalorder %s14, 1
    %p63 = por %p61, %p62
    %p65 = scmp.ne.s32.totalorder %s48, %s64
    %p66 = scmp.eq.s32.totalorder %s14, 0
    %p67 = por %p65, %p66
    %s68 = ssub.s32 %s8, %s15
    %p69 = scmp.eq.s32.totalorder %s68, 0
    %s71 = sadd.s32 %s70, 1
    %s72 = scalar_select %p69, %s70, %s71
    %p75 = pneg %p69
    %p76 = scmp.eq.s32.totalorder %s8, 1
    %p77 = por %p75, %p76
    %p78 = scmp.ne.s32.totalorder %s70, %s73
    %p79 = scmp.eq.s32.totalorder %s8, 0
    %p80 = por %p78, %p79
    %p81 = scmp.ne.s32.totalorder %s70, %s73
    %p82 = scmp.eq.s32.totalorder %s13, 1
    %p83 = por %p81, %p82
    %p84 = scmp.ne.s32.totalorder %s73, %s74
    %p85 = scmp.eq.s32.totalorder %s13, 0
    %p86 = por %p84, %p85
    %p87 = scmp.ne.s32.totalorder %s73, %s74
    %p88 = scmp.eq.s32.totalorder %s14, 1
    %p89 = por %p87, %p88
    %p91 = scmp.ne.s32.totalorder %s74, %s90
    %p92 = scmp.eq.s32.totalorder %s14, 0
    %p93 = por %p91, %p92
    %p94 = scmp.le.s32.totalorder 1, %s8
    %p95 = scmp.lt.s32.totalorder %s8, 3
    %p96 = pnand %p94, %p95
    %p97 = pneg %p96
    // Predicated region
    $region9: #{transformer_forward.32} parent=5 // pred_check
      _
    $region10: #{transformer_forward.32} parent=5 // pred_check_branch
      %99 = sbr.rel (%p96) target = $region12
    $region11: #{transformer_forward.32} parent=5 // pred_region
      %s100 = ssub.s32 %s8, 1
    $region12: #{transformer_forward.32} parent=5 // pred_fallthru
      _
    %p101 = scmp.lt.s32.totalorder %s8, 2
    // Predicated region
    $region13: #{transformer_forward.32} parent=5 // pred_check
      %p102 = pneg %p101
    $region14: #{transformer_forward.32} parent=5 // pred_check_branch
      %104 = sbr.rel (%p102) target = $region16
    $region15: #{transformer_forward.32} parent=5 // pred_region
      // Predicated region
      $region17: #{transformer_forward.32} parent=15 // pred_check
        %p105 = pneg %p28
      $region18: #{transformer_forward.32} parent=15 // pred_check_branch
        %107 = sbr.rel (%p105) target = $region20
      $region19: #{transformer_forward.32} parent=15 // pred_region
        %p108 = scmp.lt.s32.totalorder %s8, 1
        %s109 = scalar_select %p108, %s8, 1
        %s110 = smul.addr %s109, 8
        %s111 = scalar_lea.vmem %s0, %s110
      $region20: #{transformer_forward.32} parent=15 // pred_fallthru
        _
      // Predicated region
      $region21: #{transformer_forward.32} parent=15 // pred_check
        %p112 = pneg %p54
      $region22: #{transformer_forward.32} parent=15 // pred_check_branch
        %114 = sbr.rel (%p112) target = $region24
      $region23: #{transformer_forward.32} parent=15 // pred_region
        %p115 = scmp.lt.s32.totalorder %s8, 1
        %s116 = scalar_select %p115, %s8, 1
        %s117 = smul.addr %s116, 2
        %s118 = smul.addr %s117, 8
        %s119 = scalar_lea.vmem %s1, %s118
      $region24: #{transformer_forward.32} parent=15 // pred_fallthru
        _
    $region16: #{transformer_forward.32} parent=5 // pred_fallthru
      _
    %p120 = scmp.le.s32.totalorder 1, %s8
    %p121 = scmp.lt.s32.totalorder %s8, 3
    %p122 = pnand %p120, %p121
    %p123 = pneg %p122
    // Predicated region
    $region25: #{transformer_forward.32} parent=5 // pred_check
      _
    $region26: #{transformer_forward.32} parent=5 // pred_check_branch
      %125 = sbr.rel (%p122) target = $region28
    $region27: #{transformer_forward.32} parent=5 // pred_region
      %s126 = ssub.s32 %s8, 1
      %p127 = scmp.lt.s32.totalorder %s13, 1
      %s128 = scalar_select %p127, %s13, 1
      %s129 = smul.addr %s128, 8
      %s130 = scalar_lea.vmem %s0, %s129
      %p131 = pneg %p34
      %p132 = pneg %p31
      %p133 = scmp.lt.s32.totalorder %s13, 1
      %s134 = scalar_select %p133, %s13, 1
      %s135 = smul.addr %s134, 2
      %s136 = smul.addr %s135, 8
      %s137 = scalar_lea.vmem %s1, %s136
      %p138 = pneg %p60
      %p139 = pneg %p57
      %p140 = pneg %p86
      %p141 = pneg %p83
      %p142 = scmp.lt.s32.totalorder %s13, 1
      %s143 = scalar_select %p142, %s13, 1
      %s144 = smul.addr %s143, 8
      %s145 = scalar_lea.vmem %s2, %s144
      %p146 = scmp.lt.s32.totalorder %s13, 1
      %s147 = scalar_select %p146, %s13, 1
      %s148 = smul.addr %s147, 8
      %s149 = scalar_lea.vmem %s0, %s148
      %p150 = scmp.lt.s32.totalorder %s13, 1
      %s151 = scalar_select %p150, %s13, 1
      %s152 = smul.addr %s151, 2
      %s153 = smul.addr %s152, 8
      %s154 = scalar_lea.vmem %s1, %s153
      %p155 = scmp.lt.s32.totalorder %s13, 1
      %s156 = scalar_select %p155, %s13, 1
      %s157 = smul.addr %s156, 8
      %s158 = scalar_lea.vmem %s2, %s157
      %v159 = vld [vmem:[%s149] sm:$0xff]
      %v160 = vld [vmem:[%s154] sm:$0xff]
      %v161 = vld [vmem:[%s154 + $0x8] sm:$0xff]
      %vm162 = vcmask 64512
      %v164 = vsel %vm162, %v159, 0
      %v167 = vsel %vm162, %v160, 0
      %v170 = vsel %vm162, %v161, 0
      %172 = vmatpush.xpose.msra.mxu0 0.0
      %173 = vmatpush.xpose.msra.mxu0 0.0
      %174 = vmatpush.xpose.msra.mxu0 0.0
      %175 = vmatpush.xpose.msra.mxu0 0.0
      %176 = vmatpush.xpose.msra.mxu0 0.0
      %177 = vmatpush.xpose.msra.mxu0 0.0
      %178 = vmatpush.xpose.msra.mxu0 0.0
      %179 = vmatpush.xpose.msra.mxu0 0.0
      %180 = vmatpush.xpose.msra.mxu0 0.0
      %181 = vmatpush.xpose.msra.mxu0 0.0
      %182 = vmatpush.xpose.msra.mxu0 0.0
      %183 = vmatpush.xpose.msra.mxu0 0.0
      %184 = vmatpush.xpose.msra.mxu0 0.0
      %185 = vmatpush.xpose.msra.mxu0 0.0
      %186 = vmatpush.xpose.msra.mxu0 %v170
      %187 = vmatpush.xpose.msra.mxu0 %v167
      %188 = vmatmul.f32.gmra.mxu0 %v164
      %v189 = vpop.f32.mrf.mxu0
      %v190 = vadd.f32 0.0, %v189
      %191 = vdwg.mxu0
      %v192 = vmul.f32 %v190, 0.35355338
      %vm193 = vcmask 130048
      %v194 = vsel %vm193, %v192, -inf
      %195 = vmax.xlane.f32.xlu0 %v194
      %v196 = vpop.xlane.xlu0 %195
      %v197 = vsub.f32 %v192, %v196
      %v198 = vmul.f32 %v197, 1.442695
      %v199 = vpow.pop %v198
      %v200 = vsel %vm193, %v199, 0.0
      %201 = vadd.xlane.f32.xlu0 %v200
      %v202 = vpop.xlane.xlu0 %201
      %v203 = vrcp.pop %v202
      %v204 = vmul.f32 %v199, %v203
      %205 = vrot.lane.b32.xlu0 %v160, 64
      %v206 = vpop.permute.xlu0 %205
      %207 = vrot.lane.b32.xlu0 %v161, 64
      %v208 = vpop.permute.xlu0 %207
      %v212 = vsel %vm193, %v204, 0
      %214 = vmatpush.msra.mxu0 0.0
      %215 = vmatpush.msra.mxu0 0.0
      %216 = vmatpush.msra.mxu0 0.0
      %217 = vmatpush.msra.mxu0 0.0
      %218 = vmatpush.msra.mxu0 0.0
      %219 = vmatpush.msra.mxu0 0.0
      %220 = vmatpush.msra.mxu0 0.0
      %221 = vmatpush.msra.mxu0 0.0
      %222 = vmatpush.msra.mxu0 0.0
      %223 = vmatpush.msra.mxu0 0.0
      %224 = vmatpush.msra.mxu0 0.0
      %225 = vmatpush.msra.mxu0 0.0
      %226 = vmatpush.msra.mxu0 0.0
      %227 = vmatpush.msra.mxu0 0.0
      %228 = vmatpush.msra.mxu0 %v208
      %229 = vmatpush.msra.mxu0 %v206
      %230 = vmatmul.f32.gmra.mxu0 %v212
      %v231 = vpop.f32.mrf.mxu0
      %v232 = vadd.f32 0.0, %v231
      %233 = vdwg.mxu0
      %234 = vrot.lane.b32.xlu0 %v159, 120
      %v235 = vpop.permute.xlu0 %234
      %236 = vrot.lane.b32.xlu0 %v160, 120
      %v237 = vpop.permute.xlu0 %236
      %238 = vrot.lane.b32.xlu0 %v161, 120
      %v239 = vpop.permute.xlu0 %238
      %v240 = vsel %vm162, %v235, 0
      %v242 = vsel %vm162, %v237, 0
      %v244 = vsel %vm162, %v239, 0
      %246 = vmatpush.xpose.msra.mxu0 0.0
      %247 = vmatpush.xpose.msra.mxu0 0.0
      %248 = vmatpush.xpose.msra.mxu0 0.0
      %249 = vmatpush.xpose.msra.mxu0 0.0
      %250 = vmatpush.xpose.msra.mxu0 0.0
      %251 = vmatpush.xpose.msra.mxu0 0.0
      %252 = vmatpush.xpose.msra.mxu0 0.0
      %253 = vmatpush.xpose.msra.mxu0 0.0
      %254 = vmatpush.xpose.msra.mxu0 0.0
      %255 = vmatpush.xpose.msra.mxu0 0.0
      %256 = vmatpush.xpose.msra.mxu0 0.0
      %257 = vmatpush.xpose.msra.mxu0 0.0
      %258 = vmatpush.xpose.msra.mxu0 0.0
      %259 = vmatpush.xpose.msra.mxu0 0.0
      %260 = vmatpush.xpose.msra.mxu0 %v244
      %261 = vmatpush.xpose.msra.mxu0 %v242
      %262 = vmatmul.f32.gmra.mxu0 %v240
      %v263 = vpop.f32.mrf.mxu0
      %v264 = vadd.f32 0.0, %v263
      %265 = vdwg.mxu0
      %v266 = vmul.f32 %v264, 0.35355338
      %v267 = vsel %vm193, %v266, -inf
      %268 = vmax.xlane.f32.xlu0 %v267
      %v269 = vpop.xlane.xlu0 %268
      %v270 = vsub.f32 %v266, %v269
      %v271 = vmul.f32 %v270, 1.442695
      %v272 = vpow.pop %v271
      %v273 = vsel %vm193, %v272, 0.0
      %274 = vadd.xlane.f32.xlu0 %v273
      %v275 = vpop.xlane.xlu0 %274
      %v276 = vrcp.pop %v275
      %v277 = vmul.f32 %v272, %v276
      %278 = vrot.lane.b32.xlu0 %v160, 56
      %v279 = vpop.permute.xlu0 %278
      %280 = vrot.lane.b32.xlu0 %v161, 56
      %v281 = vpop.permute.xlu0 %280
      %v285 = vsel %vm193, %v277, 0
      %287 = vmatpush.msra.mxu0 0.0
      %288 = vmatpush.msra.mxu0 0.0
      %289 = vmatpush.msra.mxu0 0.0
      %290 = vmatpush.msra.mxu0 0.0
      %291 = vmatpush.msra.mxu0 0.0
      %292 = vmatpush.msra.mxu0 0.0
      %293 = vmatpush.msra.mxu0 0.0
      %294 = vmatpush.msra.mxu0 0.0
      %295 = vmatpush.msra.mxu0 0.0
      %296 = vmatpush.msra.mxu0 0.0
      %297 = vmatpush.msra.mxu0 0.0
      %298 = vmatpush.msra.mxu0 0.0
      %299 = vmatpush.msra.mxu0 0.0
      %300 = vmatpush.msra.mxu0 0.0
      %301 = vmatpush.msra.mxu0 %v281
      %302 = vmatpush.msra.mxu0 %v279
      %303 = vmatmul.f32.gmra.mxu0 %v285
      %v304 = vpop.f32.mrf.mxu0
      %v305 = vadd.f32 0.0, %v304
      %306 = vdwg.mxu0
      %307 = vrot.lane.b32.xlu0 %v159, 112
      %v308 = vpop.permute.xlu0 %307
      %309 = vrot.lane.b32.xlu0 %v160, 112
      %v310 = vpop.permute.xlu0 %309
      %311 = vrot.lane.b32.xlu0 %v161, 112
      %v312 = vpop.permute.xlu0 %311
      %v313 = vsel %vm162, %v308, 0
      %v315 = vsel %vm162, %v310, 0
      %v317 = vsel %vm162, %v312, 0
      %319 = vmatpush.xpose.msra.mxu0 0.0
      %320 = vmatpush.xpose.msra.mxu0 0.0
      %321 = vmatpush.xpose.msra.mxu0 0.0
      %322 = vmatpush.xpose.msra.mxu0 0.0
      %323 = vmatpush.xpose.msra.mxu0 0.0
      %324 = vmatpush.xpose.msra.mxu0 0.0
      %325 = vmatpush.xpose.msra.mxu0 0.0
      %326 = vmatpush.xpose.msra.mxu0 0.0
      %327 = vmatpush.xpose.msra.mxu0 0.0
      %328 = vmatpush.xpose.msra.mxu0 0.0
      %329 = vmatpush.xpose.msra.mxu0 0.0
      %330 = vmatpush.xpose.msra.mxu0 0.0
      %331 = vmatpush.xpose.msra.mxu0 0.0
      %332 = vmatpush.xpose.msra.mxu0 0.0
      %333 = vmatpush.xpose.msra.mxu0 %v317
      %334 = vmatpush.xpose.msra.mxu0 %v315
      %335 = vmatmul.f32.gmra.mxu0 %v313
      %v336 = vpop.f32.mrf.mxu0
      %v337 = vadd.f32 0.0, %v336
      %338 = vdwg.mxu0
      %v339 = vmul.f32 %v337, 0.35355338
      %v340 = vsel %vm193, %v339, -inf
      %341 = vmax.xlane.f32.xlu0 %v340
      %v342 = vpop.xlane.xlu0 %341
      %v343 = vsub.f32 %v339, %v342
      %v344 = vmul.f32 %v343, 1.442695
      %v345 = vpow.pop %v344
      %v346 = vsel %vm193, %v345, 0.0
      %347 = vadd.xlane.f32.xlu0 %v346
      %v348 = vpop.xlane.xlu0 %347
      %v349 = vrcp.pop %v348
      %v350 = vmul.f32 %v345, %v349
      %351 = vrot.lane.b32.xlu0 %v160, 48
      %v352 = vpop.permute.xlu0 %351
      %353 = vrot.lane.b32.xlu0 %v161, 48
      %v354 = vpop.permute.xlu0 %353
      %v358 = vsel %vm193, %v350, 0
      %360 = vmatpush.msra.mxu0 0.0
      %361 = vmatpush.msra.mxu0 0.0
      %362 = vmatpush.msra.mxu0 0.0
      %363 = vmatpush.msra.mxu0 0.0
      %364 = vmatpush.msra.mxu0 0.0
      %365 = vmatpush.msra.mxu0 0.0
      %366 = vmatpush.msra.mxu0 0.0
      %367 = vmatpush.msra.mxu0 0.0
      %368 = vmatpush.msra.mxu0 0.0
      %369 = vmatpush.msra.mxu0 0.0
      %370 = vmatpush.msra.mxu0 0.0
      %371 = vmatpush.msra.mxu0 0.0
      %372 = vmatpush.msra.mxu0 0.0
      %373 = vmatpush.msra.mxu0 0.0
      %374 = vmatpush.msra.mxu0 %v354
      %375 = vmatpush.msra.mxu0 %v352
      %376 = vmatmul.f32.gmra.mxu0 %v358
      %v377 = vpop.f32.mrf.mxu0
      %v378 = vadd.f32 0.0, %v377
      %379 = vdwg.mxu0
      %380 = vrot.lane.b32.xlu0 %v159, 104
      %v381 = vpop.permute.xlu0 %380
      %382 = vrot.lane.b32.xlu0 %v160, 104
      %v383 = vpop.permute.xlu0 %382
      %384 = vrot.lane.b32.xlu0 %v161, 104
      %v385 = vpop.permute.xlu0 %384
      %v386 = vsel %vm162, %v381, 0
      %v388 = vsel %vm162, %v383, 0
      %v390 = vsel %vm162, %v385, 0
      %392 = vmatpush.xpose.msra.mxu0 0.0
      %393 = vmatpush.xpose.msra.mxu0 0.0
      %394 = vmatpush.xpose.msra.mxu0 0.0
      %395 = vmatpush.xpose.msra.mxu0 0.0
      %396 = vmatpush.xpose.msra.mxu0 0.0
      %397 = vmatpush.xpose.msra.mxu0 0.0
      %398 = vmatpush.xpose.msra.mxu0 0.0
      %399 = vmatpush.xpose.msra.mxu0 0.0
      %400 = vmatpush.xpose.msra.mxu0 0.0
      %401 = vmatpush.xpose.msra.mxu0 0.0
      %402 = vmatpush.xpose.msra.mxu0 0.0
      %403 = vmatpush.xpose.msra.mxu0 0.0
      %404 = vmatpush.xpose.msra.mxu0 0.0
      %405 = vmatpush.xpose.msra.mxu0 0.0
      %406 = vmatpush.xpose.msra.mxu0 %v390
      %407 = vmatpush.xpose.msra.mxu0 %v388
      %408 = vmatmul.f32.gmra.mxu0 %v386
      %v409 = vpop.f32.mrf.mxu0
      %v410 = vadd.f32 0.0, %v409
      %411 = vdwg.mxu0
      %v412 = vmul.f32 %v410, 0.35355338
      %v413 = vsel %vm193, %v412, -inf
      %414 = vmax.xlane.f32.xlu0 %v413
      %v415 = vpop.xlane.xlu0 %414
      %v416 = vsub.f32 %v412, %v415
      %v417 = vmul.f32 %v416, 1.442695
      %v418 = vpow.pop %v417
      %v419 = vsel %vm193, %v418, 0.0
      %420 = vadd.xlane.f32.xlu0 %v419
      %v421 = vpop.xlane.xlu0 %420
      %v422 = vrcp.pop %v421
      %v423 = vmul.f32 %v418, %v422
      %424 = vrot.lane.b32.xlu0 %v160, 40
      %v425 = vpop.permute.xlu0 %424
      %426 = vrot.lane.b32.xlu0 %v161, 40
      %v427 = vpop.permute.xlu0 %426
      %v431 = vsel %vm193, %v423, 0
      %433 = vmatpush.msra.mxu0 0.0
      %434 = vmatpush.msra.mxu0 0.0
      %435 = vmatpush.msra.mxu0 0.0
      %436 = vmatpush.msra.mxu0 0.0
      %437 = vmatpush.msra.mxu0 0.0
      %438 = vmatpush.msra.mxu0 0.0
      %439 = vmatpush.msra.mxu0 0.0
      %440 = vmatpush.msra.mxu0 0.0
      %441 = vmatpush.msra.mxu0 0.0
      %442 = vmatpush.msra.mxu0 0.0
      %443 = vmatpush.msra.mxu0 0.0
      %444 = vmatpush.msra.mxu0 0.0
      %445 = vmatpush.msra.mxu0 0.0
      %446 = vmatpush.msra.mxu0 0.0
      %447 = vmatpush.msra.mxu0 %v427
      %448 = vmatpush.msra.mxu0 %v425
      %449 = vmatmul.f32.gmra.mxu0 %v431
      %v450 = vpop.f32.mrf.mxu0
      %v451 = vadd.f32 0.0, %v450
      %452 = vdwg.mxu0
      %453 = vrot.lane.b32.xlu0 %v159, 96
      %v454 = vpop.permute.xlu0 %453
      %455 = vrot.lane.b32.xlu0 %v160, 96
      %v456 = vpop.permute.xlu0 %455
      %457 = vrot.lane.b32.xlu0 %v161, 96
      %v458 = vpop.permute.xlu0 %457
      %v459 = vsel %vm162, %v454, 0
      %v461 = vsel %vm162, %v456, 0
      %v463 = vsel %vm162, %v458, 0
      %465 = vmatpush.xpose.msra.mxu0 0.0
      %466 = vmatpush.xpose.msra.mxu0 0.0
      %467 = vmatpush.xpose.msra.mxu0 0.0
      %468 = vmatpush.xpose.msra.mxu0 0.0
      %469 = vmatpush.xpose.msra.mxu0 0.0
      %470 = vmatpush.xpose.msra.mxu0 0.0
      %471 = vmatpush.xpose.msra.mxu0 0.0
      %472 = vmatpush.xpose.msra.mxu0 0.0
      %473 = vmatpush.xpose.msra.mxu0 0.0
      %474 = vmatpush.xpose.msra.mxu0 0.0
      %475 = vmatpush.xpose.msra.mxu0 0.0
      %476 = vmatpush.xpose.msra.mxu0 0.0
      %477 = vmatpush.xpose.msra.mxu0 0.0
      %478 = vmatpush.xpose.msra.mxu0 0.0
      %479 = vmatpush.xpose.msra.mxu0 %v463
      %480 = vmatpush.xpose.msra.mxu0 %v461
      %481 = vmatmul.f32.gmra.mxu0 %v459
      %v482 = vpop.f32.mrf.mxu0
      %v483 = vadd.f32 0.0, %v482
      %484 = vdwg.mxu0
      %v485 = vmul.f32 %v483, 0.35355338
      %v486 = vsel %vm193, %v485, -inf
      %487 = vmax.xlane.f32.xlu0 %v486
      %v488 = vpop.xlane.xlu0 %487
      %v489 = vsub.f32 %v485, %v488
      %v490 = vmul.f32 %v489, 1.442695
      %v491 = vpow.pop %v490
      %v492 = vsel %vm193, %v491, 0.0
      %493 = vadd.xlane.f32.xlu0 %v492
      %v494 = vpop.xlane.xlu0 %493
      %v495 = vrcp.pop %v494
      %v496 = vmul.f32 %v491, %v495
      %497 = vrot.lane.b32.xlu0 %v160, 32
      %v498 = vpop.permute.xlu0 %497
      %499 = vrot.lane.b32.xlu0 %v161, 32
      %v500 = vpop.permute.xlu0 %499
      %v504 = vsel %vm193, %v496, 0
      %506 = vmatpush.msra.mxu0 0.0
      %507 = vmatpush.msra.mxu0 0.0
      %508 = vmatpush.msra.mxu0 0.0
      %509 = vmatpush.msra.mxu0 0.0
      %510 = vmatpush.msra.mxu0 0.0
      %511 = vmatpush.msra.mxu0 0.0
      %512 = vmatpush.msra.mxu0 0.0
      %513 = vmatpush.msra.mxu0 0.0
      %514 = vmatpush.msra.mxu0 0.0
      %515 = vmatpush.msra.mxu0 0.0
      %516 = vmatpush.msra.mxu0 0.0
      %517 = vmatpush.msra.mxu0 0.0
      %518 = vmatpush.msra.mxu0 0.0
      %519 = vmatpush.msra.mxu0 0.0
      %520 = vmatpush.msra.mxu0 %v500
      %521 = vmatpush.msra.mxu0 %v498
      %522 = vmatmul.f32.gmra.mxu0 %v504
      %v523 = vpop.f32.mrf.mxu0
      %v524 = vadd.f32 0.0, %v523
      %525 = vdwg.mxu0
      %526 = vrot.lane.b32.xlu0 %v159, 88
      %v527 = vpop.permute.xlu0 %526
      %528 = vrot.lane.b32.xlu0 %v160, 88
      %v529 = vpop.permute.xlu0 %528
      %530 = vrot.lane.b32.xlu0 %v161, 88
      %v531 = vpop.permute.xlu0 %530
      %v532 = vsel %vm162, %v527, 0
      %v534 = vsel %vm162, %v529, 0
      %v536 = vsel %vm162, %v531, 0
      %538 = vmatpush.xpose.msra.mxu0 0.0
      %539 = vmatpush.xpose.msra.mxu0 0.0
      %540 = vmatpush.xpose.msra.mxu0 0.0
      %541 = vmatpush.xpose.msra.mxu0 0.0
      %542 = vmatpush.xpose.msra.mxu0 0.0
      %543 = vmatpush.xpose.msra.mxu0 0.0
      %544 = vmatpush.xpose.msra.mxu0 0.0
      %545 = vmatpush.xpose.msra.mxu0 0.0
      %546 = vmatpush.xpose.msra.mxu0 0.0
      %547 = vmatpush.xpose.msra.mxu0 0.0
      %548 = vmatpush.xpose.msra.mxu0 0.0
      %549 = vmatpush.xpose.msra.mxu0 0.0
      %550 = vmatpush.xpose.msra.mxu0 0.0
      %551 = vmatpush.xpose.msra.mxu0 0.0
      %552 = vmatpush.xpose.msra.mxu0 %v536
      %553 = vmatpush.xpose.msra.mxu0 %v534
      %554 = vmatmul.f32.gmra.mxu0 %v532
      %v555 = vpop.f32.mrf.mxu0
      %v556 = vadd.f32 0.0, %v555
      %557 = vdwg.mxu0
      %v558 = vmul.f32 %v556, 0.35355338
      %v559 = vsel %vm193, %v558, -inf
      %560 = vmax.xlane.f32.xlu0 %v559
      %v561 = vpop.xlane.xlu0 %560
      %v562 = vsub.f32 %v558, %v561
      %v563 = vmul.f32 %v562, 1.442695
      %v564 = vpow.pop %v563
      %v565 = vsel %vm193, %v564, 0.0
      %566 = vadd.xlane.f32.xlu0 %v565
      %v567 = vpop.xlane.xlu0 %566
      %v568 = vrcp.pop %v567
      %v569 = vmul.f32 %v564, %v568
      %570 = vrot.lane.b32.xlu0 %v160, 24
      %v571 = vpop.permute.xlu0 %570
      %572 = vrot.lane.b32.xlu0 %v161, 24
      %v573 = vpop.permute.xlu0 %572
      %v577 = vsel %vm193, %v569, 0
      %579 = vmatpush.msra.mxu0 0.0
      %580 = vmatpush.msra.mxu0 0.0
      %581 = vmatpush.msra.mxu0 0.0
      %582 = vmatpush.msra.mxu0 0.0
      %583 = vmatpush.msra.mxu0 0.0
      %584 = vmatpush.msra.mxu0 0.0
      %585 = vmatpush.msra.mxu0 0.0
      %586 = vmatpush.msra.mxu0 0.0
      %587 = vmatpush.msra.mxu0 0.0
      %588 = vmatpush.msra.mxu0 0.0
      %589 = vmatpush.msra.mxu0 0.0
      %590 = vmatpush.msra.mxu0 0.0
      %591 = vmatpush.msra.mxu0 0.0
      %592 = vmatpush.msra.mxu0 0.0
      %593 = vmatpush.msra.mxu0 %v573
      %594 = vmatpush.msra.mxu0 %v571
      %595 = vmatmul.f32.gmra.mxu0 %v577
      %v596 = vpop.f32.mrf.mxu0
      %v597 = vadd.f32 0.0, %v596
      %598 = vdwg.mxu0
      %599 = vrot.lane.b32.xlu0 %v159, 80
      %v600 = vpop.permute.xlu0 %599
      %601 = vrot.lane.b32.xlu0 %v160, 80
      %v602 = vpop.permute.xlu0 %601
      %603 = vrot.lane.b32.xlu0 %v161, 80
      %v604 = vpop.permute.xlu0 %603
      %v605 = vsel %vm162, %v600, 0
      %v607 = vsel %vm162, %v602, 0
      %v609 = vsel %vm162, %v604, 0
      %611 = vmatpush.xpose.msra.mxu0 0.0
      %612 = vmatpush.xpose.msra.mxu0 0.0
      %613 = vmatpush.xpose.msra.mxu0 0.0
      %614 = vmatpush.xpose.msra.mxu0 0.0
      %615 = vmatpush.xpose.msra.mxu0 0.0
      %616 = vmatpush.xpose.msra.mxu0 0.0
      %617 = vmatpush.xpose.msra.mxu0 0.0
      %618 = vmatpush.xpose.msra.mxu0 0.0
      %619 = vmatpush.xpose.msra.mxu0 0.0
      %620 = vmatpush.xpose.msra.mxu0 0.0
      %621 = vmatpush.xpose.msra.mxu0 0.0
      %622 = vmatpush.xpose.msra.mxu0 0.0
      %623 = vmatpush.xpose.msra.mxu0 0.0
      %624 = vmatpush.xpose.msra.mxu0 0.0
      %625 = vmatpush.xpose.msra.mxu0 %v609
      %626 = vmatpush.xpose.msra.mxu0 %v607
      %627 = vmatmul.f32.gmra.mxu0 %v605
      %v628 = vpop.f32.mrf.mxu0
      %v629 = vadd.f32 0.0, %v628
      %630 = vdwg.mxu0
      %v631 = vmul.f32 %v629, 0.35355338
      %v632 = vsel %vm193, %v631, -inf
      %633 = vmax.xlane.f32.xlu0 %v632
      %v634 = vpop.xlane.xlu0 %633
      %v635 = vsub.f32 %v631, %v634
      %v636 = vmul.f32 %v635, 1.442695
      %v637 = vpow.pop %v636
      %v638 = vsel %vm193, %v637, 0.0
      %639 = vadd.xlane.f32.xlu0 %v638
      %v640 = vpop.xlane.xlu0 %639
      %v641 = vrcp.pop %v640
      %v642 = vmul.f32 %v637, %v641
      %643 = vrot.lane.b32.xlu0 %v160, 16
      %v644 = vpop.permute.xlu0 %643
      %645 = vrot.lane.b32.xlu0 %v161, 16
      %v646 = vpop.permute.xlu0 %645
      %v650 = vsel %vm193, %v642, 0
      %652 = vmatpush.msra.mxu0 0.0
      %653 = vmatpush.msra.mxu0 0.0
      %654 = vmatpush.msra.mxu0 0.0
      %655 = vmatpush.msra.mxu0 0.0
      %656 = vmatpush.msra.mxu0 0.0
      %657 = vmatpush.msra.mxu0 0.0
      %658 = vmatpush.msra.mxu0 0.0
      %659 = vmatpush.msra.mxu0 0.0
      %660 = vmatpush.msra.mxu0 0.0
      %661 = vmatpush.msra.mxu0 0.0
      %662 = vmatpush.msra.mxu0 0.0
      %663 = vmatpush.msra.mxu0 0.0
      %664 = vmatpush.msra.mxu0 0.0
      %665 = vmatpush.msra.mxu0 0.0
      %666 = vmatpush.msra.mxu0 %v646
      %667 = vmatpush.msra.mxu0 %v644
      %668 = vmatmul.f32.gmra.mxu0 %v650
      %v669 = vpop.f32.mrf.mxu0
      %v670 = vadd.f32 0.0, %v669
      %671 = vdwg.mxu0
      %672 = vrot.lane.b32.xlu0 %v159, 72
      %v673 = vpop.permute.xlu0 %672
      %674 = vrot.lane.b32.xlu0 %v160, 72
      %v675 = vpop.permute.xlu0 %674
      %676 = vrot.lane.b32.xlu0 %v161, 72
      %v677 = vpop.permute.xlu0 %676
      %v678 = vsel %vm162, %v673, 0
      %v680 = vsel %vm162, %v675, 0
      %v682 = vsel %vm162, %v677, 0
      %684 = vmatpush.xpose.msra.mxu0 0.0
      %685 = vmatpush.xpose.msra.mxu0 0.0
      %686 = vmatpush.xpose.msra.mxu0 0.0
      %687 = vmatpush.xpose.msra.mxu0 0.0
      %688 = vmatpush.xpose.msra.mxu0 0.0
      %689 = vmatpush.xpose.msra.mxu0 0.0
      %690 = vmatpush.xpose.msra.mxu0 0.0
      %691 = vmatpush.xpose.msra.mxu0 0.0
      %692 = vmatpush.xpose.msra.mxu0 0.0
      %693 = vmatpush.xpose.msra.mxu0 0.0
      %694 = vmatpush.xpose.msra.mxu0 0.0
      %695 = vmatpush.xpose.msra.mxu0 0.0
      %696 = vmatpush.xpose.msra.mxu0 0.0
      %697 = vmatpush.xpose.msra.mxu0 0.0
      %698 = vmatpush.xpose.msra.mxu0 %v682
      %699 = vmatpush.xpose.msra.mxu0 %v680
      %700 = vmatmul.f32.gmra.mxu0 %v678
      %v701 = vpop.f32.mrf.mxu0
      %v702 = vadd.f32 0.0, %v701
      %703 = vdwg.mxu0
      %v704 = vmul.f32 %v702, 0.35355338
      %v705 = vsel %vm193, %v704, -inf
      %706 = vmax.xlane.f32.xlu0 %v705
      %v707 = vpop.xlane.xlu0 %706
      %v708 = vsub.f32 %v704, %v707
      %v709 = vmul.f32 %v708, 1.442695
      %v710 = vpow.pop %v709
      %v711 = vsel %vm193, %v710, 0.0
      %712 = vadd.xlane.f32.xlu0 %v711
      %v713 = vpop.xlane.xlu0 %712
      %v714 = vrcp.pop %v713
      %v715 = vmul.f32 %v710, %v714
      %716 = vrot.lane.b32.xlu0 %v160, 8
      %v717 = vpop.permute.xlu0 %716
      %718 = vrot.lane.b32.xlu0 %v161, 8
      %v719 = vpop.permute.xlu0 %718
      %v723 = vsel %vm193, %v715, 0
      %725 = vmatpush.msra.mxu0 0.0
      %726 = vmatpush.msra.mxu0 0.0
      %727 = vmatpush.msra.mxu0 0.0
      %728 = vmatpush.msra.mxu0 0.0
      %729 = vmatpush.msra.mxu0 0.0
      %730 = vmatpush.msra.mxu0 0.0
      %731 = vmatpush.msra.mxu0 0.0
      %732 = vmatpush.msra.mxu0 0.0
      %733 = vmatpush.msra.mxu0 0.0
      %734 = vmatpush.msra.mxu0 0.0
      %735 = vmatpush.msra.mxu0 0.0
      %736 = vmatpush.msra.mxu0 0.0
      %737 = vmatpush.msra.mxu0 0.0
      %738 = vmatpush.msra.mxu0 0.0
      %739 = vmatpush.msra.mxu0 %v719
      %740 = vmatpush.msra.mxu0 %v717
      %741 = vmatmul.f32.gmra.mxu0 %v723
      %v742 = vpop.f32.mrf.mxu0
      %v743 = vadd.f32 0.0, %v742
      %744 = vdwg.mxu0
      %746 = vrot.lane.b32.xlu0 %v305, 8
      %v747 = vpop.permute.xlu0 %746
      %750 = vrot.lane.b32.xlu0 %v378, 16
      %v751 = vpop.permute.xlu0 %750
      %754 = vrot.lane.b32.xlu0 %v451, 24
      %v755 = vpop.permute.xlu0 %754
      %758 = vrot.lane.b32.xlu0 %v524, 32
      %v759 = vpop.permute.xlu0 %758
      %762 = vrot.lane.b32.xlu0 %v597, 40
      %v763 = vpop.permute.xlu0 %762
      %766 = vrot.lane.b32.xlu0 %v670, 48
      %v767 = vpop.permute.xlu0 %766
      %770 = vrot.lane.b32.xlu0 %v743, 56
      %v771 = vpop.permute.xlu0 %770
      %v773 = vsel %vm162, %v232, %v747
      %v774 = vsel %vm193, %v773, %v751
      %vm775 = vcmask 195584
      %v776 = vsel %vm775, %v774, %v755
      %vm777 = vcmask 261120
      %v778 = vsel %vm777, %v776, %v759
      %vm779 = vcmask 326656
      %v780 = vsel %vm779, %v778, %v763
      %vm781 = vcmask 392192
      %v782 = vsel %vm781, %v780, %v767
      %vm783 = vcmask 457728
      %v784 = vsel %vm783, %v782, %v771
      %vm785 = vcmask 523264
      %786 = vst.msk [vmem:[%s158] sm:$0xff] %vm785, %v784
      %p787 = scmp.lt.s32.totalorder %s13, 1
      %s788 = scalar_select %p787, %s13, 1
      %s789 = smul.addr %s788, 8
      %s790 = scalar_lea.vmem %s2, %s789
      // Predicated region
      $region29: #{transformer_forward.32} parent=27 // pred_check
        %p791 = pneg %p83
      $region30: #{transformer_forward.32} parent=27 // pred_check_branch
        %793 = sbr.rel (%p791) target = $region32
      $region31: #{transformer_forward.32} parent=27 // pred_region
        _
      $region32: #{transformer_forward.32} parent=27 // pred_fallthru
        _
    $region28: #{transformer_forward.32} parent=5 // pred_fallthru
      _
    %p794 = scmp.le.s32.totalorder 2, %s8
    // Predicated region
    $region33: #{transformer_forward.32} parent=5 // pred_check
      %p795 = pneg %p794
    $region34: #{transformer_forward.32} parent=5 // pred_check_branch
      %797 = sbr.rel (%p795) target = $region36
    $region35: #{transformer_forward.32} parent=5 // pred_region
      %s798 = ssub.s32 %s8, 2
      // Predicated region
      $region37: #{transformer_forward.32} parent=35 // pred_check
        %p799 = pneg %p89
      $region38: #{transformer_forward.32} parent=35 // pred_check_branch
        %801 = sbr.rel (%p799) target = $region40
      $region39: #{transformer_forward.32} parent=35 // pred_region
        %p802 = scmp.lt.s32.totalorder %s14, 1
        %s803 = scalar_select %p802, %s14, 1
        %s804 = smul.addr %s803, 8
        %s805 = scalar_lea.vmem %s2, %s804
      $region40: #{transformer_forward.32} parent=35 // pred_fallthru
        _
    $region36: #{transformer_forward.32} parent=5 // pred_fallthru
      _
  $region6: #{transformer_forward.32} parent=0 // loop_footer
    %s12 = sadd.s32 1, %s8
  $region7: #{transformer_forward.32} parent=0 // loop_footer_branch
    %7 = sbr.rel target = $region3
  $region8: #{transformer_forward.32} parent=0 // loop_exit
    _

// kernel: transformer_forward.34
$region0: #{transformer_forward.34}
  #allocation0 [shape = 'u32[]', space=smem, size = 0x4, offset = 0x4, fixed_abs, tag = 'smem constant byte address 0x4 - core index']
  #allocation1 [shape = 'u32[72,128]{1,0:T(1,128)}', space=vmem, size = 0x9000, scoped, tag = 'internal scratch']
  %s0 = inlined_call_operand.vmem [shape: f32[16,64], index: 0, kind: input, shape index: {}]
  %s1 = inlined_call_operand.vmem [shape: f32[64,128], index: 1, kind: input, shape index: {}]
  %s2 = inlined_call_operand.vmem [shape: f32[1,128], index: 2, kind: input, shape index: {}]
  %s3 = inlined_call_operand.vmem [shape: f32[1,64], index: 3, kind: input, shape index: {}]
  %s4 = inlined_call_operand.vmem [shape: f32[1,64], index: 4, kind: input, shape index: {}]
  %s5 = inlined_call_operand.vmem [shape: f32[16,128], index: 5, kind: output, shape index: {}]
  %s6 = sld [smem:[#allocation0]]
  $region30: #{transformer_forward.34} parent=0
    _
  %s8 = ssub.s32 1, %s6
  %s9 = scalar_select 0, %s8, %s6
  // Predicated region
  $region2: #{transformer_forward.34} parent=0 // pred_check
    _
  $region3: #{transformer_forward.34} parent=0 // pred_check_branch
    %11 = sbr.rel (0) target = $region5
  $region4: #{transformer_forward.34} parent=0 // pred_region
    _
  $region5: #{transformer_forward.34} parent=0 // pred_fallthru
    _
  // Predicated region
  $region6: #{transformer_forward.34} parent=0 // pred_check
    _
  $region7: #{transformer_forward.34} parent=0 // pred_check_branch
    %13 = sbr.rel (0) target = $region9
  $region8: #{transformer_forward.34} parent=0 // pred_region
    _
  $region9: #{transformer_forward.34} parent=0 // pred_fallthru
    _
  // Predicated region
  $region10: #{transformer_forward.34} parent=0 // pred_check
    _
  $region11: #{transformer_forward.34} parent=0 // pred_check_branch
    %15 = sbr.rel (0) target = $region13
  $region12: #{transformer_forward.34} parent=0 // pred_region
    _
  $region13: #{transformer_forward.34} parent=0 // pred_fallthru
    _
  // Predicated region
  $region14: #{transformer_forward.34} parent=0 // pred_check
    _
  $region15: #{transformer_forward.34} parent=0 // pred_check_branch
    %17 = sbr.rel (0) target = $region17
  $region16: #{transformer_forward.34} parent=0 // pred_region
    _
  $region17: #{transformer_forward.34} parent=0 // pred_fallthru
    _
  // Predicated region
  $region18: #{transformer_forward.34} parent=0 // pred_check
    _
  $region19: #{transformer_forward.34} parent=0 // pred_check_branch
    %19 = sbr.rel (0) target = $region21
  $region20: #{transformer_forward.34} parent=0 // pred_region
    _
  $region21: #{transformer_forward.34} parent=0 // pred_fallthru
    _
  %v20 = vld [vmem:[%s0] sm:$0xff]
  %v21 = vld [vmem:[%s0 + $0x8] sm:$0xff]
  %vm22 = vcmask 523264
  %v23 = vsel %vm22, %v20, 0.0
  %24 = vadd.xlane.f32.xlu0 %v23
  %v25 = vpop.xlane.xlu0 %24
  %v26 = vsel %vm22, %v21, 0.0
  %27 = vadd.xlane.f32.xlu0 %v26
  %v28 = vpop.xlane.xlu0 %27
  %v29 = vrcp.pop 64.0
  %v30 = vmul.f32 64.0, %v29
  %v31 = vsub.f32 1.0, %v30
  %v32 = vmul.f32 %v29, %v31
  %v33 = vadd.f32 %v29, %v32
  %vm34 = vweird.f32 %v29
  %v35 = vsel %vm34, %v29, %v33
  %v36 = vmul.f32 %v25, %v35
  %v37 = vmul.f32 %v28, %v35
  %v38 = vsub.f32 %v20, %v36
  %v39 = vsub.f32 %v21, %v37
  %v40 = vmul.f32 %v38, %v38
  %v41 = vmul.f32 %v39, %v39
  %v42 = vsel %vm22, %v40, 0.0
  %43 = vadd.xlane.f32.xlu0 %v42
  %v44 = vpop.xlane.xlu0 %43
  %v45 = vsel %vm22, %v41, 0.0
  %46 = vadd.xlane.f32.xlu0 %v45
  %v47 = vpop.xlane.xlu0 %46
  %v48 = vrcp.pop 63.0
  %v49 = vmul.f32 63.0, %v48
  %v50 = vsub.f32 1.0, %v49
  %v51 = vmul.f32 %v48, %v50
  %v52 = vadd.f32 %v48, %v51
  %vm53 = vweird.f32 %v48
  %v54 = vsel %vm53, %v48, %v52
  %v55 = vmul.f32 %v44, %v54
  %v56 = vmul.f32 %v47, %v54
  %v57 = vrsqrt.pop %v55
  %v58 = vmul.f32 %v57, %v55
  %v59 = vmul.f32 %v58, %v57
  %v60 = vmul.f32 0.5, %v59
  %v61 = vsub.f32 1.5, %v60
  %v62 = vmul.f32 %v57, %v61
  %v63 = vmul.f32 %v55, %v62
  %vm64 = vcmp.eq.f32.partialorder %v55, inf
  %v65 = vsel %vm64, %v55, %v63
  %vm66 = vcmp.eq.f32.partialorder %v55, 0.0
  %v67 = vand.u32 %v55, 2147483648
  %v68 = vsel %vm66, %v67, %v65
  %v69 = vrsqrt.pop %v56
  %v70 = vmul.f32 %v69, %v56
  %v71 = vmul.f32 %v70, %v69
  %v72 = vmul.f32 0.5, %v71
  %v73 = vsub.f32 1.5, %v72
  %v74 = vmul.f32 %v69, %v73
  %v75 = vmul.f32 %v56, %v74
  %vm76 = vcmp.eq.f32.partialorder %v56, inf
  %v77 = vsel %vm76, %v56, %v75
  %vm78 = vcmp.eq.f32.partialorder %v56, 0.0
  %v79 = vand.u32 %v56, 2147483648
  %v80 = vsel %vm78, %v79, %v77
  %v81 = vadd.f32 %v68, 1e-06
  %v82 = vadd.f32 %v80, 1e-06
  %v83 = vrcp.pop %v81
  %v84 = vrcp.pop %v82
  %v85 = vld [vmem:[%s3] sm:$0x1]
  %v87 = vperm.slane %v85, 0
  %v89 = vmul.f32 %v87, %v38
  %v90 = vmul.f32 %v87, %v39
  %v91 = vmul.f32 %v89, %v83
  %v92 = vmul.f32 %v90, %v84
  %v93 = vld [vmem:[%s4] sm:$0x1]
  %v95 = vperm.slane %v93, 0
  %v97 = vadd.f32 %v91, %v95
  %v98 = vadd.f32 %v92, %v95
  %v99 = vld [vmem:[%s1] sm:$0xff]
  %v100 = vld [vmem:[%s1 + $0x8] sm:$0xff]
  %v101 = vld [vmem:[%s1 + $0x10] sm:$0xff]
  %v102 = vld [vmem:[%s1 + $0x18] sm:$0xff]
  %v103 = vld [vmem:[%s1 + $0x20] sm:$0xff]
  %v104 = vld [vmem:[%s1 + $0x28] sm:$0xff]
  %v105 = vld [vmem:[%s1 + $0x30] sm:$0xff]
  %v106 = vld [vmem:[%s1 + $0x38] sm:$0xff]
  %v107 = vld [vmem:[%s2] sm:$0x1]
  %v109 = vperm.slane %v107, 0
  %v112 = vsel %vm22, %v97, 0
  %v115 = vsel %vm22, %v98, 0
  %117 = vmatpush.msra.mxu0 0.0
  %118 = vmatpush.msra.mxu0 0.0
  %119 = vmatpush.msra.mxu0 0.0
  %120 = vmatpush.msra.mxu0 0.0
  %121 = vmatpush.msra.mxu0 0.0
  %122 = vmatpush.msra.mxu0 0.0
  %123 = vmatpush.msra.mxu0 0.0
  %124 = vmatpush.msra.mxu0 0.0
  %125 = vmatpush.msra.mxu0 %v106
  %126 = vmatpush.msra.mxu0 %v105
  %127 = vmatpush.msra.mxu0 %v104
  %128 = vmatpush.msra.mxu0 %v103
  %129 = vmatpush.msra.mxu0 %v102
  %130 = vmatpush.msra.mxu0 %v101
  %131 = vmatpush.msra.mxu0 %v100
  %132 = vmatpush.msra.mxu0 %v99
  %133 = vmatmul.f32.gmra.mxu0 %v112
  %v134 = vpop.f32.mrf.mxu0
  %v135 = vadd.f32 %v109, %v134
  %136 = vmatmul.f32.gmra.mxu0 %v115
  %v137 = vpop.f32.mrf.mxu0
  %v138 = vadd.f32 %v109, %v137
  %139 = vdwg.mxu0
  %v140 = vmax.f32 %v135, 0.0
  %v141 = vmax.f32 %v138, 0.0
  %142 = vst [vmem:[%s5] sm:$0xff] %v140
  %143 = vst [vmem:[%s5 + $0x8] sm:$0xff] %v141
  // Predicated region
  $region22: #{transformer_forward.34} parent=0 // pred_check
    _
  $region23: #{transformer_forward.34} parent=0 // pred_check_branch
    %145 = sbr.rel (0) target = $region25
  $region24: #{transformer_forward.34} parent=0 // pred_region
    _
  $region25: #{transformer_forward.34} parent=0 // pred_fallthru
    _
  // Predicated region
  $region26: #{transformer_forward.34} parent=0 // pred_check
    _
  $region27: #{transformer_forward.34} parent=0 // pred_check_branch
    %147 = sbr.rel (0) target = $region29
  $region28: #{transformer_forward.34} parent=0 // pred_region
    _
  $region29: #{transformer_forward.34} parent=0 // pred_fallthru
    _

// kernel: transformer_forward.35
$region0: #{transformer_forward.35}
  #allocation0 [shape = 'u32[]', space=smem, size = 0x4, offset = 0x4, fixed_abs, tag = 'smem constant byte address 0x4 - core index']
  #allocation1 [shape = 'u32[72,128]{1,0:T(1,128)}', space=vmem, size = 0x9000, scoped, tag = 'internal scratch']
  %s0 = inlined_call_operand.vmem [shape: f32[16,128], index: 0, kind: input, shape index: {}]
  %s1 = inlined_call_operand.vmem [shape: f32[128,128], index: 1, kind: input, shape index: {}]
  %s2 = inlined_call_operand.vmem [shape: f32[1,128], index: 2, kind: input, shape index: {}]
  %s3 = inlined_call_operand.vmem [shape: f32[16,128], index: 3, kind: input, shape index: {}]
  %s4 = inlined_call_operand.vmem [shape: f32[16,128], index: 4, kind: output, shape index: {}]
  %s5 = sld [smem:[#allocation0]]
  $region26: #{transformer_forward.35} parent=0
    _
  %s7 = ssub.s32 1, %s5
  %s8 = scalar_select 0, %s7, %s5
  // Predicated region
  $region2: #{transformer_forward.35} parent=0 // pred_check
    _
  $region3: #{transformer_forward.35} parent=0 // pred_check_branch
    %10 = sbr.rel (0) target = $region5
  $region4: #{transformer_forward.35} parent=0 // pred_region
    _
  $region5: #{transformer_forward.35} parent=0 // pred_fallthru
    _
  // Predicated region
  $region6: #{transformer_forward.35} parent=0 // pred_check
    _
  $region7: #{transformer_forward.35} parent=0 // pred_check_branch
    %12 = sbr.rel (0) target = $region9
  $region8: #{transformer_forward.35} parent=0 // pred_region
    _
  $region9: #{transformer_forward.35} parent=0 // pred_fallthru
    _
  // Predicated region
  $region10: #{transformer_forward.35} parent=0 // pred_check
    _
  $region11: #{transformer_forward.35} parent=0 // pred_check_branch
    %14 = sbr.rel (0) target = $region13
  $region12: #{transformer_forward.35} parent=0 // pred_region
    _
  $region13: #{transformer_forward.35} parent=0 // pred_fallthru
    _
  // Predicated region
  $region14: #{transformer_forward.35} parent=0 // pred_check
    _
  $region15: #{transformer_forward.35} parent=0 // pred_check_branch
    %16 = sbr.rel (0) target = $region17
  $region16: #{transformer_forward.35} parent=0 // pred_region
    _
  $region17: #{transformer_forward.35} parent=0 // pred_fallthru
    _
  %v17 = vld [vmem:[%s0] sm:$0xff]
  %v18 = vld [vmem:[%s0 + $0x8] sm:$0xff]
  %v19 = vld [vmem:[%s1] sm:$0xff]
  %v20 = vld [vmem:[%s1 + $0x8] sm:$0xff]
  %v21 = vld [vmem:[%s1 + $0x10] sm:$0xff]
  %v22 = vld [vmem:[%s1 + $0x18] sm:$0xff]
  %v23 = vld [vmem:[%s1 + $0x20] sm:$0xff]
  %v24 = vld [vmem:[%s1 + $0x28] sm:$0xff]
  %v25 = vld [vmem:[%s1 + $0x30] sm:$0xff]
  %v26 = vld [vmem:[%s1 + $0x38] sm:$0xff]
  %v27 = vld [vmem:[%s1 + $0x40] sm:$0xff]
  %v28 = vld [vmem:[%s1 + $0x48] sm:$0xff]
  %v29 = vld [vmem:[%s1 + $0x50] sm:$0xff]
  %v30 = vld [vmem:[%s1 + $0x58] sm:$0xff]
  %v31 = vld [vmem:[%s1 + $0x60] sm:$0xff]
  %v32 = vld [vmem:[%s1 + $0x68] sm:$0xff]
  %v33 = vld [vmem:[%s1 + $0x70] sm:$0xff]
  %v34 = vld [vmem:[%s1 + $0x78] sm:$0xff]
  %v35 = vld [vmem:[%s2] sm:$0x1]
  %v37 = vperm.slane %v35, 0
  %39 = vmatpush.msra.mxu0 %v34
  %40 = vmatpush.msra.mxu0 %v33
  %41 = vmatpush.msra.mxu0 %v32
  %42 = vmatpush.msra.mxu0 %v31
  %43 = vmatpush.msra.mxu0 %v30
  %44 = vmatpush.msra.mxu0 %v29
  %45 = vmatpush.msra.mxu0 %v28
  %46 = vmatpush.msra.mxu0 %v27
  %47 = vmatpush.msra.mxu0 %v26
  %48 = vmatpush.msra.mxu0 %v25
  %49 = vmatpush.msra.mxu0 %v24
  %50 = vmatpush.msra.mxu0 %v23
  %51 = vmatpush.msra.mxu0 %v22
  %52 = vmatpush.msra.mxu0 %v21
  %53 = vmatpush.msra.mxu0 %v20
  %54 = vmatpush.msra.mxu0 %v19
  %55 = vmatmul.f32.gmra.mxu0 %v17
  %v56 = vpop.f32.mrf.mxu0
  %v57 = vadd.f32 %v37, %v56
  %58 = vmatmul.f32.gmra.mxu0 %v18
  %v59 = vpop.f32.mrf.mxu0
  %v60 = vadd.f32 %v37, %v59
  %61 = vdwg.mxu0
  %v62 = vld [vmem:[%s3] sm:$0xff]
  %v63 = vld [vmem:[%s3 + $0x8] sm:$0xff]
  %v64 = vadd.f32 %v62, %v57
  %v65 = vadd.f32 %v63, %v60
  %66 = vst [vmem:[%s4] sm:$0xff] %v64
  %67 = vst [vmem:[%s4 + $0x8] sm:$0xff] %v65
  // Predicated region
  $region18: #{transformer_forward.35} parent=0 // pred_check
    _
  $region19: #{transformer_forward.35} parent=0 // pred_check_branch
    %69 = sbr.rel (0) target = $region21
  $region20: #{transformer_forward.35} parent=0 // pred_region
    _
  $region21: #{transformer_forward.35} parent=0 // pred_fallthru
    _
  // Predicated region
  $region22: #{transformer_forward.35} parent=0 // pred_check
    _
  $region23: #{transformer_forward.35} parent=0 // pred_check_branch
    %71 = sbr.rel (0) target = $region25
  $region24: #{transformer_forward.35} parent=0 // pred_region
    _
  $region25: #{transformer_forward.35} parent=0 // pred_fallthru
    _

</llo_original>
